<compile_context>
chip_gen: v7x
topology: tpu7x:2x2x1
jax: 0.10.0
libtpu: 0.0.40
codegen_flags: <defaults>
</compile_context>

<pallas_src>
import math
from functools import partial

import jax
import jax.numpy as jnp
from jax.experimental import pallas as pl
from jax.experimental.pallas import tpu as pltpu

# ----------------------------- static config --------------------------------
IN_CHANNELS = 4
OUT_CHANNELS = 8              # == inter_channels
N_HEADS = 4                   # out_channels % 2 == 0
HEAD_DIM = OUT_CHANNELS // N_HEADS
STRIDE = 8                    # out_channels <= 64
NOG = 4                       # inter_channels % 4 == 0
FFN_DIM = 2048                # nn.TransformerEncoderLayer default
EPS = 1e-5
N_UP = 3                      # stride==8 -> UpSample applied 3x
BLK = 2 ** N_UP               # 8x total spatial upsampling factor

# packed-parameter row indices
(V_GN_W, V_GN_B, V_BO, V_LN1W, V_LN1B, V_B2, V_LN2W, V_LN2B, V_UPB, V_HM0) = range(10)
(M_WO, M_W3UP) = range(2)


# --------------------- fused conv+GN+ReLU+transformer+upmix kernel -----------
def fused_cmt_kernel(x_ref, wc_ref, qkvb_ref, mats_ref, gnp_ref, vecs_ref, seg_ref,
                     w1_ref, b1_ref, w2t_ref, o_ref, *, n_heads, head_dim):
    # x_ref:   (BL, Cin) flat token-major strided-conv input (BL = samples_per_block * L).
    # wc_ref:  (Cin, C) conv weight.       qkvb_ref: (C+1, 3C) fused [WQ|WK|WV ; bq|bk|bv].
    # mats_ref:(2, C, C) = [WO, W^3 upmix]. gnp_ref: (C, C) GroupNorm projection (denom folded).
    # vecs_ref:(13, C) packed (1,C) params + per-head masks.  seg_ref: (BL, BL) block-diag ones.
    # w1_ref:  (C, F) bf16.  b1_ref: (1, F) f32.  w2t_ref: (C, F) bf16 (linear2, transposed).
    x_tok = x_ref[...]
    C = wc_ref.shape[1]
    seg = seg_ref[...]                               # per-sample segment matrix (ones blocks)
    amask = (seg - 1.0) * 1e9                        # 0 in-sample, -1e9 cross-sample (hoisted)

    def vrow(i):                                     # packed (1, C) parameter row
        return vecs_ref[i:i + 1, :]

    # ---- 1x1x1 conv (stride folded in by the host-side gather), bias=False ----
    y = jnp.dot(x_tok, wc_ref[...], preferred_element_type=jnp.float32)        # (BL, C)

    # ---- per-sample GroupNorm (two-pass, biased var) + ReLU ----
    # seg @ y   : per-row sum over same-sample tokens
    # (.) @ gnp : per-channel mean over its group's channels (1/(L*group_size) folded host-side)
    seg_sum = jnp.dot(seg, y, preferred_element_type=jnp.float32)
    mean = jnp.dot(seg_sum, gnp_ref[...], preferred_element_type=jnp.float32)  # (BL, C)
    yc = y - mean
    seg_sq = jnp.dot(seg, yc * yc, preferred_element_type=jnp.float32)
    var = jnp.dot(seg_sq, gnp_ref[...], preferred_element_type=jnp.float32)
    xg = yc * jax.lax.rsqrt(var + EPS) * vrow(V_GN_W) + vrow(V_GN_B)
    xg = jnp.maximum(xg, 0.0)                        # conv_out tokens (BL, C)

    # ---- TransformerEncoderLayer (post-norm, eval) ----
    # fused Q/K/V projection: one (BL,C)@(C,3C) dot, then static lane slices
    qkv = jnp.dot(xg, qkvb_ref[0:C, :],
                  preferred_element_type=jnp.float32) + qkvb_ref[C:C + 1, :]   # (BL, 3C)
    q = qkv[:, 0 * C:1 * C]
    k = qkv[:, 1 * C:2 * C]
    v = qkv[:, 2 * C:3 * C]
    scale = 1.0 / math.sqrt(head_dim)
    attn = jnp.zeros_like(xg)
    # Heads kept as a static masked loop (single-vreg tiles): masking Q and V alone is
    # sufficient (zeroed Q channels annihilate cross-head terms in QK^T).  Scores use a
    # lane-lane dot_general so the K transpose is folded into the matmul.
    for h in range(n_heads):
        m = vrow(V_HM0 + h)                          # precomputed (1, C) head mask
        s = jax.lax.dot_general(q * m, k, (((1,), (1,)), ((), ())),
                                preferred_element_type=jnp.float32) * scale + amask
        s = s - jnp.max(s, axis=-1, keepdims=True)
        p = jnp.exp(s)
        p = p * pl.reciprocal(jnp.sum(p, axis=-1, keepdims=True), approx=True)
        attn = attn + jnp.dot(p, v * m, preferred_element_type=jnp.float32)
    sa = jnp.dot(attn, mats_ref[M_WO], preferred_element_type=jnp.float32) + vrow(V_BO)

    def layer_norm(z, w, b):
        mu = jnp.mean(z, axis=-1, keepdims=True)
        zc = z - mu
        var_ln = jnp.mean(zc * zc, axis=-1, keepdims=True)
        return zc * jax.lax.rsqrt(var_ln + EPS) * w + b

    x1 = layer_norm(xg + sa, vrow(V_LN1W), vrow(V_LN1B))
    # FFN: bf16 inputs on the two big MXU dots (f32 accumulation); bias/ReLU stay f32 on VPU.
    h1 = jnp.dot(x1.astype(jnp.bfloat16), w1_ref[...],
                 preferred_element_type=jnp.float32) + b1_ref[...]             # (BL, F)
    h1 = jnp.maximum(h1, 0.0)
    ff = jax.lax.dot_general(h1.astype(jnp.bfloat16), w2t_ref[...],
                             (((1,), (1,)), ((), ())),
                             preferred_element_type=jnp.float32) + vrow(V_B2)
    x2 = layer_norm(x1 + ff, vrow(V_LN2W), vrow(V_LN2B))

    out_tok = xg + x2                                # torch.add(conv_out, transformer_out)

    # ---- 3x ConvTranspose3d(k=1,s=2) collapsed to one channel mix at data positions ----
    o_ref[...] = jnp.dot(out_tok, mats_ref[M_W3UP],
                         preferred_element_type=jnp.float32) + vrow(V_UPB)     # (BL, C)


def fused_cmt_block(x_flat, prep, L, *, min_grid_steps=2, target_rows=128):
    """x_flat: (N*L, Cin) flat tokens.  Returns (N*L, C) token-major data positions."""
    NL, Cin = x_flat.shape
    N = NL // L
    C = OUT_CHANNELS
    F = FFN_DIM

    # Pack samples per grid step so tokens fill sublanes (~128 rows), but keep >= 2 grid
    # steps when N >= 2 so v7x's two TensorCores both get work.
    per_blk = max(1, min(target_rows // L, pl.cdiv(N, min_grid_steps)))
    per_blk = min(per_blk, N)
    while N % per_blk:
        per_blk -= 1
    BL = per_blk * L
    grid = (N // per_blk,)

    # block-diagonal per-sample segment matrix (ones within a sample) -> seg sums + attn mask
    tok_sample = jnp.arange(BL, dtype=jnp.int32) // L
    seg_ones = (tok_sample[:, None] == tok_sample[None, :]).astype(jnp.float32)

    # GroupNorm projection: averages each channel over its group's channels; 1/(L*gs) folded.
    group_size = C // NOG
    ch = jnp.arange(C, dtype=jnp.int32)
    gsel = (ch[:, None] // group_size == ch[None, :] // group_size).astype(jnp.float32)
    gnp = gsel / float(L * group_size)

    kernel = partial(fused_cmt_kernel, n_heads=N_HEADS, head_dim=HEAD_DIM)
    return pl.pallas_call(
        kernel,
        out_shape=jax.ShapeDtypeStruct((NL, C), jnp.float32),
        grid=grid,
        in_specs=[
            pl.BlockSpec((BL, Cin), lambda n: (n, 0)),
            pl.BlockSpec((Cin, C), lambda n: (0, 0)),
            pl.BlockSpec(prep["qkvb"].shape, lambda n: (0, 0)),
            pl.BlockSpec(prep["mats"].shape, lambda n: (0, 0, 0)),
            pl.BlockSpec((C, C), lambda n: (0, 0)),
            pl.BlockSpec(prep["vecs"].shape, lambda n: (0, 0)),
            pl.BlockSpec((BL, BL), lambda n: (0, 0)),
            pl.BlockSpec((C, F), lambda n: (0, 0)),
            pl.BlockSpec((1, F), lambda n: (0, 0)),
            pl.BlockSpec((C, F), lambda n: (0, 0)),
        ],
        out_specs=pl.BlockSpec((BL, C), lambda n: (n, 0)),
        compiler_params=pltpu.CompilerParams(dimension_semantics=("parallel",)),
    )(x_flat, prep["conv_w"], prep["qkvb"], prep["mats"], gnp, prep["vecs"],
      seg_ones, prep["w1"], prep["b1"], prep["w2t"])


# ------------------------------ full forward ---------------------------------
def cmt_block_forward(x, prep):
    # x: (N, Cin, D, H, W) NCDHW, float32
    N = x.shape[0]
    s = STRIDE
    xs = x[:, :, ::s, ::s, ::s]                                   # strided 1x1x1 conv gather
    Dp, Hp, Wp = xs.shape[2], xs.shape[3], xs.shape[4]
    L = Dp * Hp * Wp
    x_flat = jnp.transpose(xs, (0, 2, 3, 4, 1)).reshape(N * L, IN_CHANNELS)

    # one fused kernel: conv + GN + ReLU + transformer + residual + W^3 upsample mix
    data = fused_cmt_block(x_flat, prep, L)                       # (N*L, C) token-major
    data = jnp.transpose(data.reshape(N, Dp, Hp, Wp, OUT_CHANNELS), (0, 4, 1, 2, 3))

    # assemble the 8x-upsampled volume: data at offsets (0,0,0) of every 8^3 block,
    # precomputed constant bias classes everywhere else.  One where + reshape, no scatter.
    data_b = data.reshape(N, OUT_CHANNELS, Dp, 1, Hp, 1, Wp, 1)
    out = jnp.where(prep["origin_mask"], data_b, prep["pattern"])
    return out.reshape(N, OUT_CHANNELS, Dp * BLK, Hp * BLK, Wp * BLK)


# ------------------------------ parameter init --------------------------------
def init_params(key):
    C, Cin, F = OUT_CHANNELS, IN_CHANNELS, FFN_DIM
    ks = jax.random.split(key, 24)

    def rnd(k, shape, scale=0.1):
        return jax.random.normal(k, shape, jnp.float32) * scale

    return {
        "conv_w": rnd(ks[0], (Cin, C)),                       # Conv3d 1x1x1, bias=False
        "gn_w": 1.0 + rnd(ks[1], (1, C)), "gn_b": rnd(ks[2], (1, C)),
        "wq": rnd(ks[3], (C, C)), "bq": rnd(ks[4], (1, C)),
        "wk": rnd(ks[5], (C, C)), "bk": rnd(ks[6], (1, C)),
        "wv": rnd(ks[7], (C, C)), "bv": rnd(ks[8], (1, C)),
        "wo": rnd(ks[9], (C, C)), "bo": rnd(ks[10], (1, C)),
        "ln1_w": 1.0 + rnd(ks[11], (1, C)), "ln1_b": rnd(ks[12], (1, C)),
        "w1": rnd(ks[13], (C, F)), "b1": rnd(ks[14], (1, F)),
        "w2t": rnd(ks[15], (C, F), scale=0.02),               # linear2 weight, stored (C, F)
        "b2": rnd(ks[16], (1, C)),
        "ln2_w": 1.0 + rnd(ks[17], (1, C)), "ln2_b": rnd(ks[18], (1, C)),
        "up_w": rnd(ks[19], (C, C)),                          # ConvTranspose3d 1x1x1 weight
        "up_b": rnd(ks[20], (1, C)),                          # ConvTranspose3d bias
    }


def prepare_params(p):
    """One-time packing + algebraic folding of the 3 upsample rounds."""
    C = OUT_CHANNELS
    Wu, bu = p["up_w"], p["up_b"]
    b1u = bu @ Wu + bu                                         # all coords %2==0, not %4
    b2u = b1u @ Wu + bu                                        # all coords %4==0, not %8
    w3 = Wu @ Wu @ Wu                                          # data positions: x@W^3 + b2u

    qkvb = jnp.concatenate(
        [jnp.concatenate([p["wq"], p["wk"], p["wv"]], axis=1),
         jnp.concatenate([p["bq"], p["bk"], p["bv"]], axis=1)], axis=0)        # (C+1, 3C)
    mats = jnp.stack([p["wo"], w3], axis=0)                                     # (2, C, C)

    ch = jnp.arange(C, dtype=jnp.int32)[None, :]
    head_masks = jnp.concatenate(
        [(ch // HEAD_DIM == h).astype(jnp.float32) for h in range(N_HEADS)], axis=0)  # (H, C)

    vecs = jnp.concatenate(
        [p["gn_w"], p["gn_b"], p["bo"], p["ln1_w"], p["ln1_b"], p["b2"],
         p["ln2_w"], p["ln2_b"], b2u, head_masks], axis=0)                      # (13, C)

    # per-offset bias class inside each 8x8x8 output block
    o = jnp.arange(BLK)
    lvl = jnp.where(o == 0, 3, jnp.where(o % 4 == 0, 2, jnp.where(o % 2 == 0, 1, 0)))
    level = jnp.minimum(jnp.minimum(lvl[:, None, None], lvl[None, :, None]),
                        lvl[None, None, :])                    # (BLK, BLK, BLK)
    table = jnp.concatenate([bu, b1u, b2u, b2u], axis=0)       # (4, C); row 3 = data slot
    pattern = jnp.transpose(table[level], (3, 0, 1, 2)).reshape(1, C, 1, BLK, 1, BLK, 1, BLK)
    origin_mask = (level == 3).reshape(1, 1, 1, BLK, 1, BLK, 1, BLK)

    return {
        "conv_w": p["conv_w"], "qkvb": qkvb, "mats": mats, "vecs": vecs,
        "w1": p["w1"].astype(jnp.bfloat16), "b1": p["b1"],
        "w2t": p["w2t"].astype(jnp.bfloat16),
        "pattern": pattern, "origin_mask": origin_mask,
    }


# ----------------------------------- main -------------------------------------
if __name__ == "__main__":
    key = jax.random.PRNGKey(0)
    kx, kp = jax.random.split(key)
    x = jax.random.normal(kx, (2, IN_CHANNELS, 16, 16, 16), jnp.float32)
    params = init_params(kp)
    prep = prepare_params(params)

    fwd = jax.jit(lambda xx: cmt_block_forward(xx, prep))
    out = fwd(x)
    jax.block_until_ready(out)

    expected = (2, OUT_CHANNELS, 16, 16, 16)   # stride-8 conv then 3x (2x deconv upsample)
    assert out.shape == expected, (out.shape, expected)
    assert bool(jnp.all(jnp.isfinite(out)))
    print("KERNEL_OK")
</pallas_src>

<mosaic_0001>
module attributes {stable_mosaic.version = 11 : i64} {
  func.func @fused_cmt_kernel(%arg0: i32, %arg1: memref<8x4xf32, #tpu.memory_space<vmem>>, %arg2: memref<4x8xf32, #tpu.memory_space<vmem>>, %arg3: memref<9x24xf32, #tpu.memory_space<vmem>>, %arg4: memref<2x8x8xf32, #tpu.memory_space<vmem>>, %arg5: memref<8x8xf32, #tpu.memory_space<vmem>>, %arg6: memref<13x8xf32, #tpu.memory_space<vmem>>, %arg7: memref<8x8xf32, #tpu.memory_space<vmem>>, %arg8: memref<8x2048xbf16, #tpu.memory_space<vmem>>, %arg9: memref<1x2048xf32, #tpu.memory_space<vmem>>, %arg10: memref<8x2048xbf16, #tpu.memory_space<vmem>>, %arg11: memref<8x8xf32, #tpu.memory_space<vmem>>) attributes {dimension_semantics = [#tpu.dimension_semantics<parallel>], iteration_bounds = array<i64: 2>, scalar_prefetch = 0 : i64, scratch_operands = 0 : i64, tpu.core_type = #tpu.core_type<tc>, window_params = [{transform_indices = @transform_0, window_bounds = array<i64: 8, 4>}, {pipeline_mode = #tpu.pipeline_mode<synchronous>, transform_indices = @transform_1, window_bounds = array<i64: 4, 8>}, {pipeline_mode = #tpu.pipeline_mode<synchronous>, transform_indices = @transform_2, window_bounds = array<i64: 9, 24>}, {pipeline_mode = #tpu.pipeline_mode<synchronous>, transform_indices = @transform_3, window_bounds = array<i64: 2, 8, 8>}, {pipeline_mode = #tpu.pipeline_mode<synchronous>, transform_indices = @transform_4, window_bounds = array<i64: 8, 8>}, {pipeline_mode = #tpu.pipeline_mode<synchronous>, transform_indices = @transform_5, window_bounds = array<i64: 13, 8>}, {pipeline_mode = #tpu.pipeline_mode<synchronous>, transform_indices = @transform_6, window_bounds = array<i64: 8, 8>}, {pipeline_mode = #tpu.pipeline_mode<synchronous>, transform_indices = @transform_7, window_bounds = array<i64: 8, 2048>}, {pipeline_mode = #tpu.pipeline_mode<synchronous>, transform_indices = @transform_8, window_bounds = array<i64: 1, 2048>}, {pipeline_mode = #tpu.pipeline_mode<synchronous>, transform_indices = @transform_9, window_bounds = array<i64: 8, 2048>}, {transform_indices = @transform_10, window_bounds = array<i64: 8, 8>}]} {
    %c0 = arith.constant 0 : index
    %c0_0 = arith.constant 0 : index
    %0 = vector.load %arg1[%c0, %c0_0] : memref<8x4xf32, #tpu.memory_space<vmem>>, vector<8x4xf32>
    %c0_1 = arith.constant 0 : index
    %c0_2 = arith.constant 0 : index
    %1 = vector.load %arg7[%c0_1, %c0_2] : memref<8x8xf32, #tpu.memory_space<vmem>>, vector<8x8xf32>
    %cst = arith.constant 1.000000e+00 : f32
    %2 = vector.broadcast %cst : f32 to vector<8x8xf32>
    %3 = arith.subf %1, %2 : vector<8x8xf32>
    %cst_3 = arith.constant 1.000000e+09 : f32
    %4 = vector.broadcast %cst_3 : f32 to vector<8x8xf32>
    %5 = arith.mulf %3, %4 : vector<8x8xf32>
    %c0_4 = arith.constant 0 : index
    %c0_5 = arith.constant 0 : index
    %6 = vector.load %arg2[%c0_4, %c0_5] : memref<4x8xf32, #tpu.memory_space<vmem>>, vector<4x8xf32>
    %cst_6 = arith.constant dense<0.000000e+00> : vector<8x8xf32>
    %7 = tpu.matmul %0, %6, %cst_6 {dimension_numbers = #tpu.dot_dimension_numbers<[1], [0], [0], [1], [0, 0, 1, 1], [], []>} : vector<8x4xf32>, vector<4x8xf32>, vector<8x8xf32> -> vector<8x8xf32>
    %cst_7 = arith.constant dense<0.000000e+00> : vector<8x8xf32>
    %8 = tpu.matmul %1, %7, %cst_7 {dimension_numbers = #tpu.dot_dimension_numbers<[1], [0], [0], [1], [0, 0, 1, 1], [], []>} : vector<8x8xf32>, vector<8x8xf32>, vector<8x8xf32> -> vector<8x8xf32>
    %c0_8 = arith.constant 0 : index
    %c0_9 = arith.constant 0 : index
    %9 = vector.load %arg5[%c0_8, %c0_9] : memref<8x8xf32, #tpu.memory_space<vmem>>, vector<8x8xf32>
    %cst_10 = arith.constant dense<0.000000e+00> : vector<8x8xf32>
    %10 = tpu.matmul %8, %9, %cst_10 {dimension_numbers = #tpu.dot_dimension_numbers<[1], [0], [0], [1], [0, 0, 1, 1], [], []>} : vector<8x8xf32>, vector<8x8xf32>, vector<8x8xf32> -> vector<8x8xf32>
    %11 = arith.subf %7, %10 : vector<8x8xf32>
    %12 = arith.mulf %11, %11 : vector<8x8xf32>
    %cst_11 = arith.constant dense<0.000000e+00> : vector<8x8xf32>
    %13 = tpu.matmul %1, %12, %cst_11 {dimension_numbers = #tpu.dot_dimension_numbers<[1], [0], [0], [1], [0, 0, 1, 1], [], []>} : vector<8x8xf32>, vector<8x8xf32>, vector<8x8xf32> -> vector<8x8xf32>
    %c0_12 = arith.constant 0 : index
    %c0_13 = arith.constant 0 : index
    %14 = vector.load %arg5[%c0_12, %c0_13] : memref<8x8xf32, #tpu.memory_space<vmem>>, vector<8x8xf32>
    %cst_14 = arith.constant dense<0.000000e+00> : vector<8x8xf32>
    %15 = tpu.matmul %13, %14, %cst_14 {dimension_numbers = #tpu.dot_dimension_numbers<[1], [0], [0], [1], [0, 0, 1, 1], [], []>} : vector<8x8xf32>, vector<8x8xf32>, vector<8x8xf32> -> vector<8x8xf32>
    %cst_15 = arith.constant 9.99999974E-6 : f32
    %16 = vector.broadcast %cst_15 : f32 to vector<8x8xf32>
    %17 = arith.addf %15, %16 : vector<8x8xf32>
    %18 = math.rsqrt %17 : vector<8x8xf32>
    %19 = arith.mulf %11, %18 : vector<8x8xf32>
    %c0_16 = arith.constant 0 : index
    %c0_17 = arith.constant 0 : index
    %20 = vector.load %arg6[%c0_16, %c0_17] : memref<13x8xf32, #tpu.memory_space<vmem>>, vector<1x8xf32>
    %21 = vector.broadcast %20 : vector<1x8xf32> to vector<8x8xf32>
    %22 = arith.mulf %19, %21 : vector<8x8xf32>
    %c1 = arith.constant 1 : index
    %c0_18 = arith.constant 0 : index
    %23 = vector.load %arg6[%c1, %c0_18] : memref<13x8xf32, #tpu.memory_space<vmem>>, vector<1x8xf32>
    %24 = vector.broadcast %23 : vector<1x8xf32> to vector<8x8xf32>
    %25 = arith.addf %22, %24 : vector<8x8xf32>
    %cst_19 = arith.constant 0.000000e+00 : f32
    %26 = vector.broadcast %cst_19 : f32 to vector<8x8xf32>
    %27 = arith.maximumf %25, %26 : vector<8x8xf32>
    %c0_20 = arith.constant 0 : index
    %c0_21 = arith.constant 0 : index
    %28 = vector.load %arg3[%c0_20, %c0_21] : memref<9x24xf32, #tpu.memory_space<vmem>>, vector<8x24xf32>
    %cst_22 = arith.constant dense<0.000000e+00> : vector<8x24xf32>
    %29 = tpu.matmul %27, %28, %cst_22 {dimension_numbers = #tpu.dot_dimension_numbers<[1], [0], [0], [1], [0, 0, 1, 1], [], []>} : vector<8x8xf32>, vector<8x24xf32>, vector<8x24xf32> -> vector<8x24xf32>
    %c8 = arith.constant 8 : index
    %c0_23 = arith.constant 0 : index
    %30 = vector.load %arg3[%c8, %c0_23] : memref<9x24xf32, #tpu.memory_space<vmem>>, vector<1x24xf32>
    %31 = vector.broadcast %30 : vector<1x24xf32> to vector<8x24xf32>
    %32 = arith.addf %29, %31 : vector<8x24xf32>
    %33 = vector.extract_strided_slice %32 {offsets = [0, 0], sizes = [8, 8], strides = [1, 1]} : vector<8x24xf32> to vector<8x8xf32>
    %34 = vector.extract_strided_slice %32 {offsets = [0, 8], sizes = [8, 8], strides = [1, 1]} : vector<8x24xf32> to vector<8x8xf32>
    %35 = vector.extract_strided_slice %32 {offsets = [0, 16], sizes = [8, 8], strides = [1, 1]} : vector<8x24xf32> to vector<8x8xf32>
    %cst_24 = arith.constant 0.000000e+00 : f32
    %36 = vector.broadcast %cst_24 : f32 to vector<8x8xf32>
    %c9 = arith.constant 9 : index
    %c0_25 = arith.constant 0 : index
    %37 = vector.load %arg6[%c9, %c0_25] : memref<13x8xf32, #tpu.memory_space<vmem>>, vector<1x8xf32>
    %38 = vector.broadcast %37 : vector<1x8xf32> to vector<8x8xf32>
    %39 = arith.mulf %33, %38 : vector<8x8xf32>
    %cst_26 = arith.constant dense<0.000000e+00> : vector<8x8xf32>
    %40 = tpu.matmul %39, %34, %cst_26 {dimension_numbers = #tpu.dot_dimension_numbers<[1], [1], [0], [0], [0, 0, 1, 0], [], []>} : vector<8x8xf32>, vector<8x8xf32>, vector<8x8xf32> -> vector<8x8xf32>
    %cst_27 = arith.constant 0.707106769 : f32
    %41 = vector.broadcast %cst_27 : f32 to vector<8x8xf32>
    %42 = arith.mulf %40, %41 : vector<8x8xf32>
    %43 = arith.addf %42, %5 : vector<8x8xf32>
    %cst_28 = arith.constant dense<0xFF800000> : vector<8xf32>
    %44 = vector.multi_reduction <maximumf>, %43, %cst_28 [1] : vector<8x8xf32> to vector<8xf32>
    %45 = vector.shape_cast %44 : vector<8xf32> to vector<8x1xf32>
    %46 = vector.broadcast %45 : vector<8x1xf32> to vector<8x8xf32>
    %47 = arith.subf %43, %46 : vector<8x8xf32>
    %48 = math.exp %47 : vector<8x8xf32>
    %cst_29 = arith.constant dense<0.000000e+00> : vector<8xf32>
    %49 = vector.multi_reduction <add>, %48, %cst_29 [1] : vector<8x8xf32> to vector<8xf32>
    %50 = vector.shape_cast %49 : vector<8xf32> to vector<8x1xf32>
    %51 = tpu.reciprocal %50 {approx = true} : vector<8x1xf32> -> vector<8x1xf32>
    %52 = vector.broadcast %51 : vector<8x1xf32> to vector<8x8xf32>
    %53 = arith.mulf %48, %52 : vector<8x8xf32>
    %54 = vector.broadcast %37 : vector<1x8xf32> to vector<8x8xf32>
    %55 = arith.mulf %35, %54 : vector<8x8xf32>
    %cst_30 = arith.constant dense<0.000000e+00> : vector<8x8xf32>
    %56 = tpu.matmul %53, %55, %cst_30 {dimension_numbers = #tpu.dot_dimension_numbers<[1], [0], [0], [1], [0, 0, 1, 1], [], []>} : vector<8x8xf32>, vector<8x8xf32>, vector<8x8xf32> -> vector<8x8xf32>
    %57 = arith.addf %36, %56 : vector<8x8xf32>
    %c10 = arith.constant 10 : index
    %c0_31 = arith.constant 0 : index
    %58 = vector.load %arg6[%c10, %c0_31] : memref<13x8xf32, #tpu.memory_space<vmem>>, vector<1x8xf32>
    %59 = vector.broadcast %58 : vector<1x8xf32> to vector<8x8xf32>
    %60 = arith.mulf %33, %59 : vector<8x8xf32>
    %cst_32 = arith.constant dense<0.000000e+00> : vector<8x8xf32>
    %61 = tpu.matmul %60, %34, %cst_32 {dimension_numbers = #tpu.dot_dimension_numbers<[1], [1], [0], [0], [0, 0, 1, 0], [], []>} : vector<8x8xf32>, vector<8x8xf32>, vector<8x8xf32> -> vector<8x8xf32>
    %cst_33 = arith.constant 0.707106769 : f32
    %62 = vector.broadcast %cst_33 : f32 to vector<8x8xf32>
    %63 = arith.mulf %61, %62 : vector<8x8xf32>
    %64 = arith.addf %63, %5 : vector<8x8xf32>
    %cst_34 = arith.constant dense<0xFF800000> : vector<8xf32>
    %65 = vector.multi_reduction <maximumf>, %64, %cst_34 [1] : vector<8x8xf32> to vector<8xf32>
    %66 = vector.shape_cast %65 : vector<8xf32> to vector<8x1xf32>
    %67 = vector.broadcast %66 : vector<8x1xf32> to vector<8x8xf32>
    %68 = arith.subf %64, %67 : vector<8x8xf32>
    %69 = math.exp %68 : vector<8x8xf32>
    %cst_35 = arith.constant dense<0.000000e+00> : vector<8xf32>
    %70 = vector.multi_reduction <add>, %69, %cst_35 [1] : vector<8x8xf32> to vector<8xf32>
    %71 = vector.shape_cast %70 : vector<8xf32> to vector<8x1xf32>
    %72 = tpu.reciprocal %71 {approx = true} : vector<8x1xf32> -> vector<8x1xf32>
    %73 = vector.broadcast %72 : vector<8x1xf32> to vector<8x8xf32>
    %74 = arith.mulf %69, %73 : vector<8x8xf32>
    %75 = vector.broadcast %58 : vector<1x8xf32> to vector<8x8xf32>
    %76 = arith.mulf %35, %75 : vector<8x8xf32>
    %cst_36 = arith.constant dense<0.000000e+00> : vector<8x8xf32>
    %77 = tpu.matmul %74, %76, %cst_36 {dimension_numbers = #tpu.dot_dimension_numbers<[1], [0], [0], [1], [0, 0, 1, 1], [], []>} : vector<8x8xf32>, vector<8x8xf32>, vector<8x8xf32> -> vector<8x8xf32>
    %78 = arith.addf %57, %77 : vector<8x8xf32>
    %c11 = arith.constant 11 : index
    %c0_37 = arith.constant 0 : index
    %79 = vector.load %arg6[%c11, %c0_37] : memref<13x8xf32, #tpu.memory_space<vmem>>, vector<1x8xf32>
    %80 = vector.broadcast %79 : vector<1x8xf32> to vector<8x8xf32>
    %81 = arith.mulf %33, %80 : vector<8x8xf32>
    %cst_38 = arith.constant dense<0.000000e+00> : vector<8x8xf32>
    %82 = tpu.matmul %81, %34, %cst_38 {dimension_numbers = #tpu.dot_dimension_numbers<[1], [1], [0], [0], [0, 0, 1, 0], [], []>} : vector<8x8xf32>, vector<8x8xf32>, vector<8x8xf32> -> vector<8x8xf32>
    %cst_39 = arith.constant 0.707106769 : f32
    %83 = vector.broadcast %cst_39 : f32 to vector<8x8xf32>
    %84 = arith.mulf %82, %83 : vector<8x8xf32>
    %85 = arith.addf %84, %5 : vector<8x8xf32>
    %cst_40 = arith.constant dense<0xFF800000> : vector<8xf32>
    %86 = vector.multi_reduction <maximumf>, %85, %cst_40 [1] : vector<8x8xf32> to vector<8xf32>
    %87 = vector.shape_cast %86 : vector<8xf32> to vector<8x1xf32>
    %88 = vector.broadcast %87 : vector<8x1xf32> to vector<8x8xf32>
    %89 = arith.subf %85, %88 : vector<8x8xf32>
    %90 = math.exp %89 : vector<8x8xf32>
    %cst_41 = arith.constant dense<0.000000e+00> : vector<8xf32>
    %91 = vector.multi_reduction <add>, %90, %cst_41 [1] : vector<8x8xf32> to vector<8xf32>
    %92 = vector.shape_cast %91 : vector<8xf32> to vector<8x1xf32>
    %93 = tpu.reciprocal %92 {approx = true} : vector<8x1xf32> -> vector<8x1xf32>
    %94 = vector.broadcast %93 : vector<8x1xf32> to vector<8x8xf32>
    %95 = arith.mulf %90, %94 : vector<8x8xf32>
    %96 = vector.broadcast %79 : vector<1x8xf32> to vector<8x8xf32>
    %97 = arith.mulf %35, %96 : vector<8x8xf32>
    %cst_42 = arith.constant dense<0.000000e+00> : vector<8x8xf32>
    %98 = tpu.matmul %95, %97, %cst_42 {dimension_numbers = #tpu.dot_dimension_numbers<[1], [0], [0], [1], [0, 0, 1, 1], [], []>} : vector<8x8xf32>, vector<8x8xf32>, vector<8x8xf32> -> vector<8x8xf32>
    %99 = arith.addf %78, %98 : vector<8x8xf32>
    %c12 = arith.constant 12 : index
    %c0_43 = arith.constant 0 : index
    %100 = vector.load %arg6[%c12, %c0_43] : memref<13x8xf32, #tpu.memory_space<vmem>>, vector<1x8xf32>
    %101 = vector.broadcast %100 : vector<1x8xf32> to vector<8x8xf32>
    %102 = arith.mulf %33, %101 : vector<8x8xf32>
    %cst_44 = arith.constant dense<0.000000e+00> : vector<8x8xf32>
    %103 = tpu.matmul %102, %34, %cst_44 {dimension_numbers = #tpu.dot_dimension_numbers<[1], [1], [0], [0], [0, 0, 1, 0], [], []>} : vector<8x8xf32>, vector<8x8xf32>, vector<8x8xf32> -> vector<8x8xf32>
    %cst_45 = arith.constant 0.707106769 : f32
    %104 = vector.broadcast %cst_45 : f32 to vector<8x8xf32>
    %105 = arith.mulf %103, %104 : vector<8x8xf32>
    %106 = arith.addf %105, %5 : vector<8x8xf32>
    %cst_46 = arith.constant dense<0xFF800000> : vector<8xf32>
    %107 = vector.multi_reduction <maximumf>, %106, %cst_46 [1] : vector<8x8xf32> to vector<8xf32>
    %108 = vector.shape_cast %107 : vector<8xf32> to vector<8x1xf32>
    %109 = vector.broadcast %108 : vector<8x1xf32> to vector<8x8xf32>
    %110 = arith.subf %106, %109 : vector<8x8xf32>
    %111 = math.exp %110 : vector<8x8xf32>
    %cst_47 = arith.constant dense<0.000000e+00> : vector<8xf32>
    %112 = vector.multi_reduction <add>, %111, %cst_47 [1] : vector<8x8xf32> to vector<8xf32>
    %113 = vector.shape_cast %112 : vector<8xf32> to vector<8x1xf32>
    %114 = tpu.reciprocal %113 {approx = true} : vector<8x1xf32> -> vector<8x1xf32>
    %115 = vector.broadcast %114 : vector<8x1xf32> to vector<8x8xf32>
    %116 = arith.mulf %111, %115 : vector<8x8xf32>
    %117 = vector.broadcast %100 : vector<1x8xf32> to vector<8x8xf32>
    %118 = arith.mulf %35, %117 : vector<8x8xf32>
    %cst_48 = arith.constant dense<0.000000e+00> : vector<8x8xf32>
    %119 = tpu.matmul %116, %118, %cst_48 {dimension_numbers = #tpu.dot_dimension_numbers<[1], [0], [0], [1], [0, 0, 1, 1], [], []>} : vector<8x8xf32>, vector<8x8xf32>, vector<8x8xf32> -> vector<8x8xf32>
    %120 = arith.addf %99, %119 : vector<8x8xf32>
    %c0_49 = arith.constant 0 : index
    %c0_50 = arith.constant 0 : index
    %c0_51 = arith.constant 0 : index
    %121 = vector.load %arg4[%c0_49, %c0_50, %c0_51] : memref<2x8x8xf32, #tpu.memory_space<vmem>>, vector<1x8x8xf32>
    %122 = vector.shape_cast %121 : vector<1x8x8xf32> to vector<8x8xf32>
    %cst_52 = arith.constant dense<0.000000e+00> : vector<8x8xf32>
    %123 = tpu.matmul %120, %122, %cst_52 {dimension_numbers = #tpu.dot_dimension_numbers<[1], [0], [0], [1], [0, 0, 1, 1], [], []>} : vector<8x8xf32>, vector<8x8xf32>, vector<8x8xf32> -> vector<8x8xf32>
    %c2 = arith.constant 2 : index
    %c0_53 = arith.constant 0 : index
    %124 = vector.load %arg6[%c2, %c0_53] : memref<13x8xf32, #tpu.memory_space<vmem>>, vector<1x8xf32>
    %125 = vector.broadcast %124 : vector<1x8xf32> to vector<8x8xf32>
    %126 = arith.addf %123, %125 : vector<8x8xf32>
    %127 = arith.addf %27, %126 : vector<8x8xf32>
    %c3 = arith.constant 3 : index
    %c0_54 = arith.constant 0 : index
    %128 = vector.load %arg6[%c3, %c0_54] : memref<13x8xf32, #tpu.memory_space<vmem>>, vector<1x8xf32>
    %c4 = arith.constant 4 : index
    %c0_55 = arith.constant 0 : index
    %129 = vector.load %arg6[%c4, %c0_55] : memref<13x8xf32, #tpu.memory_space<vmem>>, vector<1x8xf32>
    %cst_56 = arith.constant dense<0.000000e+00> : vector<8xf32>
    %130 = vector.multi_reduction <add>, %127, %cst_56 [1] : vector<8x8xf32> to vector<8xf32>
    %131 = vector.shape_cast %130 : vector<8xf32> to vector<8x1xf32>
    %cst_57 = arith.constant 8.000000e+00 : f32
    %132 = vector.broadcast %cst_57 : f32 to vector<8x1xf32>
    %133 = arith.divf %131, %132 : vector<8x1xf32>
    %134 = vector.broadcast %133 : vector<8x1xf32> to vector<8x8xf32>
    %135 = arith.subf %127, %134 : vector<8x8xf32>
    %136 = arith.mulf %135, %135 : vector<8x8xf32>
    %cst_58 = arith.constant dense<0.000000e+00> : vector<8xf32>
    %137 = vector.multi_reduction <add>, %136, %cst_58 [1] : vector<8x8xf32> to vector<8xf32>
    %138 = vector.shape_cast %137 : vector<8xf32> to vector<8x1xf32>
    %cst_59 = arith.constant 8.000000e+00 : f32
    %139 = vector.broadcast %cst_59 : f32 to vector<8x1xf32>
    %140 = arith.divf %138, %139 : vector<8x1xf32>
    %cst_60 = arith.constant 9.99999974E-6 : f32
    %141 = vector.broadcast %cst_60 : f32 to vector<8x1xf32>
    %142 = arith.addf %140, %141 : vector<8x1xf32>
    %143 = math.rsqrt %142 : vector<8x1xf32>
    %144 = vector.broadcast %143 : vector<8x1xf32> to vector<8x8xf32>
    %145 = arith.mulf %135, %144 : vector<8x8xf32>
    %146 = vector.broadcast %128 : vector<1x8xf32> to vector<8x8xf32>
    %147 = arith.mulf %145, %146 : vector<8x8xf32>
    %148 = vector.broadcast %129 : vector<1x8xf32> to vector<8x8xf32>
    %149 = arith.addf %147, %148 : vector<8x8xf32>
    %150 = arith.truncf %149 : vector<8x8xf32> to vector<8x8xbf16>
    %c0_61 = arith.constant 0 : index
    %c0_62 = arith.constant 0 : index
    %151 = vector.load %arg8[%c0_61, %c0_62] : memref<8x2048xbf16, #tpu.memory_space<vmem>>, vector<8x2048xbf16>
    %cst_63 = arith.constant dense<0.000000e+00> : vector<8x2048xf32>
    %152 = tpu.matmul %150, %151, %cst_63 {dimension_numbers = #tpu.dot_dimension_numbers<[1], [0], [0], [1], [0, 0, 1, 1], [], []>} : vector<8x8xbf16>, vector<8x2048xbf16>, vector<8x2048xf32> -> vector<8x2048xf32>
    %c0_64 = arith.constant 0 : index
    %c0_65 = arith.constant 0 : index
    %153 = vector.load %arg9[%c0_64, %c0_65] : memref<1x2048xf32, #tpu.memory_space<vmem>>, vector<1x2048xf32>
    %154 = vector.broadcast %153 : vector<1x2048xf32> to vector<8x2048xf32>
    %155 = arith.addf %152, %154 : vector<8x2048xf32>
    %cst_66 = arith.constant 0.000000e+00 : f32
    %156 = vector.broadcast %cst_66 : f32 to vector<8x2048xf32>
    %157 = arith.maximumf %155, %156 : vector<8x2048xf32>
    %158 = arith.truncf %157 : vector<8x2048xf32> to vector<8x2048xbf16>
    %c0_67 = arith.constant 0 : index
    %c0_68 = arith.constant 0 : index
    %159 = vector.load %arg10[%c0_67, %c0_68] : memref<8x2048xbf16, #tpu.memory_space<vmem>>, vector<8x2048xbf16>
    %cst_69 = arith.constant dense<0.000000e+00> : vector<8x8xf32>
    %160 = tpu.matmul %158, %159, %cst_69 {dimension_numbers = #tpu.dot_dimension_numbers<[1], [1], [0], [0], [0, 0, 1, 0], [], []>} : vector<8x2048xbf16>, vector<8x2048xbf16>, vector<8x8xf32> -> vector<8x8xf32>
    %c5 = arith.constant 5 : index
    %c0_70 = arith.constant 0 : index
    %161 = vector.load %arg6[%c5, %c0_70] : memref<13x8xf32, #tpu.memory_space<vmem>>, vector<1x8xf32>
    %162 = vector.broadcast %161 : vector<1x8xf32> to vector<8x8xf32>
    %163 = arith.addf %160, %162 : vector<8x8xf32>
    %164 = arith.addf %149, %163 : vector<8x8xf32>
    %c6 = arith.constant 6 : index
    %c0_71 = arith.constant 0 : index
    %165 = vector.load %arg6[%c6, %c0_71] : memref<13x8xf32, #tpu.memory_space<vmem>>, vector<1x8xf32>
    %c7 = arith.constant 7 : index
    %c0_72 = arith.constant 0 : index
    %166 = vector.load %arg6[%c7, %c0_72] : memref<13x8xf32, #tpu.memory_space<vmem>>, vector<1x8xf32>
    %cst_73 = arith.constant dense<0.000000e+00> : vector<8xf32>
    %167 = vector.multi_reduction <add>, %164, %cst_73 [1] : vector<8x8xf32> to vector<8xf32>
    %168 = vector.shape_cast %167 : vector<8xf32> to vector<8x1xf32>
    %cst_74 = arith.constant 8.000000e+00 : f32
    %169 = vector.broadcast %cst_74 : f32 to vector<8x1xf32>
    %170 = arith.divf %168, %169 : vector<8x1xf32>
    %171 = vector.broadcast %170 : vector<8x1xf32> to vector<8x8xf32>
    %172 = arith.subf %164, %171 : vector<8x8xf32>
    %173 = arith.mulf %172, %172 : vector<8x8xf32>
    %cst_75 = arith.constant dense<0.000000e+00> : vector<8xf32>
    %174 = vector.multi_reduction <add>, %173, %cst_75 [1] : vector<8x8xf32> to vector<8xf32>
    %175 = vector.shape_cast %174 : vector<8xf32> to vector<8x1xf32>
    %cst_76 = arith.constant 8.000000e+00 : f32
    %176 = vector.broadcast %cst_76 : f32 to vector<8x1xf32>
    %177 = arith.divf %175, %176 : vector<8x1xf32>
    %cst_77 = arith.constant 9.99999974E-6 : f32
    %178 = vector.broadcast %cst_77 : f32 to vector<8x1xf32>
    %179 = arith.addf %177, %178 : vector<8x1xf32>
    %180 = math.rsqrt %179 : vector<8x1xf32>
    %181 = vector.broadcast %180 : vector<8x1xf32> to vector<8x8xf32>
    %182 = arith.mulf %172, %181 : vector<8x8xf32>
    %183 = vector.broadcast %165 : vector<1x8xf32> to vector<8x8xf32>
    %184 = arith.mulf %182, %183 : vector<8x8xf32>
    %185 = vector.broadcast %166 : vector<1x8xf32> to vector<8x8xf32>
    %186 = arith.addf %184, %185 : vector<8x8xf32>
    %187 = arith.addf %27, %186 : vector<8x8xf32>
    %c1_78 = arith.constant 1 : index
    %c0_79 = arith.constant 0 : index
    %c0_80 = arith.constant 0 : index
    %188 = vector.load %arg4[%c1_78, %c0_79, %c0_80] : memref<2x8x8xf32, #tpu.memory_space<vmem>>, vector<1x8x8xf32>
    %189 = vector.shape_cast %188 : vector<1x8x8xf32> to vector<8x8xf32>
    %cst_81 = arith.constant dense<0.000000e+00> : vector<8x8xf32>
    %190 = tpu.matmul %187, %189, %cst_81 {dimension_numbers = #tpu.dot_dimension_numbers<[1], [0], [0], [1], [0, 0, 1, 1], [], []>} : vector<8x8xf32>, vector<8x8xf32>, vector<8x8xf32> -> vector<8x8xf32>
    %c8_82 = arith.constant 8 : index
    %c0_83 = arith.constant 0 : index
    %191 = vector.load %arg6[%c8_82, %c0_83] : memref<13x8xf32, #tpu.memory_space<vmem>>, vector<1x8xf32>
    %192 = vector.broadcast %191 : vector<1x8xf32> to vector<8x8xf32>
    %193 = arith.addf %190, %192 : vector<8x8xf32>
    %c0_84 = arith.constant 0 : index
    %c0_85 = arith.constant 0 : index
    %194 = vector.load %arg11[%c0_84, %c0_85] : memref<8x8xf32, #tpu.memory_space<vmem>>, vector<8x8xf32>
    tpu.vector_store %arg11[%c0_84, %c0_85], %193 {strides = array<i32>} : memref<8x8xf32, #tpu.memory_space<vmem>>, vector<8x8xf32>,
    return
  }
  func.func @transform_0(%arg0: i32) -> (i32, i32) {
    %c0_i32 = arith.constant 0 : i32
    %c0_i32_0 = arith.constant 0 : i32
    return %arg0, %c0_i32 : i32, i32
  }
  func.func @transform_1(%arg0: i32) -> (i32, i32) {
    %c0_i32 = arith.constant 0 : i32
    %c0_i32_0 = arith.constant 0 : i32
    %c0_i32_1 = arith.constant 0 : i32
    return %c0_i32, %c0_i32_0 : i32, i32
  }
  func.func @transform_2(%arg0: i32) -> (i32, i32) {
    %c0_i32 = arith.constant 0 : i32
    %c0_i32_0 = arith.constant 0 : i32
    %c0_i32_1 = arith.constant 0 : i32
    return %c0_i32, %c0_i32_0 : i32, i32
  }
  func.func @transform_3(%arg0: i32) -> (i32, i32, i32) {
    %c0_i32 = arith.constant 0 : i32
    %c0_i32_0 = arith.constant 0 : i32
    %c0_i32_1 = arith.constant 0 : i32
    %c0_i32_2 = arith.constant 0 : i32
    return %c0_i32, %c0_i32_0, %c0_i32_1 : i32, i32, i32
  }
  func.func @transform_4(%arg0: i32) -> (i32, i32) {
    %c0_i32 = arith.constant 0 : i32
    %c0_i32_0 = arith.constant 0 : i32
    %c0_i32_1 = arith.constant 0 : i32
    return %c0_i32, %c0_i32_0 : i32, i32
  }
  func.func @transform_5(%arg0: i32) -> (i32, i32) {
    %c0_i32 = arith.constant 0 : i32
    %c0_i32_0 = arith.constant 0 : i32
    %c0_i32_1 = arith.constant 0 : i32
    return %c0_i32, %c0_i32_0 : i32, i32
  }
  func.func @transform_6(%arg0: i32) -> (i32, i32) {
    %c0_i32 = arith.constant 0 : i32
    %c0_i32_0 = arith.constant 0 : i32
    %c0_i32_1 = arith.constant 0 : i32
    return %c0_i32, %c0_i32_0 : i32, i32
  }
  func.func @transform_7(%arg0: i32) -> (i32, i32) {
    %c0_i32 = arith.constant 0 : i32
    %c0_i32_0 = arith.constant 0 : i32
    %c0_i32_1 = arith.constant 0 : i32
    return %c0_i32, %c0_i32_0 : i32, i32
  }
  func.func @transform_8(%arg0: i32) -> (i32, i32) {
    %c0_i32 = arith.constant 0 : i32
    %c0_i32_0 = arith.constant 0 : i32
    %c0_i32_1 = arith.constant 0 : i32
    return %c0_i32, %c0_i32_0 : i32, i32
  }
  func.func @transform_9(%arg0: i32) -> (i32, i32) {
    %c0_i32 = arith.constant 0 : i32
    %c0_i32_0 = arith.constant 0 : i32
    %c0_i32_1 = arith.constant 0 : i32
    return %c0_i32, %c0_i32_0 : i32, i32
  }
  func.func @transform_10(%arg0: i32) -> (i32, i32) {
    %c0_i32 = arith.constant 0 : i32
    %c0_i32_0 = arith.constant 0 : i32
    return %arg0, %c0_i32 : i32, i32
  }
}

</mosaic_0001>

<llo_original>
// kernel: _lambda_.1
$region0: #{_lambda_.1}
  #allocation0 [shape = 'u32[]', space=smem, size = 0x4, offset = 0x4, fixed_abs, tag = 'smem constant byte address 0x4 - core index']
  #allocation1 [shape = 'u32[144,128]{1,0:T(1,128)}', space=vmem, size = 0x12000, scoped, tag = 'internal scratch']
  %s0 = inlined_call_operand.vmem [shape: f32[16,4], index: 0, kind: input, shape index: {}]
  %s1 = inlined_call_operand.hbm [shape: f32[4,8], index: 1, kind: input, shape index: {}]
  %s2 = inlined_call_operand.hbm [shape: f32[9,24], index: 2, kind: input, shape index: {}]
  %s3 = inlined_call_operand.hbm [shape: f32[2,8,8], index: 3, kind: input, shape index: {}]
  %s4 = inlined_call_operand.vmem [shape: f32[8,8], index: 4, kind: input, shape index: {}]
  %s5 = inlined_call_operand.hbm [shape: f32[13,8], index: 5, kind: input, shape index: {}]
  %s6 = inlined_call_operand.vmem [shape: f32[8,8], index: 6, kind: input, shape index: {}]
  %s7 = inlined_call_operand.hbm [shape: bf16[8,2048], index: 7, kind: input, shape index: {}]
  %s8 = inlined_call_operand.hbm [shape: f32[1,2048], index: 8, kind: input, shape index: {}]
  %s9 = inlined_call_operand.hbm [shape: bf16[8,2048], index: 9, kind: input, shape index: {}]
  %s10 = inlined_call_operand.vmem [shape: f32[16,8], index: 10, kind: output, shape index: {}]
  %s11 = sld [smem:[#allocation0]]
  $region101: #{_lambda_.1} parent=0
    _
  %s13 = ssub.s32 1, %s11
  %s14 = scalar_select 0, %s13, %s11
  $region1: #{_lambda_.1} parent=0
    #allocation2 [shape = 'u8[2048]{0}', space=vmem, size = 0x800, scoped, tag = 'input window, operand 1, single buffered']
    #allocation3 [shape = 's32[2]{0}', space=sflag, size = 0x8, scoped, tag = 'scoped memory for _lambda_.1']
    #allocation4 [shape = 'u8[8192]{0}', space=vmem, size = 0x2000, scoped, tag = 'input window, operand 2, single buffered']
    #allocation5 [shape = 's32[1]{0}', space=sflag, size = 0x4, scoped, tag = 'scoped memory for _lambda_.1']
    #allocation6 [shape = 'u8[8192]{0}', space=vmem, size = 0x2000, scoped, tag = 'input window, operand 3, single buffered']
    #allocation7 [shape = 'u8[8192]{0}', space=vmem, size = 0x2000, scoped, tag = 'input window, operand 5, single buffered']
    #allocation8 [shape = 's32[1]{0}', space=sflag, size = 0x4, scoped, tag = 'scoped memory for _lambda_.1']
    #allocation9 [shape = 'u8[32768]{0}', space=vmem, size = 0x8000, scoped, tag = 'input window, operand 7, single buffered']
    #allocation10 [shape = 'u8[8192]{0}', space=vmem, size = 0x2000, scoped, tag = 'input window, operand 8, single buffered']
    #allocation11 [shape = 's32[1]{0}', space=sflag, size = 0x4, scoped, tag = 'scoped memory for _lambda_.1']
    #allocation12 [shape = 'u8[32768]{0}', space=vmem, size = 0x8000, scoped, tag = 'input window, operand 9, single buffered']
    %15 = vsyncpa [#allocation3], 0
    %16 = vsyncpa [#allocation5], 0
    %17 = vsyncpa [#allocation8], 0
    %18 = vsyncpa [#allocation11], 0
    loop: start=0, step=1, limit=4
    $region2: #{_lambda_.1} parent=1 // loop_pre_header
      _
    $region3: #{_lambda_.1} parent=1 // loop_header
      %s20 = sphi 0, %s24
      %p21 = scmp.ge.s32.totalorder %s20, 4
      %s30 = sphi 0, %s32
      %s33 = sphi 0, %s30
      %s34 = sphi 0, %s33
      %s50 = sphi 0, %s34
      %s54 = sphi 0, %s54
      %s56 = sphi 0, %s54
      %s57 = sphi 0, %s56
      %s71 = sphi 0, %s57
      %s75 = sphi 0, %s75
      %s77 = sphi 0, %s75
      %s78 = sphi 0, %s77
      %s92 = sphi 0, %s78
      %s96 = sphi 0, %s96
      %s98 = sphi 0, %s96
      %s99 = sphi 0, %s98
      %s113 = sphi 0, %s99
      %s117 = sphi 0, %s117
      %s119 = sphi 0, %s117
      %s120 = sphi 0, %s119
      %s134 = sphi 0, %s120
      %s138 = sphi 0, %s138
      %s140 = sphi 0, %s138
      %s141 = sphi 0, %s140
      %s155 = sphi 0, %s141
      %s159 = sphi 0, %s159
      %s161 = sphi 0, %s159
      %s162 = sphi 0, %s161
      %s176 = sphi 0, %s162
      %s180 = sphi 0, %s180
      %s182 = sphi 0, %s180
      %s183 = sphi 0, %s182
      %s197 = sphi 0, %s183
      %s201 = sphi 0, %s201
      %s203 = sphi 0, %s201
      %s204 = sphi 0, %s203
      %s218 = sphi 0, %s204
      %s222 = sphi 0, %s222
      %s224 = sphi 0, %s222
      %s225 = sphi 0, %s224
      %s239 = sphi 0, %s225
      %s245 = sphi 0, %s247
      %s248 = sphi 0, %s245
      %s249 = sphi 0, %s248
      %s265 = sphi 0, %s249
    $region4: #{_lambda_.1} parent=1 // loop_header_branch
      %23 = sbr.rel (%p21) target = $region8
    $region5: #{_lambda_.1} parent=1 // loop_body
      %s25 = ssub.s32 %s20, 1
      %s26 = ssub.s32 %s20, 2
      %s27 = sadd.s32 %s20, 1
      %s28 = ssub.s32 %s20, %s27
      %p29 = scmp.eq.s32.totalorder %s28, 0
      %s31 = sadd.s32 %s30, 1
      %s32 = scalar_select %p29, %s30, %s31
      %p35 = pneg %p29
      %p36 = scmp.eq.s32.totalorder %s20, 1
      %p37 = por %p35, %p36
      %p38 = scmp.ne.s32.totalorder %s30, %s33
      %p39 = scmp.eq.s32.totalorder %s20, 0
      %p40 = por %p38, %p39
      %p41 = scmp.ne.s32.totalorder %s30, %s33
      %p42 = scmp.eq.s32.totalorder %s25, 1
      %p43 = por %p41, %p42
      %p44 = scmp.ne.s32.totalorder %s33, %s34
      %p45 = scmp.eq.s32.totalorder %s25, 0
      %p46 = por %p44, %p45
      %p47 = scmp.ne.s32.totalorder %s33, %s34
      %p48 = scmp.eq.s32.totalorder %s26, 1
      %p49 = por %p47, %p48
      %p51 = scmp.ne.s32.totalorder %s34, %s50
      %p52 = scmp.eq.s32.totalorder %s26, 0
      %p53 = por %p51, %p52
      %s55 = sadd.s32 %s54, 1
      %p58 = scmp.eq.s32.totalorder %s20, 1
      %p59 = scmp.ne.s32.totalorder %s54, %s56
      %p60 = scmp.eq.s32.totalorder %s20, 0
      %p61 = por %p59, %p60
      %p62 = scmp.ne.s32.totalorder %s54, %s56
      %p63 = scmp.eq.s32.totalorder %s25, 1
      %p64 = por %p62, %p63
      %p65 = scmp.ne.s32.totalorder %s56, %s57
      %p66 = scmp.eq.s32.totalorder %s25, 0
      %p67 = por %p65, %p66
      %p68 = scmp.ne.s32.totalorder %s56, %s57
      %p69 = scmp.eq.s32.totalorder %s26, 1
      %p70 = por %p68, %p69
      %p72 = scmp.ne.s32.totalorder %s57, %s71
      %p73 = scmp.eq.s32.totalorder %s26, 0
      %p74 = por %p72, %p73
      %s76 = sadd.s32 %s75, 1
      %p79 = scmp.eq.s32.totalorder %s20, 1
      %p80 = scmp.ne.s32.totalorder %s75, %s77
      %p81 = scmp.eq.s32.totalorder %s20, 0
      %p82 = por %p80, %p81
      %p83 = scmp.ne.s32.totalorder %s75, %s77
      %p84 = scmp.eq.s32.totalorder %s25, 1
      %p85 = por %p83, %p84
      %p86 = scmp.ne.s32.totalorder %s77, %s78
      %p87 = scmp.eq.s32.totalorder %s25, 0
      %p88 = por %p86, %p87
      %p89 = scmp.ne.s32.totalorder %s77, %s78
      %p90 = scmp.eq.s32.totalorder %s26, 1
      %p91 = por %p89, %p90
      %p93 = scmp.ne.s32.totalorder %s78, %s92
      %p94 = scmp.eq.s32.totalorder %s26, 0
      %p95 = por %p93, %p94
      %s97 = sadd.s32 %s96, 1
      %p100 = scmp.eq.s32.totalorder %s20, 1
      %p101 = scmp.ne.s32.totalorder %s96, %s98
      %p102 = scmp.eq.s32.totalorder %s20, 0
      %p103 = por %p101, %p102
      %p104 = scmp.ne.s32.totalorder %s96, %s98
      %p105 = scmp.eq.s32.totalorder %s25, 1
      %p106 = por %p104, %p105
      %p107 = scmp.ne.s32.totalorder %s98, %s99
      %p108 = scmp.eq.s32.totalorder %s25, 0
      %p109 = por %p107, %p108
      %p110 = scmp.ne.s32.totalorder %s98, %s99
      %p111 = scmp.eq.s32.totalorder %s26, 1
      %p112 = por %p110, %p111
      %p114 = scmp.ne.s32.totalorder %s99, %s113
      %p115 = scmp.eq.s32.totalorder %s26, 0
      %p116 = por %p114, %p115
      %s118 = sadd.s32 %s117, 1
      %p121 = scmp.eq.s32.totalorder %s20, 1
      %p122 = scmp.ne.s32.totalorder %s117, %s119
      %p123 = scmp.eq.s32.totalorder %s20, 0
      %p124 = por %p122, %p123
      %p125 = scmp.ne.s32.totalorder %s117, %s119
      %p126 = scmp.eq.s32.totalorder %s25, 1
      %p127 = por %p125, %p126
      %p128 = scmp.ne.s32.totalorder %s119, %s120
      %p129 = scmp.eq.s32.totalorder %s25, 0
      %p130 = por %p128, %p129
      %p131 = scmp.ne.s32.totalorder %s119, %s120
      %p132 = scmp.eq.s32.totalorder %s26, 1
      %p133 = por %p131, %p132
      %p135 = scmp.ne.s32.totalorder %s120, %s134
      %p136 = scmp.eq.s32.totalorder %s26, 0
      %p137 = por %p135, %p136
      %s139 = sadd.s32 %s138, 1
      %p142 = scmp.eq.s32.totalorder %s20, 1
      %p143 = scmp.ne.s32.totalorder %s138, %s140
      %p144 = scmp.eq.s32.totalorder %s20, 0
      %p145 = por %p143, %p144
      %p146 = scmp.ne.s32.totalorder %s138, %s140
      %p147 = scmp.eq.s32.totalorder %s25, 1
      %p148 = por %p146, %p147
      %p149 = scmp.ne.s32.totalorder %s140, %s141
      %p150 = scmp.eq.s32.totalorder %s25, 0
      %p151 = por %p149, %p150
      %p152 = scmp.ne.s32.totalorder %s140, %s141
      %p153 = scmp.eq.s32.totalorder %s26, 1
      %p154 = por %p152, %p153
      %p156 = scmp.ne.s32.totalorder %s141, %s155
      %p157 = scmp.eq.s32.totalorder %s26, 0
      %p158 = por %p156, %p157
      %s160 = sadd.s32 %s159, 1
      %p163 = scmp.eq.s32.totalorder %s20, 1
      %p164 = scmp.ne.s32.totalorder %s159, %s161
      %p165 = scmp.eq.s32.totalorder %s20, 0
      %p166 = por %p164, %p165
      %p167 = scmp.ne.s32.totalorder %s159, %s161
      %p168 = scmp.eq.s32.totalorder %s25, 1
      %p169 = por %p167, %p168
      %p170 = scmp.ne.s32.totalorder %s161, %s162
      %p171 = scmp.eq.s32.totalorder %s25, 0
      %p172 = por %p170, %p171
      %p173 = scmp.ne.s32.totalorder %s161, %s162
      %p174 = scmp.eq.s32.totalorder %s26, 1
      %p175 = por %p173, %p174
      %p177 = scmp.ne.s32.totalorder %s162, %s176
      %p178 = scmp.eq.s32.totalorder %s26, 0
      %p179 = por %p177, %p178
      %s181 = sadd.s32 %s180, 1
      %p184 = scmp.eq.s32.totalorder %s20, 1
      %p185 = scmp.ne.s32.totalorder %s180, %s182
      %p186 = scmp.eq.s32.totalorder %s20, 0
      %p187 = por %p185, %p186
      %p188 = scmp.ne.s32.totalorder %s180, %s182
      %p189 = scmp.eq.s32.totalorder %s25, 1
      %p190 = por %p188, %p189
      %p191 = scmp.ne.s32.totalorder %s182, %s183
      %p192 = scmp.eq.s32.totalorder %s25, 0
      %p193 = por %p191, %p192
      %p194 = scmp.ne.s32.totalorder %s182, %s183
      %p195 = scmp.eq.s32.totalorder %s26, 1
      %p196 = por %p194, %p195
      %p198 = scmp.ne.s32.totalorder %s183, %s197
      %p199 = scmp.eq.s32.totalorder %s26, 0
      %p200 = por %p198, %p199
      %s202 = sadd.s32 %s201, 1
      %p205 = scmp.eq.s32.totalorder %s20, 1
      %p206 = scmp.ne.s32.totalorder %s201, %s203
      %p207 = scmp.eq.s32.totalorder %s20, 0
      %p208 = por %p206, %p207
      %p209 = scmp.ne.s32.totalorder %s201, %s203
      %p210 = scmp.eq.s32.totalorder %s25, 1
      %p211 = por %p209, %p210
      %p212 = scmp.ne.s32.totalorder %s203, %s204
      %p213 = scmp.eq.s32.totalorder %s25, 0
      %p214 = por %p212, %p213
      %p215 = scmp.ne.s32.totalorder %s203, %s204
      %p216 = scmp.eq.s32.totalorder %s26, 1
      %p217 = por %p215, %p216
      %p219 = scmp.ne.s32.totalorder %s204, %s218
      %p220 = scmp.eq.s32.totalorder %s26, 0
      %p221 = por %p219, %p220
      %s223 = sadd.s32 %s222, 1
      %p226 = scmp.eq.s32.totalorder %s20, 1
      %p227 = scmp.ne.s32.totalorder %s222, %s224
      %p228 = scmp.eq.s32.totalorder %s20, 0
      %p229 = por %p227, %p228
      %p230 = scmp.ne.s32.totalorder %s222, %s224
      %p231 = scmp.eq.s32.totalorder %s25, 1
      %p232 = por %p230, %p231
      %p233 = scmp.ne.s32.totalorder %s224, %s225
      %p234 = scmp.eq.s32.totalorder %s25, 0
      %p235 = por %p233, %p234
      %p236 = scmp.ne.s32.totalorder %s224, %s225
      %p237 = scmp.eq.s32.totalorder %s26, 1
      %p238 = por %p236, %p237
      %p240 = scmp.ne.s32.totalorder %s225, %s239
      %p241 = scmp.eq.s32.totalorder %s26, 0
      %p242 = por %p240, %p241
      %s243 = ssub.s32 %s20, %s27
      %p244 = scmp.eq.s32.totalorder %s243, 0
      %s246 = sadd.s32 %s245, 1
      %s247 = scalar_select %p244, %s245, %s246
      %p250 = pneg %p244
      %p251 = scmp.eq.s32.totalorder %s20, 1
      %p252 = por %p250, %p251
      %p253 = scmp.ne.s32.totalorder %s245, %s248
      %p254 = scmp.eq.s32.totalorder %s20, 0
      %p255 = por %p253, %p254
      %p256 = scmp.ne.s32.totalorder %s245, %s248
      %p257 = scmp.eq.s32.totalorder %s25, 1
      %p258 = por %p256, %p257
      %p259 = scmp.ne.s32.totalorder %s248, %s249
      %p260 = scmp.eq.s32.totalorder %s25, 0
      %p261 = por %p259, %p260
      %p262 = scmp.ne.s32.totalorder %s248, %s249
      %p263 = scmp.eq.s32.totalorder %s26, 1
      %p264 = por %p262, %p263
      %p266 = scmp.ne.s32.totalorder %s249, %s265
      %p267 = scmp.eq.s32.totalorder %s26, 0
      %p268 = por %p266, %p267
      %p269 = scmp.le.s32.totalorder 1, %s20
      %p270 = scmp.lt.s32.totalorder %s20, 3
      %p271 = pnand %p269, %p270
      %p272 = pneg %p271
      // Predicated region
      $region9: #{_lambda_.1} parent=5 // pred_check
        _
      $region10: #{_lambda_.1} parent=5 // pred_check_branch
        %274 = sbr.rel (%p271) target = $region12
      $region11: #{_lambda_.1} parent=5 // pred_region
        %s275 = ssub.s32 %s20, 1
        // Predicated region
        $region13: #{_lambda_.1} parent=11 // pred_check
          %p276 = pneg %p67
        $region14: #{_lambda_.1} parent=11 // pred_check_branch
          %278 = sbr.rel (%p276) target = $region16
        $region15: #{_lambda_.1} parent=11 // pred_region
          %s280 = ssub.s32 64, 64
          %281 = vsyncadd [#allocation3], %s280
          %s283 = sshll.u32 [#allocation2], 4
          %s284 = int_to_ptr.vmem [resolvable:$true] %s283
          %286 = dma.hbm_to_vmem [thread:$0]  %s1, 64, %s284, [#allocation3]
        $region16: #{_lambda_.1} parent=11 // pred_fallthru
          _
        // Predicated region
        $region17: #{_lambda_.1} parent=11 // pred_check
          %p287 = pneg %p88
        $region18: #{_lambda_.1} parent=11 // pred_check_branch
          %289 = sbr.rel (%p287) target = $region20
        $region19: #{_lambda_.1} parent=11 // pred_region
          %s291 = ssub.s32 256, 256
          %292 = vsyncadd [#allocation5], %s291
          %s293 = sshll.u32 [#allocation4], 4
          %s294 = int_to_ptr.vmem [resolvable:$true] %s293
          %299 = dma.hbm_to_vmem [thread:$0]  %s2, 256, %s294, [#allocation5], 128, 128, 8
        $region20: #{_lambda_.1} parent=11 // pred_fallthru
          _
        // Predicated region
        $region21: #{_lambda_.1} parent=11 // pred_check
          %p300 = pneg %p109
        $region22: #{_lambda_.1} parent=11 // pred_check_branch
          %302 = sbr.rel (%p300) target = $region24
        $region23: #{_lambda_.1} parent=11 // pred_region
          %s304 = ssub.s32 256, 256
          %305 = vsyncadd [#allocation5], %s304
          %s306 = sshll.u32 [#allocation6], 4
          %s307 = int_to_ptr.vmem [resolvable:$true] %s306
          %312 = dma.hbm_to_vmem [thread:$0]  %s3, 256, %s307, [#allocation5], 128, 128, 8
        $region24: #{_lambda_.1} parent=11 // pred_fallthru
          _
        // Predicated region
        $region25: #{_lambda_.1} parent=11 // pred_check
          %p313 = pneg %p130
        $region26: #{_lambda_.1} parent=11 // pred_check_branch
          %315 = sbr.rel (%p313) target = $region28
        $region27: #{_lambda_.1} parent=11 // pred_region
          _
        $region28: #{_lambda_.1} parent=11 // pred_fallthru
          _
        // Predicated region
        $region29: #{_lambda_.1} parent=11 // pred_check
          %p316 = pneg %p151
        $region30: #{_lambda_.1} parent=11 // pred_check_branch
          %318 = sbr.rel (%p316) target = $region32
        $region31: #{_lambda_.1} parent=11 // pred_region
          %s320 = ssub.s32 256, 256
          %321 = vsyncadd [#allocation8], %s320
          %s322 = sshll.u32 [#allocation7], 4
          %s323 = int_to_ptr.vmem [resolvable:$true] %s322
          %328 = dma.hbm_to_vmem [thread:$0]  %s5, 256, %s323, [#allocation8], 128, 128, 8
        $region32: #{_lambda_.1} parent=11 // pred_fallthru
          _
        // Predicated region
        $region33: #{_lambda_.1} parent=11 // pred_check
          %p329 = pneg %p172
        $region34: #{_lambda_.1} parent=11 // pred_check_branch
          %331 = sbr.rel (%p329) target = $region36
        $region35: #{_lambda_.1} parent=11 // pred_region
          _
        $region36: #{_lambda_.1} parent=11 // pred_fallthru
          _
        // Predicated region
        $region37: #{_lambda_.1} parent=11 // pred_check
          %p332 = pneg %p193
        $region38: #{_lambda_.1} parent=11 // pred_check_branch
          %334 = sbr.rel (%p332) target = $region40
        $region39: #{_lambda_.1} parent=11 // pred_region
          %s336 = ssub.s32 1024, 1024
          %337 = vsyncadd [#allocation8], %s336
          %s339 = sshll.u32 [#allocation9], 4
          %s340 = int_to_ptr.vmem [resolvable:$true] %s339
          %342 = dma.hbm_to_vmem [thread:$0]  %s7, 1024, %s340, [#allocation8]
        $region40: #{_lambda_.1} parent=11 // pred_fallthru
          _
        // Predicated region
        $region41: #{_lambda_.1} parent=11 // pred_check
          %p343 = pneg %p214
        $region42: #{_lambda_.1} parent=11 // pred_check_branch
          %345 = sbr.rel (%p343) target = $region44
        $region43: #{_lambda_.1} parent=11 // pred_region
          %s347 = ssub.s32 256, 256
          %348 = vsyncadd [#allocation11], %s347
          %s350 = sshll.u32 [#allocation10], 4
          %s351 = int_to_ptr.vmem [resolvable:$true] %s350
          %353 = dma.hbm_to_vmem [thread:$0]  %s8, 256, %s351, [#allocation11]
        $region44: #{_lambda_.1} parent=11 // pred_fallthru
          _
        // Predicated region
        $region45: #{_lambda_.1} parent=11 // pred_check
          %p354 = pneg %p235
        $region46: #{_lambda_.1} parent=11 // pred_check_branch
          %356 = sbr.rel (%p354) target = $region48
        $region47: #{_lambda_.1} parent=11 // pred_region
          %s358 = ssub.s32 1024, 1024
          %359 = vsyncadd [#allocation11], %s358
          %s361 = sshll.u32 [#allocation12], 4
          %s362 = int_to_ptr.vmem [resolvable:$true] %s361
          %364 = dma.hbm_to_vmem [thread:$0]  %s9, 1024, %s362, [#allocation11]
        $region48: #{_lambda_.1} parent=11 // pred_fallthru
          _
      $region12: #{_lambda_.1} parent=5 // pred_fallthru
        _
      %p365 = scmp.lt.s32.totalorder %s20, 2
      // Predicated region
      $region49: #{_lambda_.1} parent=5 // pred_check
        %p366 = pneg %p365
      $region50: #{_lambda_.1} parent=5 // pred_check_branch
        %368 = sbr.rel (%p366) target = $region52
      $region51: #{_lambda_.1} parent=5 // pred_region
        // Predicated region
        $region53: #{_lambda_.1} parent=51 // pred_check
          %p369 = pneg %p40
        $region54: #{_lambda_.1} parent=51 // pred_check_branch
          %371 = sbr.rel (%p369) target = $region56
        $region55: #{_lambda_.1} parent=51 // pred_region
          %p372 = scmp.lt.s32.totalorder %s20, 1
          %s373 = scalar_select %p372, %s20, 1
          %s374 = smul.addr %s373, 8
          %s375 = scalar_lea.vmem %s0, %s374
        $region56: #{_lambda_.1} parent=51 // pred_fallthru
          _
      $region52: #{_lambda_.1} parent=5 // pred_fallthru
        _
      %p376 = scmp.le.s32.totalorder 1, %s20
      %p377 = scmp.lt.s32.totalorder %s20, 3
      %p378 = pnand %p376, %p377
      %p379 = pneg %p378
      // Predicated region
      $region57: #{_lambda_.1} parent=5 // pred_check
        _
      $region58: #{_lambda_.1} parent=5 // pred_check_branch
        %381 = sbr.rel (%p378) target = $region60
      $region59: #{_lambda_.1} parent=5 // pred_region
        %s382 = ssub.s32 %s20, 1
        // Predicated region
        $region61: #{_lambda_.1} parent=59 // pred_check
          %p383 = pneg %p67
        $region62: #{_lambda_.1} parent=59 // pred_check_branch
          %385 = sbr.rel (%p383) target = $region64
        $region63: #{_lambda_.1} parent=59 // pred_region
          %386 = dma.done [#allocation3], 64
        $region64: #{_lambda_.1} parent=59 // pred_fallthru
          _
        // Predicated region
        $region65: #{_lambda_.1} parent=59 // pred_check
          %p387 = pneg %p88
        $region66: #{_lambda_.1} parent=59 // pred_check_branch
          %389 = sbr.rel (%p387) target = $region68
        $region67: #{_lambda_.1} parent=59 // pred_region
          %390 = dma.done [#allocation5], 256
        $region68: #{_lambda_.1} parent=59 // pred_fallthru
          _
        // Predicated region
        $region69: #{_lambda_.1} parent=59 // pred_check
          %p391 = pneg %p109
        $region70: #{_lambda_.1} parent=59 // pred_check_branch
          %393 = sbr.rel (%p391) target = $region72
        $region71: #{_lambda_.1} parent=59 // pred_region
          %394 = dma.done [#allocation5], 256
        $region72: #{_lambda_.1} parent=59 // pred_fallthru
          _
        // Predicated region
        $region73: #{_lambda_.1} parent=59 // pred_check
          %p395 = pneg %p151
        $region74: #{_lambda_.1} parent=59 // pred_check_branch
          %397 = sbr.rel (%p395) target = $region76
        $region75: #{_lambda_.1} parent=59 // pred_region
          %398 = dma.done [#allocation8], 256
        $region76: #{_lambda_.1} parent=59 // pred_fallthru
          _
        // Predicated region
        $region77: #{_lambda_.1} parent=59 // pred_check
          %p399 = pneg %p193
        $region78: #{_lambda_.1} parent=59 // pred_check_branch
          %401 = sbr.rel (%p399) target = $region80
        $region79: #{_lambda_.1} parent=59 // pred_region
          %402 = dma.done [#allocation8], 1024
        $region80: #{_lambda_.1} parent=59 // pred_fallthru
          _
        // Predicated region
        $region81: #{_lambda_.1} parent=59 // pred_check
          %p403 = pneg %p214
        $region82: #{_lambda_.1} parent=59 // pred_check_branch
          %405 = sbr.rel (%p403) target = $region84
        $region83: #{_lambda_.1} parent=59 // pred_region
          %406 = dma.done [#allocation11], 256
        $region84: #{_lambda_.1} parent=59 // pred_fallthru
          _
        // Predicated region
        $region85: #{_lambda_.1} parent=59 // pred_check
          %p407 = pneg %p235
        $region86: #{_lambda_.1} parent=59 // pred_check_branch
          %409 = sbr.rel (%p407) target = $region88
        $region87: #{_lambda_.1} parent=59 // pred_region
          %410 = dma.done [#allocation11], 1024
        $region88: #{_lambda_.1} parent=59 // pred_fallthru
          _
        %p411 = scmp.lt.s32.totalorder %s25, 1
        %s412 = scalar_select %p411, %s25, 1
        %s413 = smul.addr %s412, 8
        %s414 = scalar_lea.vmem %s0, %s413
        %p415 = pneg %p46
        %p416 = pneg %p43
        %p417 = pneg %p67
        %p418 = pneg %p64
        %p419 = pneg %p88
        %p420 = pneg %p85
        %p421 = pneg %p109
        %p422 = pneg %p106
        %p423 = pneg %p130
        %p424 = pneg %p127
        %p425 = pneg %p151
        %p426 = pneg %p148
        %p427 = pneg %p172
        %p428 = pneg %p169
        %p429 = pneg %p193
        %p430 = pneg %p190
        %p431 = pneg %p214
        %p432 = pneg %p211
        %p433 = pneg %p235
        %p434 = pneg %p232
        %p435 = pneg %p261
        %p436 = pneg %p258
        %p437 = scmp.lt.s32.totalorder %s25, 1
        %s438 = scalar_select %p437, %s25, 1
        %s439 = smul.addr %s438, 8
        %s440 = scalar_lea.vmem %s10, %s439
        %p441 = scmp.lt.s32.totalorder %s25, 1
        %s442 = scalar_select %p441, %s25, 1
        %s443 = smul.addr %s442, 8
        %s444 = scalar_lea.vmem %s0, %s443
        %p445 = scmp.lt.s32.totalorder %s25, 1
        %s446 = scalar_select %p445, %s25, 1
        %s447 = smul.addr %s446, 8
        %s448 = scalar_lea.vmem %s10, %s447
        %v450 = vld [vmem:[%s444] sm:$0xff]
        %v451 = vld [vmem:[%s6] sm:$0xff]
        %v452 = vsub.f32 %v451, 1.0
        %v453 = vmul.f32 %v452, 1e+09
        %v454 = vld [vmem:[#allocation2] sm:$0xf]
        %vm455 = vcmask 31744
        %v457 = vsel %vm455, %v450, 0
        %vm459 = vcmask 1043456
        %v461 = vsel %vm459, %v454, 0
        %463 = vmatprep.subr.mxu0 0.0
        %464 = vmatpush1.msra.mxu0 %v461
        %465 = vmatprep.subr.mxu0 0.0
        %466 = vmatpush1.msra.mxu0 0.0
        %467 = vmatprep.subr.mxu0 0.0
        %468 = vmatpush1.msra.mxu0 0.0
        %469 = vmatprep.subr.mxu0 0.0
        %470 = vmatpush1.msra.mxu0 0.0
        %471 = vmatprep.subr.mxu0 0.0
        %472 = vmatpush1.msra.mxu0 0.0
        %473 = vmatprep.subr.mxu0 0.0
        %474 = vmatpush1.msra.mxu0 0.0
        %475 = vmatprep.subr.mxu0 0.0
        %476 = vmatpush1.msra.mxu0 0.0
        %477 = vmatprep.subr.mxu0 0.0
        %478 = vmatpush1.msra.mxu0 0.0
        %479 = vmatprep.subr.mxu0 0.0
        %480 = vmatpush1.msra.mxu0 0.0
        %481 = vmatprep.subr.mxu0 0.0
        %482 = vmatpush1.msra.mxu0 0.0
        %483 = vmatprep.subr.mxu0 0.0
        %484 = vmatpush1.msra.mxu0 0.0
        %485 = vmatprep.subr.mxu0 0.0
        %486 = vmatpush1.msra.mxu0 0.0
        %487 = vmatprep.subr.mxu0 0.0
        %488 = vmatpush1.msra.mxu0 0.0
        %489 = vmatprep.subr.mxu0 0.0
        %490 = vmatpush1.msra.mxu0 0.0
        %491 = vmatprep.subr.mxu0 0.0
        %492 = vmatpush1.msra.mxu0 0.0
        %493 = vmatprep.subr.mxu0 0.0
        %494 = vmatpush1.msra.mxu0 0.0
        %495 = vmatprep.subr.mxu0 0.0
        %496 = vmatpush1.msra.mxu0 0.0
        %497 = vmatprep.subr.mxu0 0.0
        %498 = vmatpush1.msra.mxu0 0.0
        %499 = vmatprep.subr.mxu0 0.0
        %500 = vmatpush1.msra.mxu0 0.0
        %501 = vmatprep.subr.mxu0 0.0
        %502 = vmatpush1.msra.mxu0 0.0
        %503 = vmatprep.subr.mxu0 0.0
        %504 = vmatpush1.msra.mxu0 0.0
        %505 = vmatprep.subr.mxu0 0.0
        %506 = vmatpush1.msra.mxu0 0.0
        %507 = vmatprep.subr.mxu0 0.0
        %508 = vmatpush1.msra.mxu0 0.0
        %509 = vmatprep.subr.mxu0 0.0
        %510 = vmatpush1.msra.mxu0 0.0
        %511 = vmatprep.subr.mxu0 0.0
        %512 = vmatpush1.msra.mxu0 0.0
        %513 = vmatprep.subr.mxu0 0.0
        %514 = vmatpush1.msra.mxu0 0.0
        %515 = vmatprep.subr.mxu0 0.0
        %516 = vmatpush1.msra.mxu0 0.0
        %517 = vmatprep.subr.mxu0 0.0
        %518 = vmatpush1.msra.mxu0 0.0
        %519 = vmatprep.subr.mxu0 0.0
        %520 = vmatpush1.msra.mxu0 0.0
        %521 = vmatprep.subr.mxu0 0.0
        %522 = vmatpush1.msra.mxu0 0.0
        %523 = vmatprep.subr.mxu0 0.0
        %524 = vmatpush1.msra.mxu0 0.0
        %525 = vmatprep.subr.mxu0 0.0
        %526 = vmatpush1.msra.mxu0 0.0
        %527 = vmatprep.mubr.f32.mxu0 0.0
        %528 = vmatmul.mubr.f32.gmra.mrb[0].mxu0 %v457
        %v529 = vpop.f32.mrb[0].mxu0
        %v530 = vadd.f32 0.0, %v529
        %v531 = vpop.f32.mrb[0].mxu0
        %532 = vdwg.mxu0
        %vm533 = vcmask 64512
        %v535 = vsel %vm533, %v451, 0
        %537 = vmatprep.subr.mxu0 0.0
        %538 = vmatpush1.msra.mxu0 %v530
        %539 = vmatprep.subr.mxu0 0.0
        %540 = vmatpush1.msra.mxu0 0.0
        %541 = vmatprep.subr.mxu0 0.0
        %542 = vmatpush1.msra.mxu0 0.0
        %543 = vmatprep.subr.mxu0 0.0
        %544 = vmatpush1.msra.mxu0 0.0
        %545 = vmatprep.subr.mxu0 0.0
        %546 = vmatpush1.msra.mxu0 0.0
        %547 = vmatprep.subr.mxu0 0.0
        %548 = vmatpush1.msra.mxu0 0.0
        %549 = vmatprep.subr.mxu0 0.0
        %550 = vmatpush1.msra.mxu0 0.0
        %551 = vmatprep.subr.mxu0 0.0
        %552 = vmatpush1.msra.mxu0 0.0
        %553 = vmatprep.subr.mxu0 0.0
        %554 = vmatpush1.msra.mxu0 0.0
        %555 = vmatprep.subr.mxu0 0.0
        %556 = vmatpush1.msra.mxu0 0.0
        %557 = vmatprep.subr.mxu0 0.0
        %558 = vmatpush1.msra.mxu0 0.0
        %559 = vmatprep.subr.mxu0 0.0
        %560 = vmatpush1.msra.mxu0 0.0
        %561 = vmatprep.subr.mxu0 0.0
        %562 = vmatpush1.msra.mxu0 0.0
        %563 = vmatprep.subr.mxu0 0.0
        %564 = vmatpush1.msra.mxu0 0.0
        %565 = vmatprep.subr.mxu0 0.0
        %566 = vmatpush1.msra.mxu0 0.0
        %567 = vmatprep.subr.mxu0 0.0
        %568 = vmatpush1.msra.mxu0 0.0
        %569 = vmatprep.subr.mxu0 0.0
        %570 = vmatpush1.msra.mxu0 0.0
        %571 = vmatprep.subr.mxu0 0.0
        %572 = vmatpush1.msra.mxu0 0.0
        %573 = vmatprep.subr.mxu0 0.0
        %574 = vmatpush1.msra.mxu0 0.0
        %575 = vmatprep.subr.mxu0 0.0
        %576 = vmatpush1.msra.mxu0 0.0
        %577 = vmatprep.subr.mxu0 0.0
        %578 = vmatpush1.msra.mxu0 0.0
        %579 = vmatprep.subr.mxu0 0.0
        %580 = vmatpush1.msra.mxu0 0.0
        %581 = vmatprep.subr.mxu0 0.0
        %582 = vmatpush1.msra.mxu0 0.0
        %583 = vmatprep.subr.mxu0 0.0
        %584 = vmatpush1.msra.mxu0 0.0
        %585 = vmatprep.subr.mxu0 0.0
        %586 = vmatpush1.msra.mxu0 0.0
        %587 = vmatprep.subr.mxu0 0.0
        %588 = vmatpush1.msra.mxu0 0.0
        %589 = vmatprep.subr.mxu0 0.0
        %590 = vmatpush1.msra.mxu0 0.0
        %591 = vmatprep.subr.mxu0 0.0
        %592 = vmatpush1.msra.mxu0 0.0
        %593 = vmatprep.subr.mxu0 0.0
        %594 = vmatpush1.msra.mxu0 0.0
        %595 = vmatprep.subr.mxu0 0.0
        %596 = vmatpush1.msra.mxu0 0.0
        %597 = vmatprep.subr.mxu0 0.0
        %598 = vmatpush1.msra.mxu0 0.0
        %599 = vmatprep.subr.mxu0 0.0
        %600 = vmatpush1.msra.mxu0 0.0
        %601 = vmatprep.mubr.f32.mxu0 0.0
        %602 = vmatmul.mubr.f32.gmra.mrb[0].mxu0 %v535
        %v603 = vpop.f32.mrb[0].mxu0
        %v604 = vadd.f32 0.0, %v603
        %v605 = vpop.f32.mrb[0].mxu0
        %606 = vdwg.mxu0
        %v607 = vld [vmem:[%s4] sm:$0xff]
        %v609 = vsel %vm533, %v604, 0
        %611 = vmatprep.subr.mxu0 0.0
        %612 = vmatpush1.msra.mxu0 %v607
        %613 = vmatprep.subr.mxu0 0.0
        %614 = vmatpush1.msra.mxu0 0.0
        %615 = vmatprep.subr.mxu0 0.0
        %616 = vmatpush1.msra.mxu0 0.0
        %617 = vmatprep.subr.mxu0 0.0
        %618 = vmatpush1.msra.mxu0 0.0
        %619 = vmatprep.subr.mxu0 0.0
        %620 = vmatpush1.msra.mxu0 0.0
        %621 = vmatprep.subr.mxu0 0.0
        %622 = vmatpush1.msra.mxu0 0.0
        %623 = vmatprep.subr.mxu0 0.0
        %624 = vmatpush1.msra.mxu0 0.0
        %625 = vmatprep.subr.mxu0 0.0
        %626 = vmatpush1.msra.mxu0 0.0
        %627 = vmatprep.subr.mxu0 0.0
        %628 = vmatpush1.msra.mxu0 0.0
        %629 = vmatprep.subr.mxu0 0.0
        %630 = vmatpush1.msra.mxu0 0.0
        %631 = vmatprep.subr.mxu0 0.0
        %632 = vmatpush1.msra.mxu0 0.0
        %633 = vmatprep.subr.mxu0 0.0
        %634 = vmatpush1.msra.mxu0 0.0
        %635 = vmatprep.subr.mxu0 0.0
        %636 = vmatpush1.msra.mxu0 0.0
        %637 = vmatprep.subr.mxu0 0.0
        %638 = vmatpush1.msra.mxu0 0.0
        %639 = vmatprep.subr.mxu0 0.0
        %640 = vmatpush1.msra.mxu0 0.0
        %641 = vmatprep.subr.mxu0 0.0
        %642 = vmatpush1.msra.mxu0 0.0
        %643 = vmatprep.subr.mxu0 0.0
        %644 = vmatpush1.msra.mxu0 0.0
        %645 = vmatprep.subr.mxu0 0.0
        %646 = vmatpush1.msra.mxu0 0.0
        %647 = vmatprep.subr.mxu0 0.0
        %648 = vmatpush1.msra.mxu0 0.0
        %649 = vmatprep.subr.mxu0 0.0
        %650 = vmatpush1.msra.mxu0 0.0
        %651 = vmatprep.subr.mxu0 0.0
        %652 = vmatpush1.msra.mxu0 0.0
        %653 = vmatprep.subr.mxu0 0.0
        %654 = vmatpush1.msra.mxu0 0.0
        %655 = vmatprep.subr.mxu0 0.0
        %656 = vmatpush1.msra.mxu0 0.0
        %657 = vmatprep.subr.mxu0 0.0
        %658 = vmatpush1.msra.mxu0 0.0
        %659 = vmatprep.subr.mxu0 0.0
        %660 = vmatpush1.msra.mxu0 0.0
        %661 = vmatprep.subr.mxu0 0.0
        %662 = vmatpush1.msra.mxu0 0.0
        %663 = vmatprep.subr.mxu0 0.0
        %664 = vmatpush1.msra.mxu0 0.0
        %665 = vmatprep.subr.mxu0 0.0
        %666 = vmatpush1.msra.mxu0 0.0
        %667 = vmatprep.subr.mxu0 0.0
        %668 = vmatpush1.msra.mxu0 0.0
        %669 = vmatprep.subr.mxu0 0.0
        %670 = vmatpush1.msra.mxu0 0.0
        %671 = vmatprep.subr.mxu0 0.0
        %672 = vmatpush1.msra.mxu0 0.0
        %673 = vmatprep.subr.mxu0 0.0
        %674 = vmatpush1.msra.mxu0 0.0
        %675 = vmatprep.mubr.f32.mxu0 0.0
        %676 = vmatmul.mubr.f32.gmra.mrb[0].mxu0 %v609
        %v677 = vpop.f32.mrb[0].mxu0
        %v678 = vadd.f32 0.0, %v677
        %v679 = vpop.f32.mrb[0].mxu0
        %680 = vdwg.mxu0
        %v681 = vsub.f32 %v530, %v678
        %v682 = vmul.f32 %v681, %v681
        %683 = vmatprep.subr.mxu0 0.0
        %684 = vmatpush1.msra.mxu0 %v682
        %685 = vmatprep.subr.mxu0 0.0
        %686 = vmatpush1.msra.mxu0 0.0
        %687 = vmatprep.subr.mxu0 0.0
        %688 = vmatpush1.msra.mxu0 0.0
        %689 = vmatprep.subr.mxu0 0.0
        %690 = vmatpush1.msra.mxu0 0.0
        %691 = vmatprep.subr.mxu0 0.0
        %692 = vmatpush1.msra.mxu0 0.0
        %693 = vmatprep.subr.mxu0 0.0
        %694 = vmatpush1.msra.mxu0 0.0
        %695 = vmatprep.subr.mxu0 0.0
        %696 = vmatpush1.msra.mxu0 0.0
        %697 = vmatprep.subr.mxu0 0.0
        %698 = vmatpush1.msra.mxu0 0.0
        %699 = vmatprep.subr.mxu0 0.0
        %700 = vmatpush1.msra.mxu0 0.0
        %701 = vmatprep.subr.mxu0 0.0
        %702 = vmatpush1.msra.mxu0 0.0
        %703 = vmatprep.subr.mxu0 0.0
        %704 = vmatpush1.msra.mxu0 0.0
        %705 = vmatprep.subr.mxu0 0.0
        %706 = vmatpush1.msra.mxu0 0.0
        %707 = vmatprep.subr.mxu0 0.0
        %708 = vmatpush1.msra.mxu0 0.0
        %709 = vmatprep.subr.mxu0 0.0
        %710 = vmatpush1.msra.mxu0 0.0
        %711 = vmatprep.subr.mxu0 0.0
        %712 = vmatpush1.msra.mxu0 0.0
        %713 = vmatprep.subr.mxu0 0.0
        %714 = vmatpush1.msra.mxu0 0.0
        %715 = vmatprep.subr.mxu0 0.0
        %716 = vmatpush1.msra.mxu0 0.0
        %717 = vmatprep.subr.mxu0 0.0
        %718 = vmatpush1.msra.mxu0 0.0
        %719 = vmatprep.subr.mxu0 0.0
        %720 = vmatpush1.msra.mxu0 0.0
        %721 = vmatprep.subr.mxu0 0.0
        %722 = vmatpush1.msra.mxu0 0.0
        %723 = vmatprep.subr.mxu0 0.0
        %724 = vmatpush1.msra.mxu0 0.0
        %725 = vmatprep.subr.mxu0 0.0
        %726 = vmatpush1.msra.mxu0 0.0
        %727 = vmatprep.subr.mxu0 0.0
        %728 = vmatpush1.msra.mxu0 0.0
        %729 = vmatprep.subr.mxu0 0.0
        %730 = vmatpush1.msra.mxu0 0.0
        %731 = vmatprep.subr.mxu0 0.0
        %732 = vmatpush1.msra.mxu0 0.0
        %733 = vmatprep.subr.mxu0 0.0
        %734 = vmatpush1.msra.mxu0 0.0
        %735 = vmatprep.subr.mxu0 0.0
        %736 = vmatpush1.msra.mxu0 0.0
        %737 = vmatprep.subr.mxu0 0.0
        %738 = vmatpush1.msra.mxu0 0.0
        %739 = vmatprep.subr.mxu0 0.0
        %740 = vmatpush1.msra.mxu0 0.0
        %741 = vmatprep.subr.mxu0 0.0
        %742 = vmatpush1.msra.mxu0 0.0
        %743 = vmatprep.subr.mxu0 0.0
        %744 = vmatpush1.msra.mxu0 0.0
        %745 = vmatprep.subr.mxu0 0.0
        %746 = vmatpush1.msra.mxu0 0.0
        %747 = vmatprep.mubr.f32.mxu0 0.0
        %748 = vmatmul.mubr.f32.gmra.mrb[0].mxu0 %v535
        %v749 = vpop.f32.mrb[0].mxu0
        %v750 = vadd.f32 0.0, %v749
        %v751 = vpop.f32.mrb[0].mxu0
        %752 = vdwg.mxu0
        %v754 = vsel %vm533, %v750, 0
        %756 = vmatprep.subr.mxu0 0.0
        %757 = vmatpush1.msra.mxu0 %v607
        %758 = vmatprep.subr.mxu0 0.0
        %759 = vmatpush1.msra.mxu0 0.0
        %760 = vmatprep.subr.mxu0 0.0
        %761 = vmatpush1.msra.mxu0 0.0
        %762 = vmatprep.subr.mxu0 0.0
        %763 = vmatpush1.msra.mxu0 0.0
        %764 = vmatprep.subr.mxu0 0.0
        %765 = vmatpush1.msra.mxu0 0.0
        %766 = vmatprep.subr.mxu0 0.0
        %767 = vmatpush1.msra.mxu0 0.0
        %768 = vmatprep.subr.mxu0 0.0
        %769 = vmatpush1.msra.mxu0 0.0
        %770 = vmatprep.subr.mxu0 0.0
        %771 = vmatpush1.msra.mxu0 0.0
        %772 = vmatprep.subr.mxu0 0.0
        %773 = vmatpush1.msra.mxu0 0.0
        %774 = vmatprep.subr.mxu0 0.0
        %775 = vmatpush1.msra.mxu0 0.0
        %776 = vmatprep.subr.mxu0 0.0
        %777 = vmatpush1.msra.mxu0 0.0
        %778 = vmatprep.subr.mxu0 0.0
        %779 = vmatpush1.msra.mxu0 0.0
        %780 = vmatprep.subr.mxu0 0.0
        %781 = vmatpush1.msra.mxu0 0.0
        %782 = vmatprep.subr.mxu0 0.0
        %783 = vmatpush1.msra.mxu0 0.0
        %784 = vmatprep.subr.mxu0 0.0
        %785 = vmatpush1.msra.mxu0 0.0
        %786 = vmatprep.subr.mxu0 0.0
        %787 = vmatpush1.msra.mxu0 0.0
        %788 = vmatprep.subr.mxu0 0.0
        %789 = vmatpush1.msra.mxu0 0.0
        %790 = vmatprep.subr.mxu0 0.0
        %791 = vmatpush1.msra.mxu0 0.0
        %792 = vmatprep.subr.mxu0 0.0
        %793 = vmatpush1.msra.mxu0 0.0
        %794 = vmatprep.subr.mxu0 0.0
        %795 = vmatpush1.msra.mxu0 0.0
        %796 = vmatprep.subr.mxu0 0.0
        %797 = vmatpush1.msra.mxu0 0.0
        %798 = vmatprep.subr.mxu0 0.0
        %799 = vmatpush1.msra.mxu0 0.0
        %800 = vmatprep.subr.mxu0 0.0
        %801 = vmatpush1.msra.mxu0 0.0
        %802 = vmatprep.subr.mxu0 0.0
        %803 = vmatpush1.msra.mxu0 0.0
        %804 = vmatprep.subr.mxu0 0.0
        %805 = vmatpush1.msra.mxu0 0.0
        %806 = vmatprep.subr.mxu0 0.0
        %807 = vmatpush1.msra.mxu0 0.0
        %808 = vmatprep.subr.mxu0 0.0
        %809 = vmatpush1.msra.mxu0 0.0
        %810 = vmatprep.subr.mxu0 0.0
        %811 = vmatpush1.msra.mxu0 0.0
        %812 = vmatprep.subr.mxu0 0.0
        %813 = vmatpush1.msra.mxu0 0.0
        %814 = vmatprep.subr.mxu0 0.0
        %815 = vmatpush1.msra.mxu0 0.0
        %816 = vmatprep.subr.mxu0 0.0
        %817 = vmatpush1.msra.mxu0 0.0
        %818 = vmatprep.subr.mxu0 0.0
        %819 = vmatpush1.msra.mxu0 0.0
        %820 = vmatprep.mubr.f32.mxu0 0.0
        %821 = vmatmul.mubr.f32.gmra.mrb[0].mxu0 %v754
        %v822 = vpop.f32.mrb[0].mxu0
        %v823 = vadd.f32 1e-05, %v822
        %v824 = vpop.f32.mrb[0].mxu0
        %825 = vdwg.mxu0
        %v826 = vrsqrt.pop %v823
        %v827 = vmul.f32 %v681, %v826
        %v828 = vld [vmem:[#allocation7] sm:$0x1]
        %v829 = vlaneseq
        %v830 = vshrl.u32 %v829, 7
        %v831 = vsub.s32 0, %v830
        %v832 = vrot.slane %v828, %v831
        %v833 = vmul.f32 %v827, %v832
        %v834 = vld [vmem:[#allocation7 + $0x1] sm:$0x1]
        %v835 = vlaneseq
        %v836 = vshrl.u32 %v835, 7
        %v837 = vsub.s32 0, %v836
        %v838 = vrot.slane %v834, %v837
        %v839 = vadd.f32 %v833, %v838
        %v840 = vmax.f32 %v839, 0.0
        %v841 = vld [vmem:[#allocation4] sm:$0xff]
        %v842 = vld [vmem:[#allocation4 + $0x8] sm:$0x1]
        %v843 = vlaneseq
        %v844 = vshrl.u32 %v843, 7
        %v845 = vsub.s32 0, %v844
        %v846 = vrot.slane %v842, %v845
        %v848 = vsel %vm533, %v840, 0
        %850 = vmatprep.subr.mxu0 0.0
        %851 = vmatpush1.msra.mxu0 %v841
        %852 = vmatprep.subr.mxu0 0.0
        %853 = vmatpush1.msra.mxu0 0.0
        %854 = vmatprep.subr.mxu0 0.0
        %855 = vmatpush1.msra.mxu0 0.0
        %856 = vmatprep.subr.mxu0 0.0
        %857 = vmatpush1.msra.mxu0 0.0
        %858 = vmatprep.subr.mxu0 0.0
        %859 = vmatpush1.msra.mxu0 0.0
        %860 = vmatprep.subr.mxu0 0.0
        %861 = vmatpush1.msra.mxu0 0.0
        %862 = vmatprep.subr.mxu0 0.0
        %863 = vmatpush1.msra.mxu0 0.0
        %864 = vmatprep.subr.mxu0 0.0
        %865 = vmatpush1.msra.mxu0 0.0
        %866 = vmatprep.subr.mxu0 0.0
        %867 = vmatpush1.msra.mxu0 0.0
        %868 = vmatprep.subr.mxu0 0.0
        %869 = vmatpush1.msra.mxu0 0.0
        %870 = vmatprep.subr.mxu0 0.0
        %871 = vmatpush1.msra.mxu0 0.0
        %872 = vmatprep.subr.mxu0 0.0
        %873 = vmatpush1.msra.mxu0 0.0
        %874 = vmatprep.subr.mxu0 0.0
        %875 = vmatpush1.msra.mxu0 0.0
        %876 = vmatprep.subr.mxu0 0.0
        %877 = vmatpush1.msra.mxu0 0.0
        %878 = vmatprep.subr.mxu0 0.0
        %879 = vmatpush1.msra.mxu0 0.0
        %880 = vmatprep.subr.mxu0 0.0
        %881 = vmatpush1.msra.mxu0 0.0
        %882 = vmatprep.subr.mxu0 0.0
        %883 = vmatpush1.msra.mxu0 0.0
        %884 = vmatprep.subr.mxu0 0.0
        %885 = vmatpush1.msra.mxu0 0.0
        %886 = vmatprep.subr.mxu0 0.0
        %887 = vmatpush1.msra.mxu0 0.0
        %888 = vmatprep.subr.mxu0 0.0
        %889 = vmatpush1.msra.mxu0 0.0
        %890 = vmatprep.subr.mxu0 0.0
        %891 = vmatpush1.msra.mxu0 0.0
        %892 = vmatprep.subr.mxu0 0.0
        %893 = vmatpush1.msra.mxu0 0.0
        %894 = vmatprep.subr.mxu0 0.0
        %895 = vmatpush1.msra.mxu0 0.0
        %896 = vmatprep.subr.mxu0 0.0
        %897 = vmatpush1.msra.mxu0 0.0
        %898 = vmatprep.subr.mxu0 0.0
        %899 = vmatpush1.msra.mxu0 0.0
        %900 = vmatprep.subr.mxu0 0.0
        %901 = vmatpush1.msra.mxu0 0.0
        %902 = vmatprep.subr.mxu0 0.0
        %903 = vmatpush1.msra.mxu0 0.0
        %904 = vmatprep.subr.mxu0 0.0
        %905 = vmatpush1.msra.mxu0 0.0
        %906 = vmatprep.subr.mxu0 0.0
        %907 = vmatpush1.msra.mxu0 0.0
        %908 = vmatprep.subr.mxu0 0.0
        %909 = vmatpush1.msra.mxu0 0.0
        %910 = vmatprep.subr.mxu0 0.0
        %911 = vmatpush1.msra.mxu0 0.0
        %912 = vmatprep.subr.mxu0 0.0
        %913 = vmatpush1.msra.mxu0 0.0
        %914 = vmatprep.mubr.f32.mxu0 0.0
        %915 = vmatmul.mubr.f32.gmra.mrb[0].mxu0 %v848
        %v916 = vpop.f32.mrb[0].mxu0
        %v917 = vadd.f32 %v846, %v916
        %v918 = vpop.f32.mrb[0].mxu0
        %919 = vdwg.mxu0
        %v920 = vld [vmem:[#allocation7 + $0x9] sm:$0x1]
        %v921 = vlaneseq
        %v922 = vshrl.u32 %v921, 7
        %v923 = vsub.s32 0, %v922
        %v924 = vrot.slane %v920, %v923
        %v925 = vmul.f32 %v917, %v924
        %927 = vrot.lane.b32.xlu0 %v917, 120
        %v928 = vpop.permute.xlu0 %927
        %v930 = vsel %vm533, %v925, 0
        %v932 = vsel %vm533, %v928, 0
        %934 = vmatprep.subr.mxu0 0.0
        %935 = vmatpush1.xpose.msra.mxu0 %v932
        %936 = vmatprep.subr.mxu0 0.0
        %937 = vmatpush1.xpose.msra.mxu0 0.0
        %938 = vmatprep.subr.mxu0 0.0
        %939 = vmatpush1.xpose.msra.mxu0 0.0
        %940 = vmatprep.subr.mxu0 0.0
        %941 = vmatpush1.xpose.msra.mxu0 0.0
        %942 = vmatprep.subr.mxu0 0.0
        %943 = vmatpush1.xpose.msra.mxu0 0.0
        %944 = vmatprep.subr.mxu0 0.0
        %945 = vmatpush1.xpose.msra.mxu0 0.0
        %946 = vmatprep.subr.mxu0 0.0
        %947 = vmatpush1.xpose.msra.mxu0 0.0
        %948 = vmatprep.subr.mxu0 0.0
        %949 = vmatpush1.xpose.msra.mxu0 0.0
        %950 = vmatprep.subr.mxu0 0.0
        %951 = vmatpush1.xpose.msra.mxu0 0.0
        %952 = vmatprep.subr.mxu0 0.0
        %953 = vmatpush1.xpose.msra.mxu0 0.0
        %954 = vmatprep.subr.mxu0 0.0
        %955 = vmatpush1.xpose.msra.mxu0 0.0
        %956 = vmatprep.subr.mxu0 0.0
        %957 = vmatpush1.xpose.msra.mxu0 0.0
        %958 = vmatprep.subr.mxu0 0.0
        %959 = vmatpush1.xpose.msra.mxu0 0.0
        %960 = vmatprep.subr.mxu0 0.0
        %961 = vmatpush1.xpose.msra.mxu0 0.0
        %962 = vmatprep.subr.mxu0 0.0
        %963 = vmatpush1.xpose.msra.mxu0 0.0
        %964 = vmatprep.subr.mxu0 0.0
        %965 = vmatpush1.xpose.msra.mxu0 0.0
        %966 = vmatprep.subr.mxu0 0.0
        %967 = vmatpush1.xpose.msra.mxu0 0.0
        %968 = vmatprep.subr.mxu0 0.0
        %969 = vmatpush1.xpose.msra.mxu0 0.0
        %970 = vmatprep.subr.mxu0 0.0
        %971 = vmatpush1.xpose.msra.mxu0 0.0
        %972 = vmatprep.subr.mxu0 0.0
        %973 = vmatpush1.xpose.msra.mxu0 0.0
        %974 = vmatprep.subr.mxu0 0.0
        %975 = vmatpush1.xpose.msra.mxu0 0.0
        %976 = vmatprep.subr.mxu0 0.0
        %977 = vmatpush1.xpose.msra.mxu0 0.0
        %978 = vmatprep.subr.mxu0 0.0
        %979 = vmatpush1.xpose.msra.mxu0 0.0
        %980 = vmatprep.subr.mxu0 0.0
        %981 = vmatpush1.xpose.msra.mxu0 0.0
        %982 = vmatprep.subr.mxu0 0.0
        %983 = vmatpush1.xpose.msra.mxu0 0.0
        %984 = vmatprep.subr.mxu0 0.0
        %985 = vmatpush1.xpose.msra.mxu0 0.0
        %986 = vmatprep.subr.mxu0 0.0
        %987 = vmatpush1.xpose.msra.mxu0 0.0
        %988 = vmatprep.subr.mxu0 0.0
        %989 = vmatpush1.xpose.msra.mxu0 0.0
        %990 = vmatprep.subr.mxu0 0.0
        %991 = vmatpush1.xpose.msra.mxu0 0.0
        %992 = vmatprep.subr.mxu0 0.0
        %993 = vmatpush1.xpose.msra.mxu0 0.0
        %994 = vmatprep.subr.mxu0 0.0
        %995 = vmatpush1.xpose.msra.mxu0 0.0
        %996 = vmatprep.subr.mxu0 0.0
        %997 = vmatpush1.xpose.msra.mxu0 0.0
        %998 = vmatprep.mubr.f32.mxu0 0.0
        %999 = vmatmul.mubr.f32.gmra.mrb[0].mxu0 %v930
        %v1000 = vpop.f32.mrb[0].mxu0
        %v1001 = vadd.f32 0.0, %v1000
        %v1002 = vpop.f32.mrb[0].mxu0
        %1003 = vdwg.mxu0
        %v1004 = vmul.f32 %v1001, 0.70710677
        %v1005 = vadd.f32 %v1004, %v453
        %v1006 = vsel %vm533, %v1005, -inf
        %1007 = vmax.xlane.f32.xlu0 %v1006
        %v1008 = vpop.xlane.xlu0 %1007
        %v1009 = vsub.f32 %v1005, %v1008
        %v1010 = vmul.f32 %v1009, 1.442695
        %v1011 = vpow.pop %v1010
        %v1012 = vsel %vm533, %v1011, 0.0
        %1013 = vadd.xlane.f32.xlu0 %v1012
        %v1014 = vpop.xlane.xlu0 %1013
        %v1015 = vrcp.pop %v1014
        %v1016 = vmul.f32 %v1011, %v1015
        %1018 = vrot.lane.b32.xlu0 %v924, 16
        %v1019 = vpop.permute.xlu0 %1018
        %v1021 = vmul.f32 %v917, %v1019
        %v1022 = vld [vmem:[#allocation7 + $0xa] sm:$0x1]
        %v1023 = vlaneseq
        %v1024 = vshrl.u32 %v1023, 7
        %v1025 = vsub.s32 0, %v1024
        %v1026 = vrot.slane %v1022, %v1025
        %v1027 = vmul.f32 %v917, %v1026
        %v1029 = vsel %vm533, %v1027, 0
        %1031 = vmatprep.subr.mxu0 0.0
        %1032 = vmatpush1.xpose.msra.mxu0 %v932
        %1033 = vmatprep.subr.mxu0 0.0
        %1034 = vmatpush1.xpose.msra.mxu0 0.0
        %1035 = vmatprep.subr.mxu0 0.0
        %1036 = vmatpush1.xpose.msra.mxu0 0.0
        %1037 = vmatprep.subr.mxu0 0.0
        %1038 = vmatpush1.xpose.msra.mxu0 0.0
        %1039 = vmatprep.subr.mxu0 0.0
        %1040 = vmatpush1.xpose.msra.mxu0 0.0
        %1041 = vmatprep.subr.mxu0 0.0
        %1042 = vmatpush1.xpose.msra.mxu0 0.0
        %1043 = vmatprep.subr.mxu0 0.0
        %1044 = vmatpush1.xpose.msra.mxu0 0.0
        %1045 = vmatprep.subr.mxu0 0.0
        %1046 = vmatpush1.xpose.msra.mxu0 0.0
        %1047 = vmatprep.subr.mxu0 0.0
        %1048 = vmatpush1.xpose.msra.mxu0 0.0
        %1049 = vmatprep.subr.mxu0 0.0
        %1050 = vmatpush1.xpose.msra.mxu0 0.0
        %1051 = vmatprep.subr.mxu0 0.0
        %1052 = vmatpush1.xpose.msra.mxu0 0.0
        %1053 = vmatprep.subr.mxu0 0.0
        %1054 = vmatpush1.xpose.msra.mxu0 0.0
        %1055 = vmatprep.subr.mxu0 0.0
        %1056 = vmatpush1.xpose.msra.mxu0 0.0
        %1057 = vmatprep.subr.mxu0 0.0
        %1058 = vmatpush1.xpose.msra.mxu0 0.0
        %1059 = vmatprep.subr.mxu0 0.0
        %1060 = vmatpush1.xpose.msra.mxu0 0.0
        %1061 = vmatprep.subr.mxu0 0.0
        %1062 = vmatpush1.xpose.msra.mxu0 0.0
        %1063 = vmatprep.subr.mxu0 0.0
        %1064 = vmatpush1.xpose.msra.mxu0 0.0
        %1065 = vmatprep.subr.mxu0 0.0
        %1066 = vmatpush1.xpose.msra.mxu0 0.0
        %1067 = vmatprep.subr.mxu0 0.0
        %1068 = vmatpush1.xpose.msra.mxu0 0.0
        %1069 = vmatprep.subr.mxu0 0.0
        %1070 = vmatpush1.xpose.msra.mxu0 0.0
        %1071 = vmatprep.subr.mxu0 0.0
        %1072 = vmatpush1.xpose.msra.mxu0 0.0
        %1073 = vmatprep.subr.mxu0 0.0
        %1074 = vmatpush1.xpose.msra.mxu0 0.0
        %1075 = vmatprep.subr.mxu0 0.0
        %1076 = vmatpush1.xpose.msra.mxu0 0.0
        %1077 = vmatprep.subr.mxu0 0.0
        %1078 = vmatpush1.xpose.msra.mxu0 0.0
        %1079 = vmatprep.subr.mxu0 0.0
        %1080 = vmatpush1.xpose.msra.mxu0 0.0
        %1081 = vmatprep.subr.mxu0 0.0
        %1082 = vmatpush1.xpose.msra.mxu0 0.0
        %1083 = vmatprep.subr.mxu0 0.0
        %1084 = vmatpush1.xpose.msra.mxu0 0.0
        %1085 = vmatprep.subr.mxu0 0.0
        %1086 = vmatpush1.xpose.msra.mxu0 0.0
        %1087 = vmatprep.subr.mxu0 0.0
        %1088 = vmatpush1.xpose.msra.mxu0 0.0
        %1089 = vmatprep.subr.mxu0 0.0
        %1090 = vmatpush1.xpose.msra.mxu0 0.0
        %1091 = vmatprep.subr.mxu0 0.0
        %1092 = vmatpush1.xpose.msra.mxu0 0.0
        %1093 = vmatprep.subr.mxu0 0.0
        %1094 = vmatpush1.xpose.msra.mxu0 0.0
        %1095 = vmatprep.mubr.f32.mxu0 0.0
        %1096 = vmatmul.mubr.f32.gmra.mrb[0].mxu0 %v1029
        %v1097 = vpop.f32.mrb[0].mxu0
        %v1098 = vadd.f32 0.0, %v1097
        %v1099 = vpop.f32.mrb[0].mxu0
        %1100 = vdwg.mxu0
        %v1101 = vmul.f32 %v1098, 0.70710677
        %v1102 = vadd.f32 %v1101, %v453
        %v1103 = vsel %vm533, %v1102, -inf
        %1104 = vmax.xlane.f32.xlu0 %v1103
        %v1105 = vpop.xlane.xlu0 %1104
        %v1106 = vsub.f32 %v1102, %v1105
        %v1107 = vmul.f32 %v1106, 1.442695
        %v1108 = vpow.pop %v1107
        %v1109 = vsel %vm533, %v1108, 0.0
        %1110 = vadd.xlane.f32.xlu0 %v1109
        %v1111 = vpop.xlane.xlu0 %1110
        %v1112 = vrcp.pop %v1111
        %v1113 = vmul.f32 %v1108, %v1112
        %1115 = vrot.lane.b32.xlu0 %v1026, 16
        %v1116 = vpop.permute.xlu0 %1115
        %v1118 = vmul.f32 %v917, %v1116
        %1120 = vrot.lane.b32.xlu0 %v1118, 112
        %v1121 = vpop.permute.xlu0 %1120
        %v1124 = vsel %vm533, %v1113, 0
        %1126 = vmatprep.subr.mxu0 0.0
        %1127 = vmatpush1.msra.mxu0 %v1121
        %1128 = vmatprep.subr.mxu0 0.0
        %1129 = vmatpush1.msra.mxu0 0.0
        %1130 = vmatprep.subr.mxu0 0.0
        %1131 = vmatpush1.msra.mxu0 0.0
        %1132 = vmatprep.subr.mxu0 0.0
        %1133 = vmatpush1.msra.mxu0 0.0
        %1134 = vmatprep.subr.mxu0 0.0
        %1135 = vmatpush1.msra.mxu0 0.0
        %1136 = vmatprep.subr.mxu0 0.0
        %1137 = vmatpush1.msra.mxu0 0.0
        %1138 = vmatprep.subr.mxu0 0.0
        %1139 = vmatpush1.msra.mxu0 0.0
        %1140 = vmatprep.subr.mxu0 0.0
        %1141 = vmatpush1.msra.mxu0 0.0
        %1142 = vmatprep.subr.mxu0 0.0
        %1143 = vmatpush1.msra.mxu0 0.0
        %1144 = vmatprep.subr.mxu0 0.0
        %1145 = vmatpush1.msra.mxu0 0.0
        %1146 = vmatprep.subr.mxu0 0.0
        %1147 = vmatpush1.msra.mxu0 0.0
        %1148 = vmatprep.subr.mxu0 0.0
        %1149 = vmatpush1.msra.mxu0 0.0
        %1150 = vmatprep.subr.mxu0 0.0
        %1151 = vmatpush1.msra.mxu0 0.0
        %1152 = vmatprep.subr.mxu0 0.0
        %1153 = vmatpush1.msra.mxu0 0.0
        %1154 = vmatprep.subr.mxu0 0.0
        %1155 = vmatpush1.msra.mxu0 0.0
        %1156 = vmatprep.subr.mxu0 0.0
        %1157 = vmatpush1.msra.mxu0 0.0
        %1158 = vmatprep.subr.mxu0 0.0
        %1159 = vmatpush1.msra.mxu0 0.0
        %1160 = vmatprep.subr.mxu0 0.0
        %1161 = vmatpush1.msra.mxu0 0.0
        %1162 = vmatprep.subr.mxu0 0.0
        %1163 = vmatpush1.msra.mxu0 0.0
        %1164 = vmatprep.subr.mxu0 0.0
        %1165 = vmatpush1.msra.mxu0 0.0
        %1166 = vmatprep.subr.mxu0 0.0
        %1167 = vmatpush1.msra.mxu0 0.0
        %1168 = vmatprep.subr.mxu0 0.0
        %1169 = vmatpush1.msra.mxu0 0.0
        %1170 = vmatprep.subr.mxu0 0.0
        %1171 = vmatpush1.msra.mxu0 0.0
        %1172 = vmatprep.subr.mxu0 0.0
        %1173 = vmatpush1.msra.mxu0 0.0
        %1174 = vmatprep.subr.mxu0 0.0
        %1175 = vmatpush1.msra.mxu0 0.0
        %1176 = vmatprep.subr.mxu0 0.0
        %1177 = vmatpush1.msra.mxu0 0.0
        %1178 = vmatprep.subr.mxu0 0.0
        %1179 = vmatpush1.msra.mxu0 0.0
        %1180 = vmatprep.subr.mxu0 0.0
        %1181 = vmatpush1.msra.mxu0 0.0
        %1182 = vmatprep.subr.mxu0 0.0
        %1183 = vmatpush1.msra.mxu0 0.0
        %1184 = vmatprep.subr.mxu0 0.0
        %1185 = vmatpush1.msra.mxu0 0.0
        %1186 = vmatprep.subr.mxu0 0.0
        %1187 = vmatpush1.msra.mxu0 0.0
        %1188 = vmatprep.subr.mxu0 0.0
        %1189 = vmatpush1.msra.mxu0 0.0
        %1190 = vmatprep.mubr.f32.mxu0 0.0
        %1191 = vmatmul.mubr.f32.gmra.mrb[0].mxu0 %v1124
        %v1192 = vpop.f32.mrb[0].mxu0
        %v1193 = vadd.f32 0.0, %v1192
        %v1194 = vpop.f32.mrb[0].mxu0
        %1195 = vdwg.mxu0
        %1197 = vrot.lane.b32.xlu0 %v1021, 112
        %v1198 = vpop.permute.xlu0 %1197
        %v1201 = vsel %vm533, %v1016, 0
        %1203 = vmatprep.subr.mxu0 0.0
        %1204 = vmatpush1.msra.mxu0 %v1198
        %1205 = vmatprep.subr.mxu0 0.0
        %1206 = vmatpush1.msra.mxu0 0.0
        %1207 = vmatprep.subr.mxu0 0.0
        %1208 = vmatpush1.msra.mxu0 0.0
        %1209 = vmatprep.subr.mxu0 0.0
        %1210 = vmatpush1.msra.mxu0 0.0
        %1211 = vmatprep.subr.mxu0 0.0
        %1212 = vmatpush1.msra.mxu0 0.0
        %1213 = vmatprep.subr.mxu0 0.0
        %1214 = vmatpush1.msra.mxu0 0.0
        %1215 = vmatprep.subr.mxu0 0.0
        %1216 = vmatpush1.msra.mxu0 0.0
        %1217 = vmatprep.subr.mxu0 0.0
        %1218 = vmatpush1.msra.mxu0 0.0
        %1219 = vmatprep.subr.mxu0 0.0
        %1220 = vmatpush1.msra.mxu0 0.0
        %1221 = vmatprep.subr.mxu0 0.0
        %1222 = vmatpush1.msra.mxu0 0.0
        %1223 = vmatprep.subr.mxu0 0.0
        %1224 = vmatpush1.msra.mxu0 0.0
        %1225 = vmatprep.subr.mxu0 0.0
        %1226 = vmatpush1.msra.mxu0 0.0
        %1227 = vmatprep.subr.mxu0 0.0
        %1228 = vmatpush1.msra.mxu0 0.0
        %1229 = vmatprep.subr.mxu0 0.0
        %1230 = vmatpush1.msra.mxu0 0.0
        %1231 = vmatprep.subr.mxu0 0.0
        %1232 = vmatpush1.msra.mxu0 0.0
        %1233 = vmatprep.subr.mxu0 0.0
        %1234 = vmatpush1.msra.mxu0 0.0
        %1235 = vmatprep.subr.mxu0 0.0
        %1236 = vmatpush1.msra.mxu0 0.0
        %1237 = vmatprep.subr.mxu0 0.0
        %1238 = vmatpush1.msra.mxu0 0.0
        %1239 = vmatprep.subr.mxu0 0.0
        %1240 = vmatpush1.msra.mxu0 0.0
        %1241 = vmatprep.subr.mxu0 0.0
        %1242 = vmatpush1.msra.mxu0 0.0
        %1243 = vmatprep.subr.mxu0 0.0
        %1244 = vmatpush1.msra.mxu0 0.0
        %1245 = vmatprep.subr.mxu0 0.0
        %1246 = vmatpush1.msra.mxu0 0.0
        %1247 = vmatprep.subr.mxu0 0.0
        %1248 = vmatpush1.msra.mxu0 0.0
        %1249 = vmatprep.subr.mxu0 0.0
        %1250 = vmatpush1.msra.mxu0 0.0
        %1251 = vmatprep.subr.mxu0 0.0
        %1252 = vmatpush1.msra.mxu0 0.0
        %1253 = vmatprep.subr.mxu0 0.0
        %1254 = vmatpush1.msra.mxu0 0.0
        %1255 = vmatprep.subr.mxu0 0.0
        %1256 = vmatpush1.msra.mxu0 0.0
        %1257 = vmatprep.subr.mxu0 0.0
        %1258 = vmatpush1.msra.mxu0 0.0
        %1259 = vmatprep.subr.mxu0 0.0
        %1260 = vmatpush1.msra.mxu0 0.0
        %1261 = vmatprep.subr.mxu0 0.0
        %1262 = vmatpush1.msra.mxu0 0.0
        %1263 = vmatprep.subr.mxu0 0.0
        %1264 = vmatpush1.msra.mxu0 0.0
        %1265 = vmatprep.subr.mxu0 0.0
        %1266 = vmatpush1.msra.mxu0 0.0
        %1267 = vmatprep.mubr.f32.mxu0 0.0
        %1268 = vmatmul.mubr.f32.gmra.mrb[0].mxu0 %v1201
        %v1269 = vpop.f32.mrb[0].mxu0
        %v1270 = vadd.f32 %v1193, %v1269
        %v1271 = vpop.f32.mrb[0].mxu0
        %1272 = vdwg.mxu0
        %v1273 = vld [vmem:[#allocation7 + $0xb] sm:$0x1]
        %v1274 = vlaneseq
        %v1275 = vshrl.u32 %v1274, 7
        %v1276 = vsub.s32 0, %v1275
        %v1277 = vrot.slane %v1273, %v1276
        %v1278 = vmul.f32 %v917, %v1277
        %v1280 = vsel %vm533, %v1278, 0
        %1282 = vmatprep.subr.mxu0 0.0
        %1283 = vmatpush1.xpose.msra.mxu0 %v932
        %1284 = vmatprep.subr.mxu0 0.0
        %1285 = vmatpush1.xpose.msra.mxu0 0.0
        %1286 = vmatprep.subr.mxu0 0.0
        %1287 = vmatpush1.xpose.msra.mxu0 0.0
        %1288 = vmatprep.subr.mxu0 0.0
        %1289 = vmatpush1.xpose.msra.mxu0 0.0
        %1290 = vmatprep.subr.mxu0 0.0
        %1291 = vmatpush1.xpose.msra.mxu0 0.0
        %1292 = vmatprep.subr.mxu0 0.0
        %1293 = vmatpush1.xpose.msra.mxu0 0.0
        %1294 = vmatprep.subr.mxu0 0.0
        %1295 = vmatpush1.xpose.msra.mxu0 0.0
        %1296 = vmatprep.subr.mxu0 0.0
        %1297 = vmatpush1.xpose.msra.mxu0 0.0
        %1298 = vmatprep.subr.mxu0 0.0
        %1299 = vmatpush1.xpose.msra.mxu0 0.0
        %1300 = vmatprep.subr.mxu0 0.0
        %1301 = vmatpush1.xpose.msra.mxu0 0.0
        %1302 = vmatprep.subr.mxu0 0.0
        %1303 = vmatpush1.xpose.msra.mxu0 0.0
        %1304 = vmatprep.subr.mxu0 0.0
        %1305 = vmatpush1.xpose.msra.mxu0 0.0
        %1306 = vmatprep.subr.mxu0 0.0
        %1307 = vmatpush1.xpose.msra.mxu0 0.0
        %1308 = vmatprep.subr.mxu0 0.0
        %1309 = vmatpush1.xpose.msra.mxu0 0.0
        %1310 = vmatprep.subr.mxu0 0.0
        %1311 = vmatpush1.xpose.msra.mxu0 0.0
        %1312 = vmatprep.subr.mxu0 0.0
        %1313 = vmatpush1.xpose.msra.mxu0 0.0
        %1314 = vmatprep.subr.mxu0 0.0
        %1315 = vmatpush1.xpose.msra.mxu0 0.0
        %1316 = vmatprep.subr.mxu0 0.0
        %1317 = vmatpush1.xpose.msra.mxu0 0.0
        %1318 = vmatprep.subr.mxu0 0.0
        %1319 = vmatpush1.xpose.msra.mxu0 0.0
        %1320 = vmatprep.subr.mxu0 0.0
        %1321 = vmatpush1.xpose.msra.mxu0 0.0
        %1322 = vmatprep.subr.mxu0 0.0
        %1323 = vmatpush1.xpose.msra.mxu0 0.0
        %1324 = vmatprep.subr.mxu0 0.0
        %1325 = vmatpush1.xpose.msra.mxu0 0.0
        %1326 = vmatprep.subr.mxu0 0.0
        %1327 = vmatpush1.xpose.msra.mxu0 0.0
        %1328 = vmatprep.subr.mxu0 0.0
        %1329 = vmatpush1.xpose.msra.mxu0 0.0
        %1330 = vmatprep.subr.mxu0 0.0
        %1331 = vmatpush1.xpose.msra.mxu0 0.0
        %1332 = vmatprep.subr.mxu0 0.0
        %1333 = vmatpush1.xpose.msra.mxu0 0.0
        %1334 = vmatprep.subr.mxu0 0.0
        %1335 = vmatpush1.xpose.msra.mxu0 0.0
        %1336 = vmatprep.subr.mxu0 0.0
        %1337 = vmatpush1.xpose.msra.mxu0 0.0
        %1338 = vmatprep.subr.mxu0 0.0
        %1339 = vmatpush1.xpose.msra.mxu0 0.0
        %1340 = vmatprep.subr.mxu0 0.0
        %1341 = vmatpush1.xpose.msra.mxu0 0.0
        %1342 = vmatprep.subr.mxu0 0.0
        %1343 = vmatpush1.xpose.msra.mxu0 0.0
        %1344 = vmatprep.subr.mxu0 0.0
        %1345 = vmatpush1.xpose.msra.mxu0 0.0
        %1346 = vmatprep.mubr.f32.mxu0 0.0
        %1347 = vmatmul.mubr.f32.gmra.mrb[0].mxu0 %v1280
        %v1348 = vpop.f32.mrb[0].mxu0
        %v1349 = vadd.f32 0.0, %v1348
        %v1350 = vpop.f32.mrb[0].mxu0
        %1351 = vdwg.mxu0
        %v1352 = vmul.f32 %v1349, 0.70710677
        %v1353 = vadd.f32 %v1352, %v453
        %v1354 = vsel %vm533, %v1353, -inf
        %1355 = vmax.xlane.f32.xlu0 %v1354
        %v1356 = vpop.xlane.xlu0 %1355
        %v1357 = vsub.f32 %v1353, %v1356
        %v1358 = vmul.f32 %v1357, 1.442695
        %v1359 = vpow.pop %v1358
        %v1360 = vsel %vm533, %v1359, 0.0
        %1361 = vadd.xlane.f32.xlu0 %v1360
        %v1362 = vpop.xlane.xlu0 %1361
        %v1363 = vrcp.pop %v1362
        %v1364 = vmul.f32 %v1359, %v1363
        %1366 = vrot.lane.b32.xlu0 %v1277, 16
        %v1367 = vpop.permute.xlu0 %1366
        %v1369 = vmul.f32 %v917, %v1367
        %1371 = vrot.lane.b32.xlu0 %v1369, 112
        %v1372 = vpop.permute.xlu0 %1371
        %v1375 = vsel %vm533, %v1364, 0
        %1377 = vmatprep.subr.mxu0 0.0
        %1378 = vmatpush1.msra.mxu0 %v1372
        %1379 = vmatprep.subr.mxu0 0.0
        %1380 = vmatpush1.msra.mxu0 0.0
        %1381 = vmatprep.subr.mxu0 0.0
        %1382 = vmatpush1.msra.mxu0 0.0
        %1383 = vmatprep.subr.mxu0 0.0
        %1384 = vmatpush1.msra.mxu0 0.0
        %1385 = vmatprep.subr.mxu0 0.0
        %1386 = vmatpush1.msra.mxu0 0.0
        %1387 = vmatprep.subr.mxu0 0.0
        %1388 = vmatpush1.msra.mxu0 0.0
        %1389 = vmatprep.subr.mxu0 0.0
        %1390 = vmatpush1.msra.mxu0 0.0
        %1391 = vmatprep.subr.mxu0 0.0
        %1392 = vmatpush1.msra.mxu0 0.0
        %1393 = vmatprep.subr.mxu0 0.0
        %1394 = vmatpush1.msra.mxu0 0.0
        %1395 = vmatprep.subr.mxu0 0.0
        %1396 = vmatpush1.msra.mxu0 0.0
        %1397 = vmatprep.subr.mxu0 0.0
        %1398 = vmatpush1.msra.mxu0 0.0
        %1399 = vmatprep.subr.mxu0 0.0
        %1400 = vmatpush1.msra.mxu0 0.0
        %1401 = vmatprep.subr.mxu0 0.0
        %1402 = vmatpush1.msra.mxu0 0.0
        %1403 = vmatprep.subr.mxu0 0.0
        %1404 = vmatpush1.msra.mxu0 0.0
        %1405 = vmatprep.subr.mxu0 0.0
        %1406 = vmatpush1.msra.mxu0 0.0
        %1407 = vmatprep.subr.mxu0 0.0
        %1408 = vmatpush1.msra.mxu0 0.0
        %1409 = vmatprep.subr.mxu0 0.0
        %1410 = vmatpush1.msra.mxu0 0.0
        %1411 = vmatprep.subr.mxu0 0.0
        %1412 = vmatpush1.msra.mxu0 0.0
        %1413 = vmatprep.subr.mxu0 0.0
        %1414 = vmatpush1.msra.mxu0 0.0
        %1415 = vmatprep.subr.mxu0 0.0
        %1416 = vmatpush1.msra.mxu0 0.0
        %1417 = vmatprep.subr.mxu0 0.0
        %1418 = vmatpush1.msra.mxu0 0.0
        %1419 = vmatprep.subr.mxu0 0.0
        %1420 = vmatpush1.msra.mxu0 0.0
        %1421 = vmatprep.subr.mxu0 0.0
        %1422 = vmatpush1.msra.mxu0 0.0
        %1423 = vmatprep.subr.mxu0 0.0
        %1424 = vmatpush1.msra.mxu0 0.0
        %1425 = vmatprep.subr.mxu0 0.0
        %1426 = vmatpush1.msra.mxu0 0.0
        %1427 = vmatprep.subr.mxu0 0.0
        %1428 = vmatpush1.msra.mxu0 0.0
        %1429 = vmatprep.subr.mxu0 0.0
        %1430 = vmatpush1.msra.mxu0 0.0
        %1431 = vmatprep.subr.mxu0 0.0
        %1432 = vmatpush1.msra.mxu0 0.0
        %1433 = vmatprep.subr.mxu0 0.0
        %1434 = vmatpush1.msra.mxu0 0.0
        %1435 = vmatprep.subr.mxu0 0.0
        %1436 = vmatpush1.msra.mxu0 0.0
        %1437 = vmatprep.subr.mxu0 0.0
        %1438 = vmatpush1.msra.mxu0 0.0
        %1439 = vmatprep.subr.mxu0 0.0
        %1440 = vmatpush1.msra.mxu0 0.0
        %1441 = vmatprep.mubr.f32.mxu0 0.0
        %1442 = vmatmul.mubr.f32.gmra.mrb[0].mxu0 %v1375
        %v1443 = vpop.f32.mrb[0].mxu0
        %v1444 = vadd.f32 0.0, %v1443
        %v1445 = vpop.f32.mrb[0].mxu0
        %1446 = vdwg.mxu0
        %v1447 = vadd.f32 %v1270, %v1444
        %v1448 = vld [vmem:[#allocation7 + $0xc] sm:$0x1]
        %v1449 = vlaneseq
        %v1450 = vshrl.u32 %v1449, 7
        %v1451 = vsub.s32 0, %v1450
        %v1452 = vrot.slane %v1448, %v1451
        %v1453 = vmul.f32 %v917, %v1452
        %v1455 = vsel %vm533, %v1453, 0
        %1457 = vmatprep.subr.mxu0 0.0
        %1458 = vmatpush1.xpose.msra.mxu0 %v932
        %1459 = vmatprep.subr.mxu0 0.0
        %1460 = vmatpush1.xpose.msra.mxu0 0.0
        %1461 = vmatprep.subr.mxu0 0.0
        %1462 = vmatpush1.xpose.msra.mxu0 0.0
        %1463 = vmatprep.subr.mxu0 0.0
        %1464 = vmatpush1.xpose.msra.mxu0 0.0
        %1465 = vmatprep.subr.mxu0 0.0
        %1466 = vmatpush1.xpose.msra.mxu0 0.0
        %1467 = vmatprep.subr.mxu0 0.0
        %1468 = vmatpush1.xpose.msra.mxu0 0.0
        %1469 = vmatprep.subr.mxu0 0.0
        %1470 = vmatpush1.xpose.msra.mxu0 0.0
        %1471 = vmatprep.subr.mxu0 0.0
        %1472 = vmatpush1.xpose.msra.mxu0 0.0
        %1473 = vmatprep.subr.mxu0 0.0
        %1474 = vmatpush1.xpose.msra.mxu0 0.0
        %1475 = vmatprep.subr.mxu0 0.0
        %1476 = vmatpush1.xpose.msra.mxu0 0.0
        %1477 = vmatprep.subr.mxu0 0.0
        %1478 = vmatpush1.xpose.msra.mxu0 0.0
        %1479 = vmatprep.subr.mxu0 0.0
        %1480 = vmatpush1.xpose.msra.mxu0 0.0
        %1481 = vmatprep.subr.mxu0 0.0
        %1482 = vmatpush1.xpose.msra.mxu0 0.0
        %1483 = vmatprep.subr.mxu0 0.0
        %1484 = vmatpush1.xpose.msra.mxu0 0.0
        %1485 = vmatprep.subr.mxu0 0.0
        %1486 = vmatpush1.xpose.msra.mxu0 0.0
        %1487 = vmatprep.subr.mxu0 0.0
        %1488 = vmatpush1.xpose.msra.mxu0 0.0
        %1489 = vmatprep.subr.mxu0 0.0
        %1490 = vmatpush1.xpose.msra.mxu0 0.0
        %1491 = vmatprep.subr.mxu0 0.0
        %1492 = vmatpush1.xpose.msra.mxu0 0.0
        %1493 = vmatprep.subr.mxu0 0.0
        %1494 = vmatpush1.xpose.msra.mxu0 0.0
        %1495 = vmatprep.subr.mxu0 0.0
        %1496 = vmatpush1.xpose.msra.mxu0 0.0
        %1497 = vmatprep.subr.mxu0 0.0
        %1498 = vmatpush1.xpose.msra.mxu0 0.0
        %1499 = vmatprep.subr.mxu0 0.0
        %1500 = vmatpush1.xpose.msra.mxu0 0.0
        %1501 = vmatprep.subr.mxu0 0.0
        %1502 = vmatpush1.xpose.msra.mxu0 0.0
        %1503 = vmatprep.subr.mxu0 0.0
        %1504 = vmatpush1.xpose.msra.mxu0 0.0
        %1505 = vmatprep.subr.mxu0 0.0
        %1506 = vmatpush1.xpose.msra.mxu0 0.0
        %1507 = vmatprep.subr.mxu0 0.0
        %1508 = vmatpush1.xpose.msra.mxu0 0.0
        %1509 = vmatprep.subr.mxu0 0.0
        %1510 = vmatpush1.xpose.msra.mxu0 0.0
        %1511 = vmatprep.subr.mxu0 0.0
        %1512 = vmatpush1.xpose.msra.mxu0 0.0
        %1513 = vmatprep.subr.mxu0 0.0
        %1514 = vmatpush1.xpose.msra.mxu0 0.0
        %1515 = vmatprep.subr.mxu0 0.0
        %1516 = vmatpush1.xpose.msra.mxu0 0.0
        %1517 = vmatprep.subr.mxu0 0.0
        %1518 = vmatpush1.xpose.msra.mxu0 0.0
        %1519 = vmatprep.subr.mxu0 0.0
        %1520 = vmatpush1.xpose.msra.mxu0 0.0
        %1521 = vmatprep.mubr.f32.mxu0 0.0
        %1522 = vmatmul.mubr.f32.gmra.mrb[0].mxu0 %v1455
        %v1523 = vpop.f32.mrb[0].mxu0
        %v1524 = vadd.f32 0.0, %v1523
        %v1525 = vpop.f32.mrb[0].mxu0
        %1526 = vdwg.mxu0
        %v1527 = vmul.f32 %v1524, 0.70710677
        %v1528 = vadd.f32 %v1527, %v453
        %v1529 = vsel %vm533, %v1528, -inf
        %1530 = vmax.xlane.f32.xlu0 %v1529
        %v1531 = vpop.xlane.xlu0 %1530
        %v1532 = vsub.f32 %v1528, %v1531
        %v1533 = vmul.f32 %v1532, 1.442695
        %v1534 = vpow.pop %v1533
        %v1535 = vsel %vm533, %v1534, 0.0
        %1536 = vadd.xlane.f32.xlu0 %v1535
        %v1537 = vpop.xlane.xlu0 %1536
        %v1538 = vrcp.pop %v1537
        %v1539 = vmul.f32 %v1534, %v1538
        %1541 = vrot.lane.b32.xlu0 %v1452, 16
        %v1542 = vpop.permute.xlu0 %1541
        %v1544 = vmul.f32 %v917, %v1542
        %1546 = vrot.lane.b32.xlu0 %v1544, 112
        %v1547 = vpop.permute.xlu0 %1546
        %v1550 = vsel %vm533, %v1539, 0
        %1552 = vmatprep.subr.mxu0 0.0
        %1553 = vmatpush1.msra.mxu0 %v1547
        %1554 = vmatprep.subr.mxu0 0.0
        %1555 = vmatpush1.msra.mxu0 0.0
        %1556 = vmatprep.subr.mxu0 0.0
        %1557 = vmatpush1.msra.mxu0 0.0
        %1558 = vmatprep.subr.mxu0 0.0
        %1559 = vmatpush1.msra.mxu0 0.0
        %1560 = vmatprep.subr.mxu0 0.0
        %1561 = vmatpush1.msra.mxu0 0.0
        %1562 = vmatprep.subr.mxu0 0.0
        %1563 = vmatpush1.msra.mxu0 0.0
        %1564 = vmatprep.subr.mxu0 0.0
        %1565 = vmatpush1.msra.mxu0 0.0
        %1566 = vmatprep.subr.mxu0 0.0
        %1567 = vmatpush1.msra.mxu0 0.0
        %1568 = vmatprep.subr.mxu0 0.0
        %1569 = vmatpush1.msra.mxu0 0.0
        %1570 = vmatprep.subr.mxu0 0.0
        %1571 = vmatpush1.msra.mxu0 0.0
        %1572 = vmatprep.subr.mxu0 0.0
        %1573 = vmatpush1.msra.mxu0 0.0
        %1574 = vmatprep.subr.mxu0 0.0
        %1575 = vmatpush1.msra.mxu0 0.0
        %1576 = vmatprep.subr.mxu0 0.0
        %1577 = vmatpush1.msra.mxu0 0.0
        %1578 = vmatprep.subr.mxu0 0.0
        %1579 = vmatpush1.msra.mxu0 0.0
        %1580 = vmatprep.subr.mxu0 0.0
        %1581 = vmatpush1.msra.mxu0 0.0
        %1582 = vmatprep.subr.mxu0 0.0
        %1583 = vmatpush1.msra.mxu0 0.0
        %1584 = vmatprep.subr.mxu0 0.0
        %1585 = vmatpush1.msra.mxu0 0.0
        %1586 = vmatprep.subr.mxu0 0.0
        %1587 = vmatpush1.msra.mxu0 0.0
        %1588 = vmatprep.subr.mxu0 0.0
        %1589 = vmatpush1.msra.mxu0 0.0
        %1590 = vmatprep.subr.mxu0 0.0
        %1591 = vmatpush1.msra.mxu0 0.0
        %1592 = vmatprep.subr.mxu0 0.0
        %1593 = vmatpush1.msra.mxu0 0.0
        %1594 = vmatprep.subr.mxu0 0.0
        %1595 = vmatpush1.msra.mxu0 0.0
        %1596 = vmatprep.subr.mxu0 0.0
        %1597 = vmatpush1.msra.mxu0 0.0
        %1598 = vmatprep.subr.mxu0 0.0
        %1599 = vmatpush1.msra.mxu0 0.0
        %1600 = vmatprep.subr.mxu0 0.0
        %1601 = vmatpush1.msra.mxu0 0.0
        %1602 = vmatprep.subr.mxu0 0.0
        %1603 = vmatpush1.msra.mxu0 0.0
        %1604 = vmatprep.subr.mxu0 0.0
        %1605 = vmatpush1.msra.mxu0 0.0
        %1606 = vmatprep.subr.mxu0 0.0
        %1607 = vmatpush1.msra.mxu0 0.0
        %1608 = vmatprep.subr.mxu0 0.0
        %1609 = vmatpush1.msra.mxu0 0.0
        %1610 = vmatprep.subr.mxu0 0.0
        %1611 = vmatpush1.msra.mxu0 0.0
        %1612 = vmatprep.subr.mxu0 0.0
        %1613 = vmatpush1.msra.mxu0 0.0
        %1614 = vmatprep.subr.mxu0 0.0
        %1615 = vmatpush1.msra.mxu0 0.0
        %1616 = vmatprep.mubr.f32.mxu0 0.0
        %1617 = vmatmul.mubr.f32.gmra.mrb[0].mxu0 %v1550
        %v1618 = vpop.f32.mrb[0].mxu0
        %v1619 = vadd.f32 0.0, %v1618
        %v1620 = vpop.f32.mrb[0].mxu0
        %1621 = vdwg.mxu0
        %v1622 = vadd.f32 %v1447, %v1619
        %v1623 = vld [vmem:[#allocation6] sm:$0xff]
        %v1624 = vld [vmem:[#allocation7 + $0x2] sm:$0x1]
        %v1625 = vlaneseq
        %v1626 = vshrl.u32 %v1625, 7
        %v1627 = vsub.s32 0, %v1626
        %v1628 = vrot.slane %v1624, %v1627
        %v1630 = vsel %vm533, %v1622, 0
        %1632 = vmatprep.subr.mxu0 0.0
        %1633 = vmatpush1.msra.mxu0 %v1623
        %1634 = vmatprep.subr.mxu0 0.0
        %1635 = vmatpush1.msra.mxu0 0.0
        %1636 = vmatprep.subr.mxu0 0.0
        %1637 = vmatpush1.msra.mxu0 0.0
        %1638 = vmatprep.subr.mxu0 0.0
        %1639 = vmatpush1.msra.mxu0 0.0
        %1640 = vmatprep.subr.mxu0 0.0
        %1641 = vmatpush1.msra.mxu0 0.0
        %1642 = vmatprep.subr.mxu0 0.0
        %1643 = vmatpush1.msra.mxu0 0.0
        %1644 = vmatprep.subr.mxu0 0.0
        %1645 = vmatpush1.msra.mxu0 0.0
        %1646 = vmatprep.subr.mxu0 0.0
        %1647 = vmatpush1.msra.mxu0 0.0
        %1648 = vmatprep.subr.mxu0 0.0
        %1649 = vmatpush1.msra.mxu0 0.0
        %1650 = vmatprep.subr.mxu0 0.0
        %1651 = vmatpush1.msra.mxu0 0.0
        %1652 = vmatprep.subr.mxu0 0.0
        %1653 = vmatpush1.msra.mxu0 0.0
        %1654 = vmatprep.subr.mxu0 0.0
        %1655 = vmatpush1.msra.mxu0 0.0
        %1656 = vmatprep.subr.mxu0 0.0
        %1657 = vmatpush1.msra.mxu0 0.0
        %1658 = vmatprep.subr.mxu0 0.0
        %1659 = vmatpush1.msra.mxu0 0.0
        %1660 = vmatprep.subr.mxu0 0.0
        %1661 = vmatpush1.msra.mxu0 0.0
        %1662 = vmatprep.subr.mxu0 0.0
        %1663 = vmatpush1.msra.mxu0 0.0
        %1664 = vmatprep.subr.mxu0 0.0
        %1665 = vmatpush1.msra.mxu0 0.0
        %1666 = vmatprep.subr.mxu0 0.0
        %1667 = vmatpush1.msra.mxu0 0.0
        %1668 = vmatprep.subr.mxu0 0.0
        %1669 = vmatpush1.msra.mxu0 0.0
        %1670 = vmatprep.subr.mxu0 0.0
        %1671 = vmatpush1.msra.mxu0 0.0
        %1672 = vmatprep.subr.mxu0 0.0
        %1673 = vmatpush1.msra.mxu0 0.0
        %1674 = vmatprep.subr.mxu0 0.0
        %1675 = vmatpush1.msra.mxu0 0.0
        %1676 = vmatprep.subr.mxu0 0.0
        %1677 = vmatpush1.msra.mxu0 0.0
        %1678 = vmatprep.subr.mxu0 0.0
        %1679 = vmatpush1.msra.mxu0 0.0
        %1680 = vmatprep.subr.mxu0 0.0
        %1681 = vmatpush1.msra.mxu0 0.0
        %1682 = vmatprep.subr.mxu0 0.0
        %1683 = vmatpush1.msra.mxu0 0.0
        %1684 = vmatprep.subr.mxu0 0.0
        %1685 = vmatpush1.msra.mxu0 0.0
        %1686 = vmatprep.subr.mxu0 0.0
        %1687 = vmatpush1.msra.mxu0 0.0
        %1688 = vmatprep.subr.mxu0 0.0
        %1689 = vmatpush1.msra.mxu0 0.0
        %1690 = vmatprep.subr.mxu0 0.0
        %1691 = vmatpush1.msra.mxu0 0.0
        %1692 = vmatprep.subr.mxu0 0.0
        %1693 = vmatpush1.msra.mxu0 0.0
        %1694 = vmatprep.subr.mxu0 0.0
        %1695 = vmatpush1.msra.mxu0 0.0
        %1696 = vmatprep.mubr.f32.mxu0 0.0
        %1697 = vmatmul.mubr.f32.gmra.mrb[0].mxu0 %v1630
        %v1698 = vpop.f32.mrb[0].mxu0
        %v1699 = vadd.f32 %v1628, %v1698
        %v1700 = vpop.f32.mrb[0].mxu0
        %1701 = vdwg.mxu0
        %v1702 = vadd.f32 %v840, %v1699
        %v1703 = vld [vmem:[#allocation7 + $0x3] sm:$0x1]
        %v1704 = vld [vmem:[#allocation7 + $0x4] sm:$0x1]
        %v1705 = vsel %vm533, %v1702, 0.0
        %1706 = vadd.xlane.f32.xlu0 %v1705
        %v1707 = vpop.xlane.xlu0 %1706
        %v1708 = vrcp.pop 8.0
        %v1709 = vmul.f32 %v1707, %v1708
        %v1710 = vsub.f32 %v1702, %v1709
        %v1711 = vmul.f32 %v1710, %v1710
        %v1712 = vsel %vm533, %v1711, 0.0
        %1713 = vadd.xlane.f32.xlu0 %v1712
        %v1714 = vpop.xlane.xlu0 %1713
        %v1715 = vmul.f32 %v1714, %v1708
        %v1716 = vadd.f32 %v1715, 1e-05
        %v1717 = vrsqrt.pop %v1716
        %v1718 = vmul.f32 %v1710, %v1717
        %v1719 = vlaneseq
        %v1720 = vshrl.u32 %v1719, 7
        %v1721 = vsub.s32 0, %v1720
        %v1722 = vrot.slane %v1703, %v1721
        %v1723 = vmul.f32 %v1718, %v1722
        %v1724 = vlaneseq
        %v1725 = vshrl.u32 %v1724, 7
        %v1726 = vsub.s32 0, %v1725
        %v1727 = vrot.slane %v1704, %v1726
        %v1728 = vadd.f32 %v1723, %v1727
        %v1729 = vpack.c.bf16 %v1728, %v1728
        %v1730 = vld [vmem:[#allocation9] sm:$0xff]
        %v1731 = vld [vmem:[#allocation9 + $0x8] sm:$0xff]
        %v1732 = vld [vmem:[#allocation9 + $0x10] sm:$0xff]
        %v1733 = vld [vmem:[#allocation9 + $0x18] sm:$0xff]
        %v1734 = vld [vmem:[#allocation9 + $0x20] sm:$0xff]
        %v1735 = vld [vmem:[#allocation9 + $0x28] sm:$0xff]
        %v1736 = vld [vmem:[#allocation9 + $0x30] sm:$0xff]
        %v1737 = vld [vmem:[#allocation9 + $0x38] sm:$0xff]
        %v1738 = vld [vmem:[#allocation10] sm:$0xff]
        %v1739 = vld [vmem:[#allocation10 + $0x8] sm:$0xff]
        %v1742 = vlaneseq
        %v1743 = vshrl.u32 %v1742, 7
        %v1744 = vsub.s32 0, %v1743
        %v1745 = vrot.slane %v1738, %v1744
        %v1746 = vlaneseq
        %v1747 = vshrl.u32 %v1746, 7
        %v1748 = vsub.s32 1, %v1747
        %v1749 = vrot.slane %v1738, %v1748
        %v1750 = vlaneseq
        %v1751 = vshrl.u32 %v1750, 7
        %v1752 = vsub.s32 2, %v1751
        %v1753 = vrot.slane %v1738, %v1752
        %v1754 = vlaneseq
        %v1755 = vshrl.u32 %v1754, 7
        %v1756 = vsub.s32 3, %v1755
        %v1757 = vrot.slane %v1738, %v1756
        %v1758 = vlaneseq
        %v1759 = vshrl.u32 %v1758, 7
        %v1760 = vsub.s32 4, %v1759
        %v1761 = vrot.slane %v1738, %v1760
        %v1762 = vlaneseq
        %v1763 = vshrl.u32 %v1762, 7
        %v1764 = vsub.s32 5, %v1763
        %v1765 = vrot.slane %v1738, %v1764
        %v1766 = vlaneseq
        %v1767 = vshrl.u32 %v1766, 7
        %v1768 = vsub.s32 6, %v1767
        %v1769 = vrot.slane %v1738, %v1768
        %v1770 = vlaneseq
        %v1771 = vshrl.u32 %v1770, 7
        %v1772 = vsub.s32 7, %v1771
        %v1773 = vrot.slane %v1738, %v1772
        %v1774 = vlaneseq
        %v1775 = vshrl.u32 %v1774, 7
        %v1776 = vsub.s32 0, %v1775
        %v1777 = vrot.slane %v1739, %v1776
        %v1778 = vlaneseq
        %v1779 = vshrl.u32 %v1778, 7
        %v1780 = vsub.s32 1, %v1779
        %v1781 = vrot.slane %v1739, %v1780
        %v1782 = vlaneseq
        %v1783 = vshrl.u32 %v1782, 7
        %v1784 = vsub.s32 2, %v1783
        %v1785 = vrot.slane %v1739, %v1784
        %v1786 = vlaneseq
        %v1787 = vshrl.u32 %v1786, 7
        %v1788 = vsub.s32 3, %v1787
        %v1789 = vrot.slane %v1739, %v1788
        %v1790 = vlaneseq
        %v1791 = vshrl.u32 %v1790, 7
        %v1792 = vsub.s32 4, %v1791
        %v1793 = vrot.slane %v1739, %v1792
        %v1794 = vlaneseq
        %v1795 = vshrl.u32 %v1794, 7
        %v1796 = vsub.s32 5, %v1795
        %v1797 = vrot.slane %v1739, %v1796
        %v1798 = vlaneseq
        %v1799 = vshrl.u32 %v1798, 7
        %v1800 = vsub.s32 6, %v1799
        %v1801 = vrot.slane %v1739, %v1800
        %v1802 = vlaneseq
        %v1803 = vshrl.u32 %v1802, 7
        %v1804 = vsub.s32 7, %v1803
        %v1805 = vrot.slane %v1739, %v1804
        %v1830 = vunpack.c.l.b16 %v1730
        %v1831 = vunpack.c.h.b16 %v1730
        %v1832 = vunpack.c.l.b16 %v1731
        %v1833 = vunpack.c.h.b16 %v1731
        %v1834 = vunpack.c.l.b16 %v1732
        %v1835 = vunpack.c.h.b16 %v1732
        %v1836 = vunpack.c.l.b16 %v1733
        %v1837 = vunpack.c.h.b16 %v1733
        %v1838 = vunpack.c.l.b16 %v1734
        %v1839 = vunpack.c.h.b16 %v1734
        %v1840 = vunpack.c.l.b16 %v1735
        %v1841 = vunpack.c.h.b16 %v1735
        %v1842 = vunpack.c.l.b16 %v1736
        %v1843 = vunpack.c.h.b16 %v1736
        %v1844 = vunpack.c.l.b16 %v1737
        %v1845 = vunpack.c.h.b16 %v1737
        %v1846 = vpack.c.b16 %v1830, %v1830
        %v1847 = vpack.c.b16 %v1831, %v1831
        %v1848 = vpack.c.b16 %v1832, %v1832
        %v1849 = vpack.c.b16 %v1833, %v1833
        %v1850 = vpack.c.b16 %v1834, %v1834
        %v1851 = vpack.c.b16 %v1835, %v1835
        %v1852 = vpack.c.b16 %v1836, %v1836
        %v1853 = vpack.c.b16 %v1837, %v1837
        %v1854 = vpack.c.b16 %v1838, %v1838
        %v1855 = vpack.c.b16 %v1839, %v1839
        %v1856 = vpack.c.b16 %v1840, %v1840
        %v1857 = vpack.c.b16 %v1841, %v1841
        %v1858 = vpack.c.b16 %v1842, %v1842
        %v1859 = vpack.c.b16 %v1843, %v1843
        %v1860 = vpack.c.b16 %v1844, %v1844
        %v1861 = vpack.c.b16 %v1845, %v1845
        %v1863 = vsel %vm533, %v1729, 0
        %v1866 = vsel %vm459, %v1846, 0
        %v1869 = vsel %vm459, %v1847, 0
        %v1872 = vsel %vm459, %v1848, 0
        %v1875 = vsel %vm459, %v1849, 0
        %v1878 = vsel %vm459, %v1850, 0
        %v1881 = vsel %vm459, %v1851, 0
        %v1884 = vsel %vm459, %v1852, 0
        %v1887 = vsel %vm459, %v1853, 0
        %v1890 = vsel %vm459, %v1854, 0
        %v1893 = vsel %vm459, %v1855, 0
        %v1896 = vsel %vm459, %v1856, 0
        %v1899 = vsel %vm459, %v1857, 0
        %v1902 = vsel %vm459, %v1858, 0
        %v1905 = vsel %vm459, %v1859, 0
        %v1908 = vsel %vm459, %v1860, 0
        %v1911 = vsel %vm459, %v1861, 0
        %1913 = vmatprep.subr.bf16.mxu0 %v1869
        %1914 = vmatpush1.bf16.msra.mxu0 %v1866
        %1915 = vmatprep.subr.bf16.mxu0 0
        %1916 = vmatpush1.bf16.msra.mxu0 0
        %1917 = vmatprep.subr.bf16.mxu0 0
        %1918 = vmatpush1.bf16.msra.mxu0 0
        %1919 = vmatprep.subr.bf16.mxu0 0
        %1920 = vmatpush1.bf16.msra.mxu0 0
        %1921 = vmatprep.subr.bf16.mxu0 0
        %1922 = vmatpush1.bf16.msra.mxu0 0
        %1923 = vmatprep.subr.bf16.mxu0 0
        %1924 = vmatpush1.bf16.msra.mxu0 0
        %1925 = vmatprep.subr.bf16.mxu0 0
        %1926 = vmatpush1.bf16.msra.mxu0 0
        %1927 = vmatprep.subr.bf16.mxu0 0
        %1928 = vmatpush1.bf16.msra.mxu0 0
        %1929 = vmatprep.subr.bf16.mxu0 0
        %1930 = vmatpush1.bf16.msra.mxu0 0
        %1931 = vmatprep.subr.bf16.mxu0 0
        %1932 = vmatpush1.bf16.msra.mxu0 0
        %1933 = vmatprep.subr.bf16.mxu0 0
        %1934 = vmatpush1.bf16.msra.mxu0 0
        %1935 = vmatprep.subr.bf16.mxu0 0
        %1936 = vmatpush1.bf16.msra.mxu0 0
        %1937 = vmatprep.subr.bf16.mxu0 0
        %1938 = vmatpush1.bf16.msra.mxu0 0
        %1939 = vmatprep.subr.bf16.mxu0 0
        %1940 = vmatpush1.bf16.msra.mxu0 0
        %1941 = vmatprep.subr.bf16.mxu0 0
        %1942 = vmatpush1.bf16.msra.mxu0 0
        %1943 = vmatprep.subr.bf16.mxu0 0
        %1944 = vmatpush1.bf16.msra.mxu0 0
        %1945 = vmatprep.mubr.bf16.mxu0 0
        %1946 = vmatmul.mubr.bf16.gmra.mrb[0].mxu0 %v1863
        %v1947 = vpop.f32.mrb[0].mxu0
        %v1948 = vadd.f32 %v1745, %v1947
        %v1949 = vpop.f32.mrb[0].mxu0
        %v1950 = vadd.f32 %v1749, %v1949
        %v1951 = vpop.f32.mrb[0].mxu0
        %v1952 = vpop.f32.mrb[0].mxu0
        %1953 = vdwg.mxu0
        %1954 = vmatprep.subr.bf16.mxu0 %v1875
        %1955 = vmatpush1.bf16.msra.mxu0 %v1872
        %1956 = vmatprep.subr.bf16.mxu0 0
        %1957 = vmatpush1.bf16.msra.mxu0 0
        %1958 = vmatprep.subr.bf16.mxu0 0
        %1959 = vmatpush1.bf16.msra.mxu0 0
        %1960 = vmatprep.subr.bf16.mxu0 0
        %1961 = vmatpush1.bf16.msra.mxu0 0
        %1962 = vmatprep.subr.bf16.mxu0 0
        %1963 = vmatpush1.bf16.msra.mxu0 0
        %1964 = vmatprep.subr.bf16.mxu0 0
        %1965 = vmatpush1.bf16.msra.mxu0 0
        %1966 = vmatprep.subr.bf16.mxu0 0
        %1967 = vmatpush1.bf16.msra.mxu0 0
        %1968 = vmatprep.subr.bf16.mxu0 0
        %1969 = vmatpush1.bf16.msra.mxu0 0
        %1970 = vmatprep.subr.bf16.mxu0 0
        %1971 = vmatpush1.bf16.msra.mxu0 0
        %1972 = vmatprep.subr.bf16.mxu0 0
        %1973 = vmatpush1.bf16.msra.mxu0 0
        %1974 = vmatprep.subr.bf16.mxu0 0
        %1975 = vmatpush1.bf16.msra.mxu0 0
        %1976 = vmatprep.subr.bf16.mxu0 0
        %1977 = vmatpush1.bf16.msra.mxu0 0
        %1978 = vmatprep.subr.bf16.mxu0 0
        %1979 = vmatpush1.bf16.msra.mxu0 0
        %1980 = vmatprep.subr.bf16.mxu0 0
        %1981 = vmatpush1.bf16.msra.mxu0 0
        %1982 = vmatprep.subr.bf16.mxu0 0
        %1983 = vmatpush1.bf16.msra.mxu0 0
        %1984 = vmatprep.subr.bf16.mxu0 0
        %1985 = vmatpush1.bf16.msra.mxu0 0
        %1986 = vmatprep.mubr.bf16.mxu0 0
        %1987 = vmatmul.mubr.bf16.gmra.mrb[0].mxu0 %v1863
        %v1988 = vpop.f32.mrb[0].mxu0
        %v1989 = vadd.f32 %v1753, %v1988
        %v1990 = vpop.f32.mrb[0].mxu0
        %v1991 = vadd.f32 %v1757, %v1990
        %v1992 = vpop.f32.mrb[0].mxu0
        %v1993 = vpop.f32.mrb[0].mxu0
        %1994 = vdwg.mxu0
        %1995 = vmatprep.subr.bf16.mxu0 %v1881
        %1996 = vmatpush1.bf16.msra.mxu0 %v1878
        %1997 = vmatprep.subr.bf16.mxu0 0
        %1998 = vmatpush1.bf16.msra.mxu0 0
        %1999 = vmatprep.subr.bf16.mxu0 0
        %2000 = vmatpush1.bf16.msra.mxu0 0
        %2001 = vmatprep.subr.bf16.mxu0 0
        %2002 = vmatpush1.bf16.msra.mxu0 0
        %2003 = vmatprep.subr.bf16.mxu0 0
        %2004 = vmatpush1.bf16.msra.mxu0 0
        %2005 = vmatprep.subr.bf16.mxu0 0
        %2006 = vmatpush1.bf16.msra.mxu0 0
        %2007 = vmatprep.subr.bf16.mxu0 0
        %2008 = vmatpush1.bf16.msra.mxu0 0
        %2009 = vmatprep.subr.bf16.mxu0 0
        %2010 = vmatpush1.bf16.msra.mxu0 0
        %2011 = vmatprep.subr.bf16.mxu0 0
        %2012 = vmatpush1.bf16.msra.mxu0 0
        %2013 = vmatprep.subr.bf16.mxu0 0
        %2014 = vmatpush1.bf16.msra.mxu0 0
        %2015 = vmatprep.subr.bf16.mxu0 0
        %2016 = vmatpush1.bf16.msra.mxu0 0
        %2017 = vmatprep.subr.bf16.mxu0 0
        %2018 = vmatpush1.bf16.msra.mxu0 0
        %2019 = vmatprep.subr.bf16.mxu0 0
        %2020 = vmatpush1.bf16.msra.mxu0 0
        %2021 = vmatprep.subr.bf16.mxu0 0
        %2022 = vmatpush1.bf16.msra.mxu0 0
        %2023 = vmatprep.subr.bf16.mxu0 0
        %2024 = vmatpush1.bf16.msra.mxu0 0
        %2025 = vmatprep.subr.bf16.mxu0 0
        %2026 = vmatpush1.bf16.msra.mxu0 0
        %2027 = vmatprep.mubr.bf16.mxu0 0
        %2028 = vmatmul.mubr.bf16.gmra.mrb[0].mxu0 %v1863
        %v2029 = vpop.f32.mrb[0].mxu0
        %v2030 = vadd.f32 %v1761, %v2029
        %v2031 = vpop.f32.mrb[0].mxu0
        %v2032 = vadd.f32 %v1765, %v2031
        %v2033 = vpop.f32.mrb[0].mxu0
        %v2034 = vpop.f32.mrb[0].mxu0
        %2035 = vdwg.mxu0
        %2036 = vmatprep.subr.bf16.mxu0 %v1887
        %2037 = vmatpush1.bf16.msra.mxu0 %v1884
        %2038 = vmatprep.subr.bf16.mxu0 0
        %2039 = vmatpush1.bf16.msra.mxu0 0
        %2040 = vmatprep.subr.bf16.mxu0 0
        %2041 = vmatpush1.bf16.msra.mxu0 0
        %2042 = vmatprep.subr.bf16.mxu0 0
        %2043 = vmatpush1.bf16.msra.mxu0 0
        %2044 = vmatprep.subr.bf16.mxu0 0
        %2045 = vmatpush1.bf16.msra.mxu0 0
        %2046 = vmatprep.subr.bf16.mxu0 0
        %2047 = vmatpush1.bf16.msra.mxu0 0
        %2048 = vmatprep.subr.bf16.mxu0 0
        %2049 = vmatpush1.bf16.msra.mxu0 0
        %2050 = vmatprep.subr.bf16.mxu0 0
        %2051 = vmatpush1.bf16.msra.mxu0 0
        %2052 = vmatprep.subr.bf16.mxu0 0
        %2053 = vmatpush1.bf16.msra.mxu0 0
        %2054 = vmatprep.subr.bf16.mxu0 0
        %2055 = vmatpush1.bf16.msra.mxu0 0
        %2056 = vmatprep.subr.bf16.mxu0 0
        %2057 = vmatpush1.bf16.msra.mxu0 0
        %2058 = vmatprep.subr.bf16.mxu0 0
        %2059 = vmatpush1.bf16.msra.mxu0 0
        %2060 = vmatprep.subr.bf16.mxu0 0
        %2061 = vmatpush1.bf16.msra.mxu0 0
        %2062 = vmatprep.subr.bf16.mxu0 0
        %2063 = vmatpush1.bf16.msra.mxu0 0
        %2064 = vmatprep.subr.bf16.mxu0 0
        %2065 = vmatpush1.bf16.msra.mxu0 0
        %2066 = vmatprep.subr.bf16.mxu0 0
        %2067 = vmatpush1.bf16.msra.mxu0 0
        %2068 = vmatprep.mubr.bf16.mxu0 0
        %2069 = vmatmul.mubr.bf16.gmra.mrb[0].mxu0 %v1863
        %v2070 = vpop.f32.mrb[0].mxu0
        %v2071 = vadd.f32 %v1769, %v2070
        %v2072 = vpop.f32.mrb[0].mxu0
        %v2073 = vadd.f32 %v1773, %v2072
        %v2074 = vpop.f32.mrb[0].mxu0
        %v2075 = vpop.f32.mrb[0].mxu0
        %2076 = vdwg.mxu0
        %2077 = vmatprep.subr.bf16.mxu0 %v1893
        %2078 = vmatpush1.bf16.msra.mxu0 %v1890
        %2079 = vmatprep.subr.bf16.mxu0 0
        %2080 = vmatpush1.bf16.msra.mxu0 0
        %2081 = vmatprep.subr.bf16.mxu0 0
        %2082 = vmatpush1.bf16.msra.mxu0 0
        %2083 = vmatprep.subr.bf16.mxu0 0
        %2084 = vmatpush1.bf16.msra.mxu0 0
        %2085 = vmatprep.subr.bf16.mxu0 0
        %2086 = vmatpush1.bf16.msra.mxu0 0
        %2087 = vmatprep.subr.bf16.mxu0 0
        %2088 = vmatpush1.bf16.msra.mxu0 0
        %2089 = vmatprep.subr.bf16.mxu0 0
        %2090 = vmatpush1.bf16.msra.mxu0 0
        %2091 = vmatprep.subr.bf16.mxu0 0
        %2092 = vmatpush1.bf16.msra.mxu0 0
        %2093 = vmatprep.subr.bf16.mxu0 0
        %2094 = vmatpush1.bf16.msra.mxu0 0
        %2095 = vmatprep.subr.bf16.mxu0 0
        %2096 = vmatpush1.bf16.msra.mxu0 0
        %2097 = vmatprep.subr.bf16.mxu0 0
        %2098 = vmatpush1.bf16.msra.mxu0 0
        %2099 = vmatprep.subr.bf16.mxu0 0
        %2100 = vmatpush1.bf16.msra.mxu0 0
        %2101 = vmatprep.subr.bf16.mxu0 0
        %2102 = vmatpush1.bf16.msra.mxu0 0
        %2103 = vmatprep.subr.bf16.mxu0 0
        %2104 = vmatpush1.bf16.msra.mxu0 0
        %2105 = vmatprep.subr.bf16.mxu0 0
        %2106 = vmatpush1.bf16.msra.mxu0 0
        %2107 = vmatprep.subr.bf16.mxu0 0
        %2108 = vmatpush1.bf16.msra.mxu0 0
        %2109 = vmatprep.mubr.bf16.mxu0 0
        %2110 = vmatmul.mubr.bf16.gmra.mrb[0].mxu0 %v1863
        %v2111 = vpop.f32.mrb[0].mxu0
        %v2112 = vadd.f32 %v1777, %v2111
        %v2113 = vpop.f32.mrb[0].mxu0
        %v2114 = vadd.f32 %v1781, %v2113
        %v2115 = vpop.f32.mrb[0].mxu0
        %v2116 = vpop.f32.mrb[0].mxu0
        %2117 = vdwg.mxu0
        %2118 = vmatprep.subr.bf16.mxu0 %v1899
        %2119 = vmatpush1.bf16.msra.mxu0 %v1896
        %2120 = vmatprep.subr.bf16.mxu0 0
        %2121 = vmatpush1.bf16.msra.mxu0 0
        %2122 = vmatprep.subr.bf16.mxu0 0
        %2123 = vmatpush1.bf16.msra.mxu0 0
        %2124 = vmatprep.subr.bf16.mxu0 0
        %2125 = vmatpush1.bf16.msra.mxu0 0
        %2126 = vmatprep.subr.bf16.mxu0 0
        %2127 = vmatpush1.bf16.msra.mxu0 0
        %2128 = vmatprep.subr.bf16.mxu0 0
        %2129 = vmatpush1.bf16.msra.mxu0 0
        %2130 = vmatprep.subr.bf16.mxu0 0
        %2131 = vmatpush1.bf16.msra.mxu0 0
        %2132 = vmatprep.subr.bf16.mxu0 0
        %2133 = vmatpush1.bf16.msra.mxu0 0
        %2134 = vmatprep.subr.bf16.mxu0 0
        %2135 = vmatpush1.bf16.msra.mxu0 0
        %2136 = vmatprep.subr.bf16.mxu0 0
        %2137 = vmatpush1.bf16.msra.mxu0 0
        %2138 = vmatprep.subr.bf16.mxu0 0
        %2139 = vmatpush1.bf16.msra.mxu0 0
        %2140 = vmatprep.subr.bf16.mxu0 0
        %2141 = vmatpush1.bf16.msra.mxu0 0
        %2142 = vmatprep.subr.bf16.mxu0 0
        %2143 = vmatpush1.bf16.msra.mxu0 0
        %2144 = vmatprep.subr.bf16.mxu0 0
        %2145 = vmatpush1.bf16.msra.mxu0 0
        %2146 = vmatprep.subr.bf16.mxu0 0
        %2147 = vmatpush1.bf16.msra.mxu0 0
        %2148 = vmatprep.subr.bf16.mxu0 0
        %2149 = vmatpush1.bf16.msra.mxu0 0
        %2150 = vmatprep.mubr.bf16.mxu0 0
        %2151 = vmatmul.mubr.bf16.gmra.mrb[0].mxu0 %v1863
        %v2152 = vpop.f32.mrb[0].mxu0
        %v2153 = vadd.f32 %v1785, %v2152
        %v2154 = vpop.f32.mrb[0].mxu0
        %v2155 = vadd.f32 %v1789, %v2154
        %v2156 = vpop.f32.mrb[0].mxu0
        %v2157 = vpop.f32.mrb[0].mxu0
        %2158 = vdwg.mxu0
        %2159 = vmatprep.subr.bf16.mxu0 %v1905
        %2160 = vmatpush1.bf16.msra.mxu0 %v1902
        %2161 = vmatprep.subr.bf16.mxu0 0
        %2162 = vmatpush1.bf16.msra.mxu0 0
        %2163 = vmatprep.subr.bf16.mxu0 0
        %2164 = vmatpush1.bf16.msra.mxu0 0
        %2165 = vmatprep.subr.bf16.mxu0 0
        %2166 = vmatpush1.bf16.msra.mxu0 0
        %2167 = vmatprep.subr.bf16.mxu0 0
        %2168 = vmatpush1.bf16.msra.mxu0 0
        %2169 = vmatprep.subr.bf16.mxu0 0
        %2170 = vmatpush1.bf16.msra.mxu0 0
        %2171 = vmatprep.subr.bf16.mxu0 0
        %2172 = vmatpush1.bf16.msra.mxu0 0
        %2173 = vmatprep.subr.bf16.mxu0 0
        %2174 = vmatpush1.bf16.msra.mxu0 0
        %2175 = vmatprep.subr.bf16.mxu0 0
        %2176 = vmatpush1.bf16.msra.mxu0 0
        %2177 = vmatprep.subr.bf16.mxu0 0
        %2178 = vmatpush1.bf16.msra.mxu0 0
        %2179 = vmatprep.subr.bf16.mxu0 0
        %2180 = vmatpush1.bf16.msra.mxu0 0
        %2181 = vmatprep.subr.bf16.mxu0 0
        %2182 = vmatpush1.bf16.msra.mxu0 0
        %2183 = vmatprep.subr.bf16.mxu0 0
        %2184 = vmatpush1.bf16.msra.mxu0 0
        %2185 = vmatprep.subr.bf16.mxu0 0
        %2186 = vmatpush1.bf16.msra.mxu0 0
        %2187 = vmatprep.subr.bf16.mxu0 0
        %2188 = vmatpush1.bf16.msra.mxu0 0
        %2189 = vmatprep.subr.bf16.mxu0 0
        %2190 = vmatpush1.bf16.msra.mxu0 0
        %2191 = vmatprep.mubr.bf16.mxu0 0
        %2192 = vmatmul.mubr.bf16.gmra.mrb[0].mxu0 %v1863
        %v2193 = vpop.f32.mrb[0].mxu0
        %v2194 = vadd.f32 %v1793, %v2193
        %v2195 = vpop.f32.mrb[0].mxu0
        %v2196 = vadd.f32 %v1797, %v2195
        %v2197 = vpop.f32.mrb[0].mxu0
        %v2198 = vpop.f32.mrb[0].mxu0
        %2199 = vdwg.mxu0
        %2200 = vmatprep.subr.bf16.mxu0 %v1911
        %2201 = vmatpush1.bf16.msra.mxu0 %v1908
        %2202 = vmatprep.subr.bf16.mxu0 0
        %2203 = vmatpush1.bf16.msra.mxu0 0
        %2204 = vmatprep.subr.bf16.mxu0 0
        %2205 = vmatpush1.bf16.msra.mxu0 0
        %2206 = vmatprep.subr.bf16.mxu0 0
        %2207 = vmatpush1.bf16.msra.mxu0 0
        %2208 = vmatprep.subr.bf16.mxu0 0
        %2209 = vmatpush1.bf16.msra.mxu0 0
        %2210 = vmatprep.subr.bf16.mxu0 0
        %2211 = vmatpush1.bf16.msra.mxu0 0
        %2212 = vmatprep.subr.bf16.mxu0 0
        %2213 = vmatpush1.bf16.msra.mxu0 0
        %2214 = vmatprep.subr.bf16.mxu0 0
        %2215 = vmatpush1.bf16.msra.mxu0 0
        %2216 = vmatprep.subr.bf16.mxu0 0
        %2217 = vmatpush1.bf16.msra.mxu0 0
        %2218 = vmatprep.subr.bf16.mxu0 0
        %2219 = vmatpush1.bf16.msra.mxu0 0
        %2220 = vmatprep.subr.bf16.mxu0 0
        %2221 = vmatpush1.bf16.msra.mxu0 0
        %2222 = vmatprep.subr.bf16.mxu0 0
        %2223 = vmatpush1.bf16.msra.mxu0 0
        %2224 = vmatprep.subr.bf16.mxu0 0
        %2225 = vmatpush1.bf16.msra.mxu0 0
        %2226 = vmatprep.subr.bf16.mxu0 0
        %2227 = vmatpush1.bf16.msra.mxu0 0
        %2228 = vmatprep.subr.bf16.mxu0 0
        %2229 = vmatpush1.bf16.msra.mxu0 0
        %2230 = vmatprep.subr.bf16.mxu0 0
        %2231 = vmatpush1.bf16.msra.mxu0 0
        %2232 = vmatprep.mubr.bf16.mxu0 0
        %2233 = vmatmul.mubr.bf16.gmra.mrb[0].mxu0 %v1863
        %v2234 = vpop.f32.mrb[0].mxu0
        %v2235 = vadd.f32 %v1801, %v2234
        %v2236 = vpop.f32.mrb[0].mxu0
        %v2237 = vadd.f32 %v1805, %v2236
        %v2238 = vpop.f32.mrb[0].mxu0
        %v2239 = vpop.f32.mrb[0].mxu0
        %2240 = vdwg.mxu0
        %v2241 = vmax.f32 %v1948, 0.0
        %v2242 = vmax.f32 %v1950, 0.0
        %v2243 = vmax.f32 %v1989, 0.0
        %v2244 = vmax.f32 %v1991, 0.0
        %v2245 = vmax.f32 %v2030, 0.0
        %v2246 = vmax.f32 %v2032, 0.0
        %v2247 = vmax.f32 %v2071, 0.0
        %v2248 = vmax.f32 %v2073, 0.0
        %v2249 = vmax.f32 %v2112, 0.0
        %v2250 = vmax.f32 %v2114, 0.0
        %v2251 = vmax.f32 %v2153, 0.0
        %v2252 = vmax.f32 %v2155, 0.0
        %v2253 = vmax.f32 %v2194, 0.0
        %v2254 = vmax.f32 %v2196, 0.0
        %v2255 = vmax.f32 %v2235, 0.0
        %v2256 = vmax.f32 %v2237, 0.0
        %v2257 = vpack.c.bf16 %v2241, %v2241
        %v2258 = vpack.c.bf16 %v2242, %v2242
        %v2259 = vpack.c.bf16 %v2243, %v2243
        %v2260 = vpack.c.bf16 %v2244, %v2244
        %v2261 = vpack.c.bf16 %v2245, %v2245
        %v2262 = vpack.c.bf16 %v2246, %v2246
        %v2263 = vpack.c.bf16 %v2247, %v2247
        %v2264 = vpack.c.bf16 %v2248, %v2248
        %v2265 = vpack.c.bf16 %v2249, %v2249
        %v2266 = vpack.c.bf16 %v2250, %v2250
        %v2267 = vpack.c.bf16 %v2251, %v2251
        %v2268 = vpack.c.bf16 %v2252, %v2252
        %v2269 = vpack.c.bf16 %v2253, %v2253
        %v2270 = vpack.c.bf16 %v2254, %v2254
        %v2271 = vpack.c.bf16 %v2255, %v2255
        %v2272 = vpack.c.bf16 %v2256, %v2256
        %v2273 = vld [vmem:[#allocation12] sm:$0xff]
        %v2274 = vld [vmem:[#allocation12 + $0x8] sm:$0xff]
        %v2275 = vld [vmem:[#allocation12 + $0x10] sm:$0xff]
        %v2276 = vld [vmem:[#allocation12 + $0x18] sm:$0xff]
        %v2277 = vld [vmem:[#allocation12 + $0x20] sm:$0xff]
        %v2278 = vld [vmem:[#allocation12 + $0x28] sm:$0xff]
        %v2279 = vld [vmem:[#allocation12 + $0x30] sm:$0xff]
        %v2280 = vld [vmem:[#allocation12 + $0x38] sm:$0xff]
        %v2281 = vld [vmem:[#allocation7 + $0x5] sm:$0x1]
        %v2282 = vlaneseq
        %v2283 = vshrl.u32 %v2282, 7
        %v2284 = vsub.s32 0, %v2283
        %v2285 = vrot.slane %v2281, %v2284
        %v2294 = vunpack.c.l.b16 %v2273
        %v2295 = vunpack.c.h.b16 %v2273
        %v2296 = vunpack.c.l.b16 %v2274
        %v2297 = vunpack.c.h.b16 %v2274
        %v2298 = vunpack.c.l.b16 %v2275
        %v2299 = vunpack.c.h.b16 %v2275
        %v2300 = vunpack.c.l.b16 %v2276
        %v2301 = vunpack.c.h.b16 %v2276
        %v2302 = vunpack.c.l.b16 %v2277
        %v2303 = vunpack.c.h.b16 %v2277
        %v2304 = vunpack.c.l.b16 %v2278
        %v2305 = vunpack.c.h.b16 %v2278
        %v2306 = vunpack.c.l.b16 %v2279
        %v2307 = vunpack.c.h.b16 %v2279
        %v2308 = vunpack.c.l.b16 %v2280
        %v2309 = vunpack.c.h.b16 %v2280
        %v2310 = vpack.c.b16 %v2294, %v2294
        %v2311 = vpack.c.b16 %v2295, %v2295
        %v2312 = vpack.c.b16 %v2296, %v2296
        %v2313 = vpack.c.b16 %v2297, %v2297
        %v2314 = vpack.c.b16 %v2298, %v2298
        %v2315 = vpack.c.b16 %v2299, %v2299
        %v2316 = vpack.c.b16 %v2300, %v2300
        %v2317 = vpack.c.b16 %v2301, %v2301
        %v2318 = vpack.c.b16 %v2302, %v2302
        %v2319 = vpack.c.b16 %v2303, %v2303
        %v2320 = vpack.c.b16 %v2304, %v2304
        %v2321 = vpack.c.b16 %v2305, %v2305
        %v2322 = vpack.c.b16 %v2306, %v2306
        %v2323 = vpack.c.b16 %v2307, %v2307
        %v2324 = vpack.c.b16 %v2308, %v2308
        %v2325 = vpack.c.b16 %v2309, %v2309
        %2342 = vmatprep.subr.bf16.mxu0 %v2311
        %2343 = vmatpush1.bf16.xpose.msra.mxu0 %v2310
        %2344 = vmatprep.subr.bf16.mxu0 0
        %2345 = vmatpush1.bf16.xpose.msra.mxu0 0
        %2346 = vmatprep.subr.bf16.mxu0 0
        %2347 = vmatpush1.bf16.xpose.msra.mxu0 0
        %2348 = vmatprep.subr.bf16.mxu0 0
        %2349 = vmatpush1.bf16.xpose.msra.mxu0 0
        %2350 = vmatprep.subr.bf16.mxu0 0
        %2351 = vmatpush1.bf16.xpose.msra.mxu0 0
        %2352 = vmatprep.subr.bf16.mxu0 0
        %2353 = vmatpush1.bf16.xpose.msra.mxu0 0
        %2354 = vmatprep.subr.bf16.mxu0 0
        %2355 = vmatpush1.bf16.xpose.msra.mxu0 0
        %2356 = vmatprep.subr.bf16.mxu0 0
        %2357 = vmatpush1.bf16.xpose.msra.mxu0 0
        %2358 = vmatprep.subr.bf16.mxu0 0
        %2359 = vmatpush1.bf16.xpose.msra.mxu0 0
        %2360 = vmatprep.subr.bf16.mxu0 0
        %2361 = vmatpush1.bf16.xpose.msra.mxu0 0
        %2362 = vmatprep.subr.bf16.mxu0 0
        %2363 = vmatpush1.bf16.xpose.msra.mxu0 0
        %2364 = vmatprep.subr.bf16.mxu0 0
        %2365 = vmatpush1.bf16.xpose.msra.mxu0 0
        %2366 = vmatprep.subr.bf16.mxu0 0
        %2367 = vmatpush1.bf16.xpose.msra.mxu0 0
        %2368 = vmatprep.subr.bf16.mxu0 0
        %2369 = vmatpush1.bf16.xpose.msra.mxu0 0
        %2370 = vmatprep.subr.bf16.mxu0 0
        %2371 = vmatpush1.bf16.xpose.msra.mxu0 0
        %2372 = vmatprep.subr.bf16.mxu0 0
        %2373 = vmatpush1.bf16.xpose.msra.mxu0 0
        %2374 = vmatprep.mubr.bf16.mxu0 %v2258
        %2375 = vmatmul.mubr.bf16.gmra.mrb[0].mxu0 %v2257
        %v2376 = vpop.f32.mrb[0].mxu0
        %v2377 = vadd.f32 %v2285, %v2376
        %v2378 = vpop.f32.mrb[0].mxu0
        %v2379 = vpop.f32.mrb[0].mxu0
        %v2380 = vpop.f32.mrb[0].mxu0
        %2381 = vdwg.mxu0
        %2382 = vmatprep.subr.bf16.mxu0 %v2313
        %2383 = vmatpush1.bf16.xpose.msra.mxu0 %v2312
        %2384 = vmatprep.subr.bf16.mxu0 0
        %2385 = vmatpush1.bf16.xpose.msra.mxu0 0
        %2386 = vmatprep.subr.bf16.mxu0 0
        %2387 = vmatpush1.bf16.xpose.msra.mxu0 0
        %2388 = vmatprep.subr.bf16.mxu0 0
        %2389 = vmatpush1.bf16.xpose.msra.mxu0 0
        %2390 = vmatprep.subr.bf16.mxu0 0
        %2391 = vmatpush1.bf16.xpose.msra.mxu0 0
        %2392 = vmatprep.subr.bf16.mxu0 0
        %2393 = vmatpush1.bf16.xpose.msra.mxu0 0
        %2394 = vmatprep.subr.bf16.mxu0 0
        %2395 = vmatpush1.bf16.xpose.msra.mxu0 0
        %2396 = vmatprep.subr.bf16.mxu0 0
        %2397 = vmatpush1.bf16.xpose.msra.mxu0 0
        %2398 = vmatprep.subr.bf16.mxu0 0
        %2399 = vmatpush1.bf16.xpose.msra.mxu0 0
        %2400 = vmatprep.subr.bf16.mxu0 0
        %2401 = vmatpush1.bf16.xpose.msra.mxu0 0
        %2402 = vmatprep.subr.bf16.mxu0 0
        %2403 = vmatpush1.bf16.xpose.msra.mxu0 0
        %2404 = vmatprep.subr.bf16.mxu0 0
        %2405 = vmatpush1.bf16.xpose.msra.mxu0 0
        %2406 = vmatprep.subr.bf16.mxu0 0
        %2407 = vmatpush1.bf16.xpose.msra.mxu0 0
        %2408 = vmatprep.subr.bf16.mxu0 0
        %2409 = vmatpush1.bf16.xpose.msra.mxu0 0
        %2410 = vmatprep.subr.bf16.mxu0 0
        %2411 = vmatpush1.bf16.xpose.msra.mxu0 0
        %2412 = vmatprep.subr.bf16.mxu0 0
        %2413 = vmatpush1.bf16.xpose.msra.mxu0 0
        %2414 = vmatprep.mubr.bf16.mxu0 %v2260
        %2415 = vmatmul.mubr.bf16.gmra.mrb[0].mxu0 %v2259
        %v2416 = vpop.f32.mrb[0].mxu0
        %v2417 = vadd.f32 %v2377, %v2416
        %v2418 = vpop.f32.mrb[0].mxu0
        %v2419 = vpop.f32.mrb[0].mxu0
        %v2420 = vpop.f32.mrb[0].mxu0
        %2421 = vdwg.mxu0
        %2422 = vmatprep.subr.bf16.mxu0 %v2315
        %2423 = vmatpush1.bf16.xpose.msra.mxu0 %v2314
        %2424 = vmatprep.subr.bf16.mxu0 0
        %2425 = vmatpush1.bf16.xpose.msra.mxu0 0
        %2426 = vmatprep.subr.bf16.mxu0 0
        %2427 = vmatpush1.bf16.xpose.msra.mxu0 0
        %2428 = vmatprep.subr.bf16.mxu0 0
        %2429 = vmatpush1.bf16.xpose.msra.mxu0 0
        %2430 = vmatprep.subr.bf16.mxu0 0
        %2431 = vmatpush1.bf16.xpose.msra.mxu0 0
        %2432 = vmatprep.subr.bf16.mxu0 0
        %2433 = vmatpush1.bf16.xpose.msra.mxu0 0
        %2434 = vmatprep.subr.bf16.mxu0 0
        %2435 = vmatpush1.bf16.xpose.msra.mxu0 0
        %2436 = vmatprep.subr.bf16.mxu0 0
        %2437 = vmatpush1.bf16.xpose.msra.mxu0 0
        %2438 = vmatprep.subr.bf16.mxu0 0
        %2439 = vmatpush1.bf16.xpose.msra.mxu0 0
        %2440 = vmatprep.subr.bf16.mxu0 0
        %2441 = vmatpush1.bf16.xpose.msra.mxu0 0
        %2442 = vmatprep.subr.bf16.mxu0 0
        %2443 = vmatpush1.bf16.xpose.msra.mxu0 0
        %2444 = vmatprep.subr.bf16.mxu0 0
        %2445 = vmatpush1.bf16.xpose.msra.mxu0 0
        %2446 = vmatprep.subr.bf16.mxu0 0
        %2447 = vmatpush1.bf16.xpose.msra.mxu0 0
        %2448 = vmatprep.subr.bf16.mxu0 0
        %2449 = vmatpush1.bf16.xpose.msra.mxu0 0
        %2450 = vmatprep.subr.bf16.mxu0 0
        %2451 = vmatpush1.bf16.xpose.msra.mxu0 0
        %2452 = vmatprep.subr.bf16.mxu0 0
        %2453 = vmatpush1.bf16.xpose.msra.mxu0 0
        %2454 = vmatprep.mubr.bf16.mxu0 %v2262
        %2455 = vmatmul.mubr.bf16.gmra.mrb[0].mxu0 %v2261
        %v2456 = vpop.f32.mrb[0].mxu0
        %v2457 = vadd.f32 %v2417, %v2456
        %v2458 = vpop.f32.mrb[0].mxu0
        %v2459 = vpop.f32.mrb[0].mxu0
        %v2460 = vpop.f32.mrb[0].mxu0
        %2461 = vdwg.mxu0
        %2462 = vmatprep.subr.bf16.mxu0 %v2317
        %2463 = vmatpush1.bf16.xpose.msra.mxu0 %v2316
        %2464 = vmatprep.subr.bf16.mxu0 0
        %2465 = vmatpush1.bf16.xpose.msra.mxu0 0
        %2466 = vmatprep.subr.bf16.mxu0 0
        %2467 = vmatpush1.bf16.xpose.msra.mxu0 0
        %2468 = vmatprep.subr.bf16.mxu0 0
        %2469 = vmatpush1.bf16.xpose.msra.mxu0 0
        %2470 = vmatprep.subr.bf16.mxu0 0
        %2471 = vmatpush1.bf16.xpose.msra.mxu0 0
        %2472 = vmatprep.subr.bf16.mxu0 0
        %2473 = vmatpush1.bf16.xpose.msra.mxu0 0
        %2474 = vmatprep.subr.bf16.mxu0 0
        %2475 = vmatpush1.bf16.xpose.msra.mxu0 0
        %2476 = vmatprep.subr.bf16.mxu0 0
        %2477 = vmatpush1.bf16.xpose.msra.mxu0 0
        %2478 = vmatprep.subr.bf16.mxu0 0
        %2479 = vmatpush1.bf16.xpose.msra.mxu0 0
        %2480 = vmatprep.subr.bf16.mxu0 0
        %2481 = vmatpush1.bf16.xpose.msra.mxu0 0
        %2482 = vmatprep.subr.bf16.mxu0 0
        %2483 = vmatpush1.bf16.xpose.msra.mxu0 0
        %2484 = vmatprep.subr.bf16.mxu0 0
        %2485 = vmatpush1.bf16.xpose.msra.mxu0 0
        %2486 = vmatprep.subr.bf16.mxu0 0
        %2487 = vmatpush1.bf16.xpose.msra.mxu0 0
        %2488 = vmatprep.subr.bf16.mxu0 0
        %2489 = vmatpush1.bf16.xpose.msra.mxu0 0
        %2490 = vmatprep.subr.bf16.mxu0 0
        %2491 = vmatpush1.bf16.xpose.msra.mxu0 0
        %2492 = vmatprep.subr.bf16.mxu0 0
        %2493 = vmatpush1.bf16.xpose.msra.mxu0 0
        %2494 = vmatprep.mubr.bf16.mxu0 %v2264
        %2495 = vmatmul.mubr.bf16.gmra.mrb[0].mxu0 %v2263
        %v2496 = vpop.f32.mrb[0].mxu0
        %v2497 = vadd.f32 %v2457, %v2496
        %v2498 = vpop.f32.mrb[0].mxu0
        %v2499 = vpop.f32.mrb[0].mxu0
        %v2500 = vpop.f32.mrb[0].mxu0
        %2501 = vdwg.mxu0
        %2502 = vmatprep.subr.bf16.mxu0 %v2319
        %2503 = vmatpush1.bf16.xpose.msra.mxu0 %v2318
        %2504 = vmatprep.subr.bf16.mxu0 0
        %2505 = vmatpush1.bf16.xpose.msra.mxu0 0
        %2506 = vmatprep.subr.bf16.mxu0 0
        %2507 = vmatpush1.bf16.xpose.msra.mxu0 0
        %2508 = vmatprep.subr.bf16.mxu0 0
        %2509 = vmatpush1.bf16.xpose.msra.mxu0 0
        %2510 = vmatprep.subr.bf16.mxu0 0
        %2511 = vmatpush1.bf16.xpose.msra.mxu0 0
        %2512 = vmatprep.subr.bf16.mxu0 0
        %2513 = vmatpush1.bf16.xpose.msra.mxu0 0
        %2514 = vmatprep.subr.bf16.mxu0 0
        %2515 = vmatpush1.bf16.xpose.msra.mxu0 0
        %2516 = vmatprep.subr.bf16.mxu0 0
        %2517 = vmatpush1.bf16.xpose.msra.mxu0 0
        %2518 = vmatprep.subr.bf16.mxu0 0
        %2519 = vmatpush1.bf16.xpose.msra.mxu0 0
        %2520 = vmatprep.subr.bf16.mxu0 0
        %2521 = vmatpush1.bf16.xpose.msra.mxu0 0
        %2522 = vmatprep.subr.bf16.mxu0 0
        %2523 = vmatpush1.bf16.xpose.msra.mxu0 0
        %2524 = vmatprep.subr.bf16.mxu0 0
        %2525 = vmatpush1.bf16.xpose.msra.mxu0 0
        %2526 = vmatprep.subr.bf16.mxu0 0
        %2527 = vmatpush1.bf16.xpose.msra.mxu0 0
        %2528 = vmatprep.subr.bf16.mxu0 0
        %2529 = vmatpush1.bf16.xpose.msra.mxu0 0
        %2530 = vmatprep.subr.bf16.mxu0 0
        %2531 = vmatpush1.bf16.xpose.msra.mxu0 0
        %2532 = vmatprep.subr.bf16.mxu0 0
        %2533 = vmatpush1.bf16.xpose.msra.mxu0 0
        %2534 = vmatprep.mubr.bf16.mxu0 %v2266
        %2535 = vmatmul.mubr.bf16.gmra.mrb[0].mxu0 %v2265
        %v2536 = vpop.f32.mrb[0].mxu0
        %v2537 = vadd.f32 %v2497, %v2536
        %v2538 = vpop.f32.mrb[0].mxu0
        %v2539 = vpop.f32.mrb[0].mxu0
        %v2540 = vpop.f32.mrb[0].mxu0
        %2541 = vdwg.mxu0
        %2542 = vmatprep.subr.bf16.mxu0 %v2321
        %2543 = vmatpush1.bf16.xpose.msra.mxu0 %v2320
        %2544 = vmatprep.subr.bf16.mxu0 0
        %2545 = vmatpush1.bf16.xpose.msra.mxu0 0
        %2546 = vmatprep.subr.bf16.mxu0 0
        %2547 = vmatpush1.bf16.xpose.msra.mxu0 0
        %2548 = vmatprep.subr.bf16.mxu0 0
        %2549 = vmatpush1.bf16.xpose.msra.mxu0 0
        %2550 = vmatprep.subr.bf16.mxu0 0
        %2551 = vmatpush1.bf16.xpose.msra.mxu0 0
        %2552 = vmatprep.subr.bf16.mxu0 0
        %2553 = vmatpush1.bf16.xpose.msra.mxu0 0
        %2554 = vmatprep.subr.bf16.mxu0 0
        %2555 = vmatpush1.bf16.xpose.msra.mxu0 0
        %2556 = vmatprep.subr.bf16.mxu0 0
        %2557 = vmatpush1.bf16.xpose.msra.mxu0 0
        %2558 = vmatprep.subr.bf16.mxu0 0
        %2559 = vmatpush1.bf16.xpose.msra.mxu0 0
        %2560 = vmatprep.subr.bf16.mxu0 0
        %2561 = vmatpush1.bf16.xpose.msra.mxu0 0
        %2562 = vmatprep.subr.bf16.mxu0 0
        %2563 = vmatpush1.bf16.xpose.msra.mxu0 0
        %2564 = vmatprep.subr.bf16.mxu0 0
        %2565 = vmatpush1.bf16.xpose.msra.mxu0 0
        %2566 = vmatprep.subr.bf16.mxu0 0
        %2567 = vmatpush1.bf16.xpose.msra.mxu0 0
        %2568 = vmatprep.subr.bf16.mxu0 0
        %2569 = vmatpush1.bf16.xpose.msra.mxu0 0
        %2570 = vmatprep.subr.bf16.mxu0 0
        %2571 = vmatpush1.bf16.xpose.msra.mxu0 0
        %2572 = vmatprep.subr.bf16.mxu0 0
        %2573 = vmatpush1.bf16.xpose.msra.mxu0 0
        %2574 = vmatprep.mubr.bf16.mxu0 %v2268
        %2575 = vmatmul.mubr.bf16.gmra.mrb[0].mxu0 %v2267
        %v2576 = vpop.f32.mrb[0].mxu0
        %v2577 = vadd.f32 %v2537, %v2576
        %v2578 = vpop.f32.mrb[0].mxu0
        %v2579 = vpop.f32.mrb[0].mxu0
        %v2580 = vpop.f32.mrb[0].mxu0
        %2581 = vdwg.mxu0
        %2582 = vmatprep.subr.bf16.mxu0 %v2323
        %2583 = vmatpush1.bf16.xpose.msra.mxu0 %v2322
        %2584 = vmatprep.subr.bf16.mxu0 0
        %2585 = vmatpush1.bf16.xpose.msra.mxu0 0
        %2586 = vmatprep.subr.bf16.mxu0 0
        %2587 = vmatpush1.bf16.xpose.msra.mxu0 0
        %2588 = vmatprep.subr.bf16.mxu0 0
        %2589 = vmatpush1.bf16.xpose.msra.mxu0 0
        %2590 = vmatprep.subr.bf16.mxu0 0
        %2591 = vmatpush1.bf16.xpose.msra.mxu0 0
        %2592 = vmatprep.subr.bf16.mxu0 0
        %2593 = vmatpush1.bf16.xpose.msra.mxu0 0
        %2594 = vmatprep.subr.bf16.mxu0 0
        %2595 = vmatpush1.bf16.xpose.msra.mxu0 0
        %2596 = vmatprep.subr.bf16.mxu0 0
        %2597 = vmatpush1.bf16.xpose.msra.mxu0 0
        %2598 = vmatprep.subr.bf16.mxu0 0
        %2599 = vmatpush1.bf16.xpose.msra.mxu0 0
        %2600 = vmatprep.subr.bf16.mxu0 0
        %2601 = vmatpush1.bf16.xpose.msra.mxu0 0
        %2602 = vmatprep.subr.bf16.mxu0 0
        %2603 = vmatpush1.bf16.xpose.msra.mxu0 0
        %2604 = vmatprep.subr.bf16.mxu0 0
        %2605 = vmatpush1.bf16.xpose.msra.mxu0 0
        %2606 = vmatprep.subr.bf16.mxu0 0
        %2607 = vmatpush1.bf16.xpose.msra.mxu0 0
        %2608 = vmatprep.subr.bf16.mxu0 0
        %2609 = vmatpush1.bf16.xpose.msra.mxu0 0
        %2610 = vmatprep.subr.bf16.mxu0 0
        %2611 = vmatpush1.bf16.xpose.msra.mxu0 0
        %2612 = vmatprep.subr.bf16.mxu0 0
        %2613 = vmatpush1.bf16.xpose.msra.mxu0 0
        %2614 = vmatprep.mubr.bf16.mxu0 %v2270
        %2615 = vmatmul.mubr.bf16.gmra.mrb[0].mxu0 %v2269
        %v2616 = vpop.f32.mrb[0].mxu0
        %v2617 = vadd.f32 %v2577, %v2616
        %v2618 = vpop.f32.mrb[0].mxu0
        %v2619 = vpop.f32.mrb[0].mxu0
        %v2620 = vpop.f32.mrb[0].mxu0
        %2621 = vdwg.mxu0
        %2622 = vmatprep.subr.bf16.mxu0 %v2325
        %2623 = vmatpush1.bf16.xpose.msra.mxu0 %v2324
        %2624 = vmatprep.subr.bf16.mxu0 0
        %2625 = vmatpush1.bf16.xpose.msra.mxu0 0
        %2626 = vmatprep.subr.bf16.mxu0 0
        %2627 = vmatpush1.bf16.xpose.msra.mxu0 0
        %2628 = vmatprep.subr.bf16.mxu0 0
        %2629 = vmatpush1.bf16.xpose.msra.mxu0 0
        %2630 = vmatprep.subr.bf16.mxu0 0
        %2631 = vmatpush1.bf16.xpose.msra.mxu0 0
        %2632 = vmatprep.subr.bf16.mxu0 0
        %2633 = vmatpush1.bf16.xpose.msra.mxu0 0
        %2634 = vmatprep.subr.bf16.mxu0 0
        %2635 = vmatpush1.bf16.xpose.msra.mxu0 0
        %2636 = vmatprep.subr.bf16.mxu0 0
        %2637 = vmatpush1.bf16.xpose.msra.mxu0 0
        %2638 = vmatprep.subr.bf16.mxu0 0
        %2639 = vmatpush1.bf16.xpose.msra.mxu0 0
        %2640 = vmatprep.subr.bf16.mxu0 0
        %2641 = vmatpush1.bf16.xpose.msra.mxu0 0
        %2642 = vmatprep.subr.bf16.mxu0 0
        %2643 = vmatpush1.bf16.xpose.msra.mxu0 0
        %2644 = vmatprep.subr.bf16.mxu0 0
        %2645 = vmatpush1.bf16.xpose.msra.mxu0 0
        %2646 = vmatprep.subr.bf16.mxu0 0
        %2647 = vmatpush1.bf16.xpose.msra.mxu0 0
        %2648 = vmatprep.subr.bf16.mxu0 0
        %2649 = vmatpush1.bf16.xpose.msra.mxu0 0
        %2650 = vmatprep.subr.bf16.mxu0 0
        %2651 = vmatpush1.bf16.xpose.msra.mxu0 0
        %2652 = vmatprep.subr.bf16.mxu0 0
        %2653 = vmatpush1.bf16.xpose.msra.mxu0 0
        %2654 = vmatprep.mubr.bf16.mxu0 %v2272
        %2655 = vmatmul.mubr.bf16.gmra.mrb[0].mxu0 %v2271
        %v2656 = vpop.f32.mrb[0].mxu0
        %v2657 = vadd.f32 %v2617, %v2656
        %v2658 = vpop.f32.mrb[0].mxu0
        %v2659 = vpop.f32.mrb[0].mxu0
        %v2660 = vpop.f32.mrb[0].mxu0
        %2661 = vdwg.mxu0
        %v2662 = vadd.f32 %v1728, %v2657
        %v2663 = vld [vmem:[#allocation7 + $0x6] sm:$0x1]
        %v2664 = vld [vmem:[#allocation7 + $0x7] sm:$0x1]
        %v2665 = vsel %vm533, %v2662, 0.0
        %2666 = vadd.xlane.f32.xlu0 %v2665
        %v2667 = vpop.xlane.xlu0 %2666
        %v2668 = vmul.f32 %v2667, %v1708
        %v2669 = vsub.f32 %v2662, %v2668
        %v2670 = vmul.f32 %v2669, %v2669
        %v2671 = vsel %vm533, %v2670, 0.0
        %2672 = vadd.xlane.f32.xlu0 %v2671
        %v2673 = vpop.xlane.xlu0 %2672
        %v2674 = vmul.f32 %v2673, %v1708
        %v2675 = vadd.f32 %v2674, 1e-05
        %v2676 = vrsqrt.pop %v2675
        %v2677 = vmul.f32 %v2669, %v2676
        %v2678 = vlaneseq
        %v2679 = vshrl.u32 %v2678, 7
        %v2680 = vsub.s32 0, %v2679
        %v2681 = vrot.slane %v2663, %v2680
        %v2682 = vmul.f32 %v2677, %v2681
        %v2683 = vlaneseq
        %v2684 = vshrl.u32 %v2683, 7
        %v2685 = vsub.s32 0, %v2684
        %v2686 = vrot.slane %v2664, %v2685
        %v2687 = vadd.f32 %v2682, %v2686
        %v2688 = vadd.f32 %v840, %v2687
        %s2689 = scalar_lea.vmem [#allocation6], 8
        %v2690 = vld [vmem:[%s2689] sm:$0xff]
        %v2691 = vld [vmem:[#allocation7 + $0x8] sm:$0x1]
        %v2692 = vlaneseq
        %v2693 = vshrl.u32 %v2692, 7
        %v2694 = vsub.s32 0, %v2693
        %v2695 = vrot.slane %v2691, %v2694
        %v2697 = vsel %vm533, %v2688, 0
        %2699 = vmatprep.subr.mxu0 0.0
        %2700 = vmatpush1.msra.mxu0 %v2690
        %2701 = vmatprep.subr.mxu0 0.0
        %2702 = vmatpush1.msra.mxu0 0.0
        %2703 = vmatprep.subr.mxu0 0.0
        %2704 = vmatpush1.msra.mxu0 0.0
        %2705 = vmatprep.subr.mxu0 0.0
        %2706 = vmatpush1.msra.mxu0 0.0
        %2707 = vmatprep.subr.mxu0 0.0
        %2708 = vmatpush1.msra.mxu0 0.0
        %2709 = vmatprep.subr.mxu0 0.0
        %2710 = vmatpush1.msra.mxu0 0.0
        %2711 = vmatprep.subr.mxu0 0.0
        %2712 = vmatpush1.msra.mxu0 0.0
        %2713 = vmatprep.subr.mxu0 0.0
        %2714 = vmatpush1.msra.mxu0 0.0
        %2715 = vmatprep.subr.mxu0 0.0
        %2716 = vmatpush1.msra.mxu0 0.0
        %2717 = vmatprep.subr.mxu0 0.0
        %2718 = vmatpush1.msra.mxu0 0.0
        %2719 = vmatprep.subr.mxu0 0.0
        %2720 = vmatpush1.msra.mxu0 0.0
        %2721 = vmatprep.subr.mxu0 0.0
        %2722 = vmatpush1.msra.mxu0 0.0
        %2723 = vmatprep.subr.mxu0 0.0
        %2724 = vmatpush1.msra.mxu0 0.0
        %2725 = vmatprep.subr.mxu0 0.0
        %2726 = vmatpush1.msra.mxu0 0.0
        %2727 = vmatprep.subr.mxu0 0.0
        %2728 = vmatpush1.msra.mxu0 0.0
        %2729 = vmatprep.subr.mxu0 0.0
        %2730 = vmatpush1.msra.mxu0 0.0
        %2731 = vmatprep.subr.mxu0 0.0
        %2732 = vmatpush1.msra.mxu0 0.0
        %2733 = vmatprep.subr.mxu0 0.0
        %2734 = vmatpush1.msra.mxu0 0.0
        %2735 = vmatprep.subr.mxu0 0.0
        %2736 = vmatpush1.msra.mxu0 0.0
        %2737 = vmatprep.subr.mxu0 0.0
        %2738 = vmatpush1.msra.mxu0 0.0
        %2739 = vmatprep.subr.mxu0 0.0
        %2740 = vmatpush1.msra.mxu0 0.0
        %2741 = vmatprep.subr.mxu0 0.0
        %2742 = vmatpush1.msra.mxu0 0.0
        %2743 = vmatprep.subr.mxu0 0.0
        %2744 = vmatpush1.msra.mxu0 0.0
        %2745 = vmatprep.subr.mxu0 0.0
        %2746 = vmatpush1.msra.mxu0 0.0
        %2747 = vmatprep.subr.mxu0 0.0
        %2748 = vmatpush1.msra.mxu0 0.0
        %2749 = vmatprep.subr.mxu0 0.0
        %2750 = vmatpush1.msra.mxu0 0.0
        %2751 = vmatprep.subr.mxu0 0.0
        %2752 = vmatpush1.msra.mxu0 0.0
        %2753 = vmatprep.subr.mxu0 0.0
        %2754 = vmatpush1.msra.mxu0 0.0
        %2755 = vmatprep.subr.mxu0 0.0
        %2756 = vmatpush1.msra.mxu0 0.0
        %2757 = vmatprep.subr.mxu0 0.0
        %2758 = vmatpush1.msra.mxu0 0.0
        %2759 = vmatprep.subr.mxu0 0.0
        %2760 = vmatpush1.msra.mxu0 0.0
        %2761 = vmatprep.subr.mxu0 0.0
        %2762 = vmatpush1.msra.mxu0 0.0
        %2763 = vmatprep.mubr.f32.mxu0 0.0
        %2764 = vmatmul.mubr.f32.gmra.mrb[0].mxu0 %v2697
        %v2765 = vpop.f32.mrb[0].mxu0
        %v2766 = vadd.f32 %v2695, %v2765
        %v2767 = vpop.f32.mrb[0].mxu0
        %2768 = vdwg.mxu0
        %2769 = vst.msk [vmem:[%s448] sm:$0xff] %vm533, %v2766
        %p2770 = scmp.lt.s32.totalorder %s25, 1
        %s2771 = scalar_select %p2770, %s25, 1
        %s2772 = smul.addr %s2771, 8
        %s2773 = scalar_lea.vmem %s10, %s2772
        // Predicated region
        $region89: #{_lambda_.1} parent=59 // pred_check
          %p2774 = pneg %p258
        $region90: #{_lambda_.1} parent=59 // pred_check_branch
          %2776 = sbr.rel (%p2774) target = $region92
        $region91: #{_lambda_.1} parent=59 // pred_region
          _
        $region92: #{_lambda_.1} parent=59 // pred_fallthru
          _
      $region60: #{_lambda_.1} parent=5 // pred_fallthru
        _
      %p2777 = scmp.le.s32.totalorder 2, %s20
      // Predicated region
      $region93: #{_lambda_.1} parent=5 // pred_check
        %p2778 = pneg %p2777
      $region94: #{_lambda_.1} parent=5 // pred_check_branch
        %2780 = sbr.rel (%p2778) target = $region96
      $region95: #{_lambda_.1} parent=5 // pred_region
        %s2781 = ssub.s32 %s20, 2
        // Predicated region
        $region97: #{_lambda_.1} parent=95 // pred_check
          %p2782 = pneg %p264
        $region98: #{_lambda_.1} parent=95 // pred_check_branch
          %2784 = sbr.rel (%p2782) target = $region100
        $region99: #{_lambda_.1} parent=95 // pred_region
          %p2785 = scmp.lt.s32.totalorder %s26, 1
          %s2786 = scalar_select %p2785, %s26, 1
          %s2787 = smul.addr %s2786, 8
          %s2788 = scalar_lea.vmem %s10, %s2787
        $region100: #{_lambda_.1} parent=95 // pred_fallthru
          _
      $region96: #{_lambda_.1} parent=5 // pred_fallthru
        _
    $region6: #{_lambda_.1} parent=1 // loop_footer
      %s24 = sadd.s32 1, %s20
    $region7: #{_lambda_.1} parent=1 // loop_footer_branch
      %19 = sbr.rel target = $region3
    $region8: #{_lambda_.1} parent=1 // loop_exit
      _
    %2789 = vsyncpa [#allocation3], 1
    %s2790 = scalar_lea.sflag [#allocation3], 1
    %2791 = vsyncpa %s2790, 1
    %2792 = vsyncpa [#allocation5], 1
    %2793 = vsyncpa [#allocation8], 1
    %2794 = vsyncpa [#allocation11], 1

</llo_original>
